<compile_context>
chip_gen: v6e
topology: v6e:2x2x1
jax: 0.10.0
libtpu: 0.0.40
codegen_flags: <defaults>
</compile_context>

<pallas_src>
import jax
import jax.numpy as jnp
from jax.experimental import pallas as pl
from jax.experimental.pallas import tpu as pltpu


def sap_alt_kernel(x_ref, w1_ref, b1_ref, w2_hbm, b2_ref, w3_hbm, b3_ref,
                   w4_hbm, b4_ref, out_ref, w2_vmem, w3_vmem, w4_vmem, sems):
    # Start every weight stream up front, in consumption order
    # (w2 -> w3 -> w4 chunk 0..2), so they overlap the matmul chain below.
    w2_copy = pltpu.make_async_copy(w2_hbm, w2_vmem, sems.at[0])
    w3_copy = pltpu.make_async_copy(w3_hbm, w3_vmem, sems.at[1])
    w4_copies = [
        pltpu.make_async_copy(w4_hbm.at[r], w4_vmem.at[r], sems.at[2 + r])
        for r in range(3)
    ]
    w2_copy.start()
    w3_copy.start()
    for c in w4_copies:
        c.start()

    # fc1 -> fc3: bf16 operands on the MXU, f32 accumulation, f32 bias add.
    # x arrives already as bf16 from the wrapper.
    h = jnp.dot(x_ref[...], w1_ref[...],
                preferred_element_type=jnp.float32) + b1_ref[...]       # (3, 480)

    w2_copy.wait()
    h = jnp.dot(h.astype(jnp.bfloat16), w2_vmem[...],
                preferred_element_type=jnp.float32) + b2_ref[...]

    w3_copy.wait()
    h = jnp.dot(h.astype(jnp.bfloat16), w3_vmem[...],
                preferred_element_type=jnp.float32) + b3_ref[...]
    h = h.astype(jnp.bfloat16)                                          # (3, 480)

    # fc4 over the logically-flattened (1, 1440) vector: three independent
    # partial dots (one per row-chunk), waiting only on the chunk about to be
    # used so the remaining 2/3 of the w4 stream hides behind MXU work.
    parts = []
    for r in range(3):                                                  # static unroll
        w4_copies[r].wait()
        parts.append(jnp.dot(h[r:r + 1, :], w4_vmem[r],
                             preferred_element_type=jnp.float32))       # (1, 480)
    y = b4_ref[...] + parts[0] + parts[1] + parts[2]                    # (1, 480) f32

    # Numerically-stable softmax over the 480 lanes. Exact divide so the
    # output is a true probability distribution (sums to 1 in f32).
    m = jnp.max(y, axis=-1, keepdims=True)
    p = jnp.exp(y - m)
    s = jnp.sum(p, axis=-1, keepdims=True)
    out_ref[...] = p / s


def prepare_params(params):
    """One-time re-layout + bf16 cast of the weights (hoisted out of the
    per-call path; the forward itself does no layout work)."""
    w1, b1, w2, b2, w3, b3, w4, b4 = params
    w1t = w1.T.astype(jnp.bfloat16)                       # (480_in, 480_out)
    w2t = w2.T.astype(jnp.bfloat16)
    w3t = w3.T.astype(jnp.bfloat16)
    # (480_out, 1440_in) -> (1440_in, 480_out) -> (3, 480_in_chunk, 480_out)
    w4t = w4.T.reshape(3, 480, 480).astype(jnp.bfloat16)
    b1r, b2r, b3r, b4r = (b.reshape(1, 480).astype(jnp.float32)
                          for b in (b1, b2, b3, b4))
    return (w1t, b1r, w2t, b2r, w3t, b3r, w4t, b4r)


@jax.jit
def sap_alt_forward(x, prepared):
    w1t, b1r, w2t, b2r, w3t, b3r, w4t, b4r = prepared
    x2 = x.reshape(3, 480).astype(jnp.bfloat16)           # cast once in the wrapper

    vmem = pl.BlockSpec(memory_space=pltpu.MemorySpace.VMEM)
    hbm = pl.BlockSpec(memory_space=pl.ANY)               # weights streamed manually

    out = pl.pallas_call(
        sap_alt_kernel,
        out_shape=jax.ShapeDtypeStruct((1, 480), jnp.float32),
        in_specs=[vmem,            # x (bf16)
                  vmem, vmem,      # w1, b1   (w1 via prologue DMA)
                  hbm, vmem,       # w2 (manual DMA), b2
                  hbm, vmem,       # w3 (manual DMA), b3
                  hbm,             # w4 (manual, 3 chunked DMAs)
                  vmem],           # b4
        out_specs=vmem,
        scratch_shapes=[pltpu.VMEM((480, 480), jnp.bfloat16),   # w2 landing buf
                        pltpu.VMEM((480, 480), jnp.bfloat16),   # w3 landing buf
                        pltpu.VMEM((3, 480, 480), jnp.bfloat16),  # w4 landing buf
                        pltpu.SemaphoreType.DMA((5,))],         # w2, w3, w4[0..2]
        cost_estimate=pl.CostEstimate(flops=5_529_600,
                                      transcendentals=480,
                                      bytes_accessed=2_780_000),
    )(x2, w1t, b1r, w2t, b2r, w3t, b3r, w4t, b4r)
    return out.reshape(480)


def init_params(key):
    """Deterministic PyTorch-style init: U(-1/sqrt(fan_in), 1/sqrt(fan_in))."""
    ks = jax.random.split(key, 8)

    def linear(kw, kb, out_f, in_f):
        bound = 1.0 / (in_f ** 0.5)
        w = jax.random.uniform(kw, (out_f, in_f), jnp.float32, -bound, bound)
        b = jax.random.uniform(kb, (out_f,), jnp.float32, -bound, bound)
        return w, b

    w1, b1 = linear(ks[0], ks[1], 480, 480)
    w2, b2 = linear(ks[2], ks[3], 480, 480)
    w3, b3 = linear(ks[4], ks[5], 480, 480)
    w4, b4 = linear(ks[6], ks[7], 480, 1440)
    return (w1, b1, w2, b2, w3, b3, w4, b4)


def sap_alt_reference(x, params):
    """Pure-JAX f32 reference mirroring the PyTorch forward exactly."""
    w1, b1, w2, b2, w3, b3, w4, b4 = params
    h = x.reshape(3, 480)
    h = h @ w1.T + b1
    h = h @ w2.T + b2
    h = h @ w3.T + b3
    v = h.reshape(1, 1440)[0]
    v = v @ w4.T + b4
    return jax.nn.softmax(v, axis=-1)


if __name__ == "__main__":
    key = jax.random.PRNGKey(0)
    k_x, k_p = jax.random.split(key)
    # Module dictates the shapes: input must have 3 * 480 = 1440 elements.
    x = jax.random.normal(k_x, (3, 480), dtype=jnp.float32)
    params = init_params(k_p)

    prepared = prepare_params(params)          # one-time layout + bf16 cast
    out = sap_alt_forward(x, prepared)
    out = jax.block_until_ready(out)

    ref = sap_alt_reference(x, params)
    assert out.shape == (480,)
    # Weights/activations are streamed in bf16 -> tolerances loosened accordingly.
    assert jnp.allclose(out, ref, atol=3e-4, rtol=5e-2), (
        f"max abs diff {jnp.max(jnp.abs(out - ref))}")
    # Exact divide in the softmax: the output is a true distribution.
    assert jnp.allclose(jnp.sum(out), 1.0, atol=1e-3), (
        f"sum = {jnp.sum(out)}")

    print("KERNEL_OK")
</pallas_src>

<mosaic_0001>
module attributes {stable_mosaic.version = 11 : i64} {
  func.func @sap_alt_kernel(%arg0: memref<3x480xbf16, #tpu.memory_space<vmem>>, %arg1: memref<480x480xbf16, #tpu.memory_space<vmem>>, %arg2: memref<1x480xf32, #tpu.memory_space<vmem>>, %arg3: memref<480x480xbf16, #tpu.memory_space<any>>, %arg4: memref<1x480xf32, #tpu.memory_space<vmem>>, %arg5: memref<480x480xbf16, #tpu.memory_space<any>>, %arg6: memref<1x480xf32, #tpu.memory_space<vmem>>, %arg7: memref<3x480x480xbf16, #tpu.memory_space<any>>, %arg8: memref<1x480xf32, #tpu.memory_space<vmem>>, %arg9: memref<1x480xf32, #tpu.memory_space<vmem>>, %arg10: memref<480x480xbf16, #tpu.memory_space<vmem>>, %arg11: memref<480x480xbf16, #tpu.memory_space<vmem>>, %arg12: memref<3x480x480xbf16, #tpu.memory_space<vmem>>, %arg13: memref<5x!tpu.dma_semaphore, #tpu.memory_space<semaphore_mem>>) attributes {dimension_semantics = [], scalar_prefetch = 0 : i64, scratch_operands = 4 : i64, tpu.core_type = #tpu.core_type<tc>} {
    %c0_i32 = arith.constant 0 : i32
    %0 = tpu.memref_slice %arg13[%c0_i32] : memref<5x!tpu.dma_semaphore, #tpu.memory_space<semaphore_mem>> -> memref<1x!tpu.dma_semaphore, #tpu.memory_space<semaphore_mem>>
    %1 = tpu.memref_squeeze %0 : memref<1x!tpu.dma_semaphore, #tpu.memory_space<semaphore_mem>> -> memref<!tpu.dma_semaphore, #tpu.memory_space<semaphore_mem>>
    tpu.enqueue_dma source(%arg3 : memref<480x480xbf16, #tpu.memory_space<any>>) target(%arg10 : memref<480x480xbf16, #tpu.memory_space<vmem>>) target_semaphore(%1 : memref<!tpu.dma_semaphore, #tpu.memory_space<semaphore_mem>>)
    %c1_i32 = arith.constant 1 : i32
    %2 = tpu.memref_slice %arg13[%c1_i32] : memref<5x!tpu.dma_semaphore, #tpu.memory_space<semaphore_mem>> -> memref<1x!tpu.dma_semaphore, #tpu.memory_space<semaphore_mem>>
    %3 = tpu.memref_squeeze %2 : memref<1x!tpu.dma_semaphore, #tpu.memory_space<semaphore_mem>> -> memref<!tpu.dma_semaphore, #tpu.memory_space<semaphore_mem>>
    tpu.enqueue_dma source(%arg5 : memref<480x480xbf16, #tpu.memory_space<any>>) target(%arg11 : memref<480x480xbf16, #tpu.memory_space<vmem>>) target_semaphore(%3 : memref<!tpu.dma_semaphore, #tpu.memory_space<semaphore_mem>>)
    %c0_i32_0 = arith.constant 0 : i32
    %c0_i32_1 = arith.constant 0 : i32
    %c2_i32 = arith.constant 2 : i32
    %c0_i32_2 = arith.constant 0 : i32
    %c0_i32_3 = arith.constant 0 : i32
    %4 = tpu.memref_slice %arg7[%c0_i32_0, %c0_i32_2, %c0_i32_3] : memref<3x480x480xbf16, #tpu.memory_space<any>> -> memref<1x480x480xbf16, #tpu.memory_space<any>>
    %5 = tpu.memref_squeeze %4 : memref<1x480x480xbf16, #tpu.memory_space<any>> -> memref<480x480xbf16, #tpu.memory_space<any>>
    %c0_i32_4 = arith.constant 0 : i32
    %c0_i32_5 = arith.constant 0 : i32
    %6 = tpu.memref_slice %arg12[%c0_i32_1, %c0_i32_4, %c0_i32_5] : memref<3x480x480xbf16, #tpu.memory_space<vmem>> -> memref<1x480x480xbf16, #tpu.memory_space<vmem>>
    %7 = tpu.memref_squeeze %6 : memref<1x480x480xbf16, #tpu.memory_space<vmem>> -> memref<480x480xbf16, #tpu.memory_space<vmem>>
    %8 = tpu.memref_slice %arg13[%c2_i32] : memref<5x!tpu.dma_semaphore, #tpu.memory_space<semaphore_mem>> -> memref<1x!tpu.dma_semaphore, #tpu.memory_space<semaphore_mem>>
    %9 = tpu.memref_squeeze %8 : memref<1x!tpu.dma_semaphore, #tpu.memory_space<semaphore_mem>> -> memref<!tpu.dma_semaphore, #tpu.memory_space<semaphore_mem>>
    tpu.enqueue_dma source(%5 : memref<480x480xbf16, #tpu.memory_space<any>>) target(%7 : memref<480x480xbf16, #tpu.memory_space<vmem>>) target_semaphore(%9 : memref<!tpu.dma_semaphore, #tpu.memory_space<semaphore_mem>>)
    %c1_i32_6 = arith.constant 1 : i32
    %c1_i32_7 = arith.constant 1 : i32
    %c3_i32 = arith.constant 3 : i32
    %c0_i32_8 = arith.constant 0 : i32
    %c0_i32_9 = arith.constant 0 : i32
    %10 = tpu.memref_slice %arg7[%c1_i32_6, %c0_i32_8, %c0_i32_9] : memref<3x480x480xbf16, #tpu.memory_space<any>> -> memref<1x480x480xbf16, #tpu.memory_space<any>>
    %11 = tpu.memref_squeeze %10 : memref<1x480x480xbf16, #tpu.memory_space<any>> -> memref<480x480xbf16, #tpu.memory_space<any>>
    %c0_i32_10 = arith.constant 0 : i32
    %c0_i32_11 = arith.constant 0 : i32
    %12 = tpu.memref_slice %arg12[%c1_i32_7, %c0_i32_10, %c0_i32_11] : memref<3x480x480xbf16, #tpu.memory_space<vmem>> -> memref<1x480x480xbf16, #tpu.memory_space<vmem>>
    %13 = tpu.memref_squeeze %12 : memref<1x480x480xbf16, #tpu.memory_space<vmem>> -> memref<480x480xbf16, #tpu.memory_space<vmem>>
    %14 = tpu.memref_slice %arg13[%c3_i32] : memref<5x!tpu.dma_semaphore, #tpu.memory_space<semaphore_mem>> -> memref<1x!tpu.dma_semaphore, #tpu.memory_space<semaphore_mem>>
    %15 = tpu.memref_squeeze %14 : memref<1x!tpu.dma_semaphore, #tpu.memory_space<semaphore_mem>> -> memref<!tpu.dma_semaphore, #tpu.memory_space<semaphore_mem>>
    tpu.enqueue_dma source(%11 : memref<480x480xbf16, #tpu.memory_space<any>>) target(%13 : memref<480x480xbf16, #tpu.memory_space<vmem>>) target_semaphore(%15 : memref<!tpu.dma_semaphore, #tpu.memory_space<semaphore_mem>>)
    %c2_i32_12 = arith.constant 2 : i32
    %c2_i32_13 = arith.constant 2 : i32
    %c4_i32 = arith.constant 4 : i32
    %c0_i32_14 = arith.constant 0 : i32
    %c0_i32_15 = arith.constant 0 : i32
    %16 = tpu.memref_slice %arg7[%c2_i32_12, %c0_i32_14, %c0_i32_15] : memref<3x480x480xbf16, #tpu.memory_space<any>> -> memref<1x480x480xbf16, #tpu.memory_space<any>>
    %17 = tpu.memref_squeeze %16 : memref<1x480x480xbf16, #tpu.memory_space<any>> -> memref<480x480xbf16, #tpu.memory_space<any>>
    %c0_i32_16 = arith.constant 0 : i32
    %c0_i32_17 = arith.constant 0 : i32
    %18 = tpu.memref_slice %arg12[%c2_i32_13, %c0_i32_16, %c0_i32_17] : memref<3x480x480xbf16, #tpu.memory_space<vmem>> -> memref<1x480x480xbf16, #tpu.memory_space<vmem>>
    %19 = tpu.memref_squeeze %18 : memref<1x480x480xbf16, #tpu.memory_space<vmem>> -> memref<480x480xbf16, #tpu.memory_space<vmem>>
    %20 = tpu.memref_slice %arg13[%c4_i32] : memref<5x!tpu.dma_semaphore, #tpu.memory_space<semaphore_mem>> -> memref<1x!tpu.dma_semaphore, #tpu.memory_space<semaphore_mem>>
    %21 = tpu.memref_squeeze %20 : memref<1x!tpu.dma_semaphore, #tpu.memory_space<semaphore_mem>> -> memref<!tpu.dma_semaphore, #tpu.memory_space<semaphore_mem>>
    tpu.enqueue_dma source(%17 : memref<480x480xbf16, #tpu.memory_space<any>>) target(%19 : memref<480x480xbf16, #tpu.memory_space<vmem>>) target_semaphore(%21 : memref<!tpu.dma_semaphore, #tpu.memory_space<semaphore_mem>>)
    %c0 = arith.constant 0 : index
    %c0_18 = arith.constant 0 : index
    %22 = vector.load %arg0[%c0, %c0_18] : memref<3x480xbf16, #tpu.memory_space<vmem>>, vector<3x480xbf16>
    %c0_19 = arith.constant 0 : index
    %c0_20 = arith.constant 0 : index
    %23 = vector.load %arg1[%c0_19, %c0_20] : memref<480x480xbf16, #tpu.memory_space<vmem>>, vector<480x480xbf16>
    %cst = arith.constant dense<0.000000e+00> : vector<3x480xf32>
    %24 = tpu.matmul %22, %23, %cst {dimension_numbers = #tpu.dot_dimension_numbers<[1], [0], [0], [1], [0, 0, 1, 1], [], []>} : vector<3x480xbf16>, vector<480x480xbf16>, vector<3x480xf32> -> vector<3x480xf32>
    %c0_21 = arith.constant 0 : index
    %c0_22 = arith.constant 0 : index
    %25 = vector.load %arg2[%c0_21, %c0_22] : memref<1x480xf32, #tpu.memory_space<vmem>>, vector<1x480xf32>
    %26 = vector.broadcast %25 : vector<1x480xf32> to vector<3x480xf32>
    %27 = arith.addf %24, %26 : vector<3x480xf32>
    %c0_i32_23 = arith.constant 0 : i32
    %28 = tpu.memref_slice %arg13[%c0_i32_23] : memref<5x!tpu.dma_semaphore, #tpu.memory_space<semaphore_mem>> -> memref<1x!tpu.dma_semaphore, #tpu.memory_space<semaphore_mem>>
    %29 = tpu.memref_squeeze %28 : memref<1x!tpu.dma_semaphore, #tpu.memory_space<semaphore_mem>> -> memref<!tpu.dma_semaphore, #tpu.memory_space<semaphore_mem>>
    tpu.wait_dma2 semaphore(%29 : memref<!tpu.dma_semaphore, #tpu.memory_space<semaphore_mem>>) src(%arg3 : memref<480x480xbf16, #tpu.memory_space<any>>) dst(%arg10 : memref<480x480xbf16, #tpu.memory_space<vmem>>)
    %30 = arith.truncf %27 : vector<3x480xf32> to vector<3x480xbf16>
    %c0_24 = arith.constant 0 : index
    %c0_25 = arith.constant 0 : index
    %31 = vector.load %arg10[%c0_24, %c0_25] : memref<480x480xbf16, #tpu.memory_space<vmem>>, vector<480x480xbf16>
    %cst_26 = arith.constant dense<0.000000e+00> : vector<3x480xf32>
    %32 = tpu.matmul %30, %31, %cst_26 {dimension_numbers = #tpu.dot_dimension_numbers<[1], [0], [0], [1], [0, 0, 1, 1], [], []>} : vector<3x480xbf16>, vector<480x480xbf16>, vector<3x480xf32> -> vector<3x480xf32>
    %c0_27 = arith.constant 0 : index
    %c0_28 = arith.constant 0 : index
    %33 = vector.load %arg4[%c0_27, %c0_28] : memref<1x480xf32, #tpu.memory_space<vmem>>, vector<1x480xf32>
    %34 = vector.broadcast %33 : vector<1x480xf32> to vector<3x480xf32>
    %35 = arith.addf %32, %34 : vector<3x480xf32>
    %c1_i32_29 = arith.constant 1 : i32
    %36 = tpu.memref_slice %arg13[%c1_i32_29] : memref<5x!tpu.dma_semaphore, #tpu.memory_space<semaphore_mem>> -> memref<1x!tpu.dma_semaphore, #tpu.memory_space<semaphore_mem>>
    %37 = tpu.memref_squeeze %36 : memref<1x!tpu.dma_semaphore, #tpu.memory_space<semaphore_mem>> -> memref<!tpu.dma_semaphore, #tpu.memory_space<semaphore_mem>>
    tpu.wait_dma2 semaphore(%37 : memref<!tpu.dma_semaphore, #tpu.memory_space<semaphore_mem>>) src(%arg5 : memref<480x480xbf16, #tpu.memory_space<any>>) dst(%arg11 : memref<480x480xbf16, #tpu.memory_space<vmem>>)
    %38 = arith.truncf %35 : vector<3x480xf32> to vector<3x480xbf16>
    %c0_30 = arith.constant 0 : index
    %c0_31 = arith.constant 0 : index
    %39 = vector.load %arg11[%c0_30, %c0_31] : memref<480x480xbf16, #tpu.memory_space<vmem>>, vector<480x480xbf16>
    %cst_32 = arith.constant dense<0.000000e+00> : vector<3x480xf32>
    %40 = tpu.matmul %38, %39, %cst_32 {dimension_numbers = #tpu.dot_dimension_numbers<[1], [0], [0], [1], [0, 0, 1, 1], [], []>} : vector<3x480xbf16>, vector<480x480xbf16>, vector<3x480xf32> -> vector<3x480xf32>
    %c0_33 = arith.constant 0 : index
    %c0_34 = arith.constant 0 : index
    %41 = vector.load %arg6[%c0_33, %c0_34] : memref<1x480xf32, #tpu.memory_space<vmem>>, vector<1x480xf32>
    %42 = vector.broadcast %41 : vector<1x480xf32> to vector<3x480xf32>
    %43 = arith.addf %40, %42 : vector<3x480xf32>
    %44 = arith.truncf %43 : vector<3x480xf32> to vector<3x480xbf16>
    %c0_i32_35 = arith.constant 0 : i32
    %c0_i32_36 = arith.constant 0 : i32
    %c2_i32_37 = arith.constant 2 : i32
    %c0_i32_38 = arith.constant 0 : i32
    %c0_i32_39 = arith.constant 0 : i32
    %45 = tpu.memref_slice %arg7[%c0_i32_35, %c0_i32_38, %c0_i32_39] : memref<3x480x480xbf16, #tpu.memory_space<any>> -> memref<1x480x480xbf16, #tpu.memory_space<any>>
    %46 = tpu.memref_squeeze %45 : memref<1x480x480xbf16, #tpu.memory_space<any>> -> memref<480x480xbf16, #tpu.memory_space<any>>
    %c0_i32_40 = arith.constant 0 : i32
    %c0_i32_41 = arith.constant 0 : i32
    %47 = tpu.memref_slice %arg12[%c0_i32_36, %c0_i32_40, %c0_i32_41] : memref<3x480x480xbf16, #tpu.memory_space<vmem>> -> memref<1x480x480xbf16, #tpu.memory_space<vmem>>
    %48 = tpu.memref_squeeze %47 : memref<1x480x480xbf16, #tpu.memory_space<vmem>> -> memref<480x480xbf16, #tpu.memory_space<vmem>>
    %49 = tpu.memref_slice %arg13[%c2_i32_37] : memref<5x!tpu.dma_semaphore, #tpu.memory_space<semaphore_mem>> -> memref<1x!tpu.dma_semaphore, #tpu.memory_space<semaphore_mem>>
    %50 = tpu.memref_squeeze %49 : memref<1x!tpu.dma_semaphore, #tpu.memory_space<semaphore_mem>> -> memref<!tpu.dma_semaphore, #tpu.memory_space<semaphore_mem>>
    tpu.wait_dma2 semaphore(%50 : memref<!tpu.dma_semaphore, #tpu.memory_space<semaphore_mem>>) src(%46 : memref<480x480xbf16, #tpu.memory_space<any>>) dst(%48 : memref<480x480xbf16, #tpu.memory_space<vmem>>)
    %51 = vector.extract_strided_slice %44 {offsets = [0, 0], sizes = [1, 480], strides = [1, 1]} : vector<3x480xbf16> to vector<1x480xbf16>
    %c0_42 = arith.constant 0 : index
    %c0_43 = arith.constant 0 : index
    %c0_44 = arith.constant 0 : index
    %52 = vector.load %arg12[%c0_42, %c0_43, %c0_44] : memref<3x480x480xbf16, #tpu.memory_space<vmem>>, vector<1x480x480xbf16>
    %53 = vector.shape_cast %52 : vector<1x480x480xbf16> to vector<480x480xbf16>
    %cst_45 = arith.constant dense<0.000000e+00> : vector<1x480xf32>
    %54 = tpu.matmul %51, %53, %cst_45 {dimension_numbers = #tpu.dot_dimension_numbers<[1], [0], [0], [1], [0, 0, 1, 1], [], []>} : vector<1x480xbf16>, vector<480x480xbf16>, vector<1x480xf32> -> vector<1x480xf32>
    %c1_i32_46 = arith.constant 1 : i32
    %c1_i32_47 = arith.constant 1 : i32
    %c3_i32_48 = arith.constant 3 : i32
    %c0_i32_49 = arith.constant 0 : i32
    %c0_i32_50 = arith.constant 0 : i32
    %55 = tpu.memref_slice %arg7[%c1_i32_46, %c0_i32_49, %c0_i32_50] : memref<3x480x480xbf16, #tpu.memory_space<any>> -> memref<1x480x480xbf16, #tpu.memory_space<any>>
    %56 = tpu.memref_squeeze %55 : memref<1x480x480xbf16, #tpu.memory_space<any>> -> memref<480x480xbf16, #tpu.memory_space<any>>
    %c0_i32_51 = arith.constant 0 : i32
    %c0_i32_52 = arith.constant 0 : i32
    %57 = tpu.memref_slice %arg12[%c1_i32_47, %c0_i32_51, %c0_i32_52] : memref<3x480x480xbf16, #tpu.memory_space<vmem>> -> memref<1x480x480xbf16, #tpu.memory_space<vmem>>
    %58 = tpu.memref_squeeze %57 : memref<1x480x480xbf16, #tpu.memory_space<vmem>> -> memref<480x480xbf16, #tpu.memory_space<vmem>>
    %59 = tpu.memref_slice %arg13[%c3_i32_48] : memref<5x!tpu.dma_semaphore, #tpu.memory_space<semaphore_mem>> -> memref<1x!tpu.dma_semaphore, #tpu.memory_space<semaphore_mem>>
    %60 = tpu.memref_squeeze %59 : memref<1x!tpu.dma_semaphore, #tpu.memory_space<semaphore_mem>> -> memref<!tpu.dma_semaphore, #tpu.memory_space<semaphore_mem>>
    tpu.wait_dma2 semaphore(%60 : memref<!tpu.dma_semaphore, #tpu.memory_space<semaphore_mem>>) src(%56 : memref<480x480xbf16, #tpu.memory_space<any>>) dst(%58 : memref<480x480xbf16, #tpu.memory_space<vmem>>)
    %61 = vector.extract_strided_slice %44 {offsets = [1, 0], sizes = [1, 480], strides = [1, 1]} : vector<3x480xbf16> to vector<1x480xbf16>
    %c1 = arith.constant 1 : index
    %c0_53 = arith.constant 0 : index
    %c0_54 = arith.constant 0 : index
    %62 = vector.load %arg12[%c1, %c0_53, %c0_54] : memref<3x480x480xbf16, #tpu.memory_space<vmem>>, vector<1x480x480xbf16>
    %63 = vector.shape_cast %62 : vector<1x480x480xbf16> to vector<480x480xbf16>
    %cst_55 = arith.constant dense<0.000000e+00> : vector<1x480xf32>
    %64 = tpu.matmul %61, %63, %cst_55 {dimension_numbers = #tpu.dot_dimension_numbers<[1], [0], [0], [1], [0, 0, 1, 1], [], []>} : vector<1x480xbf16>, vector<480x480xbf16>, vector<1x480xf32> -> vector<1x480xf32>
    %c2_i32_56 = arith.constant 2 : i32
    %c2_i32_57 = arith.constant 2 : i32
    %c4_i32_58 = arith.constant 4 : i32
    %c0_i32_59 = arith.constant 0 : i32
    %c0_i32_60 = arith.constant 0 : i32
    %65 = tpu.memref_slice %arg7[%c2_i32_56, %c0_i32_59, %c0_i32_60] : memref<3x480x480xbf16, #tpu.memory_space<any>> -> memref<1x480x480xbf16, #tpu.memory_space<any>>
    %66 = tpu.memref_squeeze %65 : memref<1x480x480xbf16, #tpu.memory_space<any>> -> memref<480x480xbf16, #tpu.memory_space<any>>
    %c0_i32_61 = arith.constant 0 : i32
    %c0_i32_62 = arith.constant 0 : i32
    %67 = tpu.memref_slice %arg12[%c2_i32_57, %c0_i32_61, %c0_i32_62] : memref<3x480x480xbf16, #tpu.memory_space<vmem>> -> memref<1x480x480xbf16, #tpu.memory_space<vmem>>
    %68 = tpu.memref_squeeze %67 : memref<1x480x480xbf16, #tpu.memory_space<vmem>> -> memref<480x480xbf16, #tpu.memory_space<vmem>>
    %69 = tpu.memref_slice %arg13[%c4_i32_58] : memref<5x!tpu.dma_semaphore, #tpu.memory_space<semaphore_mem>> -> memref<1x!tpu.dma_semaphore, #tpu.memory_space<semaphore_mem>>
    %70 = tpu.memref_squeeze %69 : memref<1x!tpu.dma_semaphore, #tpu.memory_space<semaphore_mem>> -> memref<!tpu.dma_semaphore, #tpu.memory_space<semaphore_mem>>
    tpu.wait_dma2 semaphore(%70 : memref<!tpu.dma_semaphore, #tpu.memory_space<semaphore_mem>>) src(%66 : memref<480x480xbf16, #tpu.memory_space<any>>) dst(%68 : memref<480x480xbf16, #tpu.memory_space<vmem>>)
    %71 = vector.extract_strided_slice %44 {offsets = [2, 0], sizes = [1, 480], strides = [1, 1]} : vector<3x480xbf16> to vector<1x480xbf16>
    %c2 = arith.constant 2 : index
    %c0_63 = arith.constant 0 : index
    %c0_64 = arith.constant 0 : index
    %72 = vector.load %arg12[%c2, %c0_63, %c0_64] : memref<3x480x480xbf16, #tpu.memory_space<vmem>>, vector<1x480x480xbf16>
    %73 = vector.shape_cast %72 : vector<1x480x480xbf16> to vector<480x480xbf16>
    %cst_65 = arith.constant dense<0.000000e+00> : vector<1x480xf32>
    %74 = tpu.matmul %71, %73, %cst_65 {dimension_numbers = #tpu.dot_dimension_numbers<[1], [0], [0], [1], [0, 0, 1, 1], [], []>} : vector<1x480xbf16>, vector<480x480xbf16>, vector<1x480xf32> -> vector<1x480xf32>
    %c0_66 = arith.constant 0 : index
    %c0_67 = arith.constant 0 : index
    %75 = vector.load %arg8[%c0_66, %c0_67] : memref<1x480xf32, #tpu.memory_space<vmem>>, vector<1x480xf32>
    %76 = arith.addf %75, %54 : vector<1x480xf32>
    %77 = arith.addf %76, %64 : vector<1x480xf32>
    %78 = arith.addf %77, %74 : vector<1x480xf32>
    %cst_68 = arith.constant dense<0xFF800000> : vector<1xf32>
    %79 = vector.multi_reduction <maximumf>, %78, %cst_68 [1] : vector<1x480xf32> to vector<1xf32>
    %80 = vector.shape_cast %79 : vector<1xf32> to vector<1x1xf32>
    %81 = vector.broadcast %80 : vector<1x1xf32> to vector<1x480xf32>
    %82 = arith.subf %78, %81 : vector<1x480xf32>
    %83 = math.exp %82 : vector<1x480xf32>
    %cst_69 = arith.constant dense<0.000000e+00> : vector<1xf32>
    %84 = vector.multi_reduction <add>, %83, %cst_69 [1] : vector<1x480xf32> to vector<1xf32>
    %85 = vector.shape_cast %84 : vector<1xf32> to vector<1x1xf32>
    %86 = vector.broadcast %85 : vector<1x1xf32> to vector<1x480xf32>
    %87 = arith.divf %83, %86 : vector<1x480xf32>
    %c0_70 = arith.constant 0 : index
    %c0_71 = arith.constant 0 : index
    %88 = vector.load %arg9[%c0_70, %c0_71] : memref<1x480xf32, #tpu.memory_space<vmem>>, vector<1x480xf32>
    tpu.vector_store %arg9[%c0_70, %c0_71], %87 {strides = array<i32>} : memref<1x480xf32, #tpu.memory_space<vmem>>, vector<1x480xf32>,
    return
  }
}

</mosaic_0001>

<llo_original>
// kernel: sap_alt_forward.1
$region0: #{sap_alt_forward.1}
  #allocation0 [shape = 'u32[]', space=smem, size = 0x4, offset = 0x4, fixed_abs, tag = 'smem constant byte address 0x4 - core index']
  #allocation1 [shape = 'u32[144,128]{1,0:T(1,128)}', space=vmem, size = 0x12000, scoped, tag = 'internal scratch']
  #allocation2 [shape = 'bf16[480,480]{1,0:T(8,128)(2,1)}', space=vmem, size = 0x78000, scoped, tag = 'scratch operand']
  #allocation3 [shape = 'bf16[480,480]{1,0:T(8,128)(2,1)}', space=vmem, size = 0x78000, scoped, tag = 'scratch operand']
  #allocation4 [shape = 'bf16[3,480,480]{2,1,0:T(8,128)(2,1)}', space=vmem, size = 0x168000, scoped, tag = 'scratch operand']
  #allocation5 [shape = 's32[5]{0}', space=sflag, size = 0x14, scoped, tag = 'scratch operand']
  #allocation16 [shape = 's32[]', space=sflag, size = 0x4, offset = 0, fixed_abs, tag = 'sflag constant byte address 0x0 - dummy sync flag']
  #allocation17 [shape = 's32[]', space=sflag, size = 0x4, offset = 0, fixed_abs, tag = 'sflag constant byte address 0x0 - dummy sync flag']
  #allocation18 [shape = 'u32[]', space=smem, size = 0x4, offset = 0x44, fixed_abs, tag = 'smem constant byte address 0x44 - assertion arg 0']
  #allocation19 [shape = 'u32[]', space=smem, size = 0x4, offset = 0x48, fixed_abs, tag = 'smem constant byte address 0x48 - assertion arg 1']
  #allocation20 [shape = 's32[]', space=sflag, size = 0x4, offset = 0, fixed_abs, tag = 'sflag constant byte address 0x0 - dummy sync flag']
  #allocation21 [shape = 's32[]', space=sflag, size = 0x4, offset = 0, fixed_abs, tag = 'sflag constant byte address 0x0 - dummy sync flag']
  #allocation22 [shape = 's32[]', space=sflag, size = 0x4, offset = 0, fixed_abs, tag = 'sflag constant byte address 0x0 - dummy sync flag']
  #allocation23 [shape = 's32[]', space=sflag, size = 0x4, offset = 0, fixed_abs, tag = 'sflag constant byte address 0x0 - dummy sync flag']
  #allocation24 [shape = 's32[]', space=sflag, size = 0x4, offset = 0, fixed_abs, tag = 'sflag constant byte address 0x0 - dummy sync flag']
  #allocation25 [shape = 's32[]', space=sflag, size = 0x4, offset = 0, fixed_abs, tag = 'sflag constant byte address 0x0 - dummy sync flag']
  #allocation26 [shape = 's32[]', space=sflag, size = 0x4, offset = 0, fixed_abs, tag = 'sflag constant byte address 0x0 - dummy sync flag']
  #allocation27 [shape = 's32[]', space=sflag, size = 0x4, offset = 0, fixed_abs, tag = 'sflag constant byte address 0x0 - dummy sync flag']
  %s0 = inlined_call_operand.vmem [shape: bf16[3,480], index: 0, kind: input, shape index: {}]
  %s1 = inlined_call_operand.hbm [shape: bf16[480,480], index: 1, kind: input, shape index: {}]
  %s2 = inlined_call_operand.hbm [shape: f32[1,480], index: 2, kind: input, shape index: {}]
  %s3 = inlined_call_operand.hbm [shape: bf16[480,480], index: 3, kind: input, shape index: {}]
  %s4 = inlined_call_operand.hbm [shape: f32[1,480], index: 4, kind: input, shape index: {}]
  %s5 = inlined_call_operand.hbm [shape: bf16[480,480], index: 5, kind: input, shape index: {}]
  %s6 = inlined_call_operand.hbm [shape: f32[1,480], index: 6, kind: input, shape index: {}]
  %s7 = inlined_call_operand.hbm [shape: bf16[3,480,480], index: 7, kind: input, shape index: {}]
  %s8 = inlined_call_operand.hbm [shape: f32[1,480], index: 8, kind: input, shape index: {}]
  %s9 = inlined_call_operand.hbm [shape: f32[1,480], index: 9, kind: output, shape index: {}]
  %s10 = sld [smem:[#allocation0]]
  $region74: #{sap_alt_forward.1} parent=0
    _
  %s12 = ssub.s32 1, %s10
  %s13 = scalar_select 0, %s12, %s10
  $region1: #{sap_alt_forward.1} parent=0
    #allocation6 [shape = 'u8[491520]{0}', space=vmem, size = 0x78000, scoped, tag = 'input window, operand 1, single buffered']
    #allocation7 [shape = 's32[1]{0}', space=sflag, size = 0x4, scoped, tag = 'scoped memory for sap_alt_forward.1']
    #allocation8 [shape = 's32[1]{0}', space=sflag, size = 0x4, scoped, tag = 'scoped memory for sap_alt_forward.1']
    #allocation9 [shape = 'u8[2048]{0}', space=vmem, size = 0x800, scoped, tag = 'input window, operand 2, single buffered']
    #allocation10 [shape = 's32[1]{0}', space=sflag, size = 0x4, scoped, tag = 'scoped memory for sap_alt_forward.1']
    #allocation11 [shape = 'u8[2048]{0}', space=vmem, size = 0x800, scoped, tag = 'input window, operand 4, single buffered']
    #allocation12 [shape = 'u8[2048]{0}', space=vmem, size = 0x800, scoped, tag = 'input window, operand 6, single buffered']
    #allocation13 [shape = 's32[1]{0}', space=sflag, size = 0x4, scoped, tag = 'scoped memory for sap_alt_forward.1']
    #allocation14 [shape = 'u8[2048]{0}', space=vmem, size = 0x800, scoped, tag = 'input window, operand 8, single buffered']
    #allocation15 [shape = 'u8[2048]{0}', space=vmem, size = 0x800, scoped, tag = 'output window, operand 0, single buffered']
    %14 = vsyncpa [#allocation7], 0
    %15 = vsyncpa [#allocation10], 0
    %16 = vsyncpa [#allocation13], 0
    %17 = vsyncpa [#allocation8], 0
    // Predicated region
    $region2: #{sap_alt_forward.1} parent=1 // pred_check
      _
    $region3: #{sap_alt_forward.1} parent=1 // pred_check_branch
      %19 = sbr.rel (0) target = $region5
    $region4: #{sap_alt_forward.1} parent=1 // pred_region
      _
    $region5: #{sap_alt_forward.1} parent=1 // pred_fallthru
      _
    // Predicated region
    $region6: #{sap_alt_forward.1} parent=1 // pred_check
      _
    $region7: #{sap_alt_forward.1} parent=1 // pred_check_branch
      %21 = sbr.rel (0) target = $region9
    $region8: #{sap_alt_forward.1} parent=1 // pred_region
      %s23 = ssub.s32 15360, 15360
      %24 = vsyncadd [#allocation7], %s23
      %s25 = sshll.u32 [#allocation6], 4
      %s26 = int_to_ptr.vmem [resolvable:$true] %s25
      %31 = dma.hbm_to_vmem [thread:$0]  %s1, 15360, %s26, [#allocation7], 256, 256, 16
    $region9: #{sap_alt_forward.1} parent=1 // pred_fallthru
      _
    // Predicated region
    $region10: #{sap_alt_forward.1} parent=1 // pred_check
      _
    $region11: #{sap_alt_forward.1} parent=1 // pred_check_branch
      %33 = sbr.rel (0) target = $region13
    $region12: #{sap_alt_forward.1} parent=1 // pred_region
      %s35 = ssub.s32 64, 64
      %36 = vsyncadd [#allocation10], %s35
      %s38 = sshll.u32 [#allocation9], 4
      %s39 = int_to_ptr.vmem [resolvable:$true] %s38
      %41 = dma.hbm_to_vmem [thread:$0]  %s2, 64, %s39, [#allocation10]
    $region13: #{sap_alt_forward.1} parent=1 // pred_fallthru
      _
    // Predicated region
    $region14: #{sap_alt_forward.1} parent=1 // pred_check
      _
    $region15: #{sap_alt_forward.1} parent=1 // pred_check_branch
      %43 = sbr.rel (0) target = $region17
    $region16: #{sap_alt_forward.1} parent=1 // pred_region
      %s45 = ssub.s32 64, 64
      %46 = vsyncadd [#allocation10], %s45
      %s48 = sshll.u32 [#allocation11], 4
      %s49 = int_to_ptr.vmem [resolvable:$true] %s48
      %51 = dma.hbm_to_vmem [thread:$0]  %s4, 64, %s49, [#allocation10]
    $region17: #{sap_alt_forward.1} parent=1 // pred_fallthru
      _
    // Predicated region
    $region18: #{sap_alt_forward.1} parent=1 // pred_check
      _
    $region19: #{sap_alt_forward.1} parent=1 // pred_check_branch
      %53 = sbr.rel (0) target = $region21
    $region20: #{sap_alt_forward.1} parent=1 // pred_region
      %s55 = ssub.s32 64, 64
      %56 = vsyncadd [#allocation13], %s55
      %s58 = sshll.u32 [#allocation12], 4
      %s59 = int_to_ptr.vmem [resolvable:$true] %s58
      %61 = dma.hbm_to_vmem [thread:$0]  %s6, 64, %s59, [#allocation13]
    $region21: #{sap_alt_forward.1} parent=1 // pred_fallthru
      _
    // Predicated region
    $region22: #{sap_alt_forward.1} parent=1 // pred_check
      _
    $region23: #{sap_alt_forward.1} parent=1 // pred_check_branch
      %63 = sbr.rel (0) target = $region25
    $region24: #{sap_alt_forward.1} parent=1 // pred_region
      %s65 = ssub.s32 64, 64
      %66 = vsyncadd [#allocation13], %s65
      %s68 = sshll.u32 [#allocation14], 4
      %s69 = int_to_ptr.vmem [resolvable:$true] %s68
      %71 = dma.hbm_to_vmem [thread:$0]  %s8, 64, %s69, [#allocation13]
    $region25: #{sap_alt_forward.1} parent=1 // pred_fallthru
      _
    // Predicated region
    $region26: #{sap_alt_forward.1} parent=1 // pred_check
      _
    $region27: #{sap_alt_forward.1} parent=1 // pred_check_branch
      %73 = sbr.rel (0) target = $region29
    $region28: #{sap_alt_forward.1} parent=1 // pred_region
      %74 = dma.done [#allocation7], 15360
    $region29: #{sap_alt_forward.1} parent=1 // pred_fallthru
      _
    // Predicated region
    $region30: #{sap_alt_forward.1} parent=1 // pred_check
      _
    $region31: #{sap_alt_forward.1} parent=1 // pred_check_branch
      %76 = sbr.rel (0) target = $region33
    $region32: #{sap_alt_forward.1} parent=1 // pred_region
      %77 = dma.done [#allocation10], 64
    $region33: #{sap_alt_forward.1} parent=1 // pred_fallthru
      _
    // Predicated region
    $region34: #{sap_alt_forward.1} parent=1 // pred_check
      _
    $region35: #{sap_alt_forward.1} parent=1 // pred_check_branch
      %79 = sbr.rel (0) target = $region37
    $region36: #{sap_alt_forward.1} parent=1 // pred_region
      %80 = dma.done [#allocation10], 64
    $region37: #{sap_alt_forward.1} parent=1 // pred_fallthru
      _
    // Predicated region
    $region38: #{sap_alt_forward.1} parent=1 // pred_check
      _
    $region39: #{sap_alt_forward.1} parent=1 // pred_check_branch
      %82 = sbr.rel (0) target = $region41
    $region40: #{sap_alt_forward.1} parent=1 // pred_region
      %83 = dma.done [#allocation13], 64
    $region41: #{sap_alt_forward.1} parent=1 // pred_fallthru
      _
    // Predicated region
    $region42: #{sap_alt_forward.1} parent=1 // pred_check
      _
    $region43: #{sap_alt_forward.1} parent=1 // pred_check_branch
      %85 = sbr.rel (0) target = $region45
    $region44: #{sap_alt_forward.1} parent=1 // pred_region
      %86 = dma.done [#allocation13], 64
    $region45: #{sap_alt_forward.1} parent=1 // pred_fallthru
      _
    // Predicated region
    $region46: #{sap_alt_forward.1} parent=1 // pred_check
      _
    $region47: #{sap_alt_forward.1} parent=1 // pred_check_branch
      %89 = sbr.rel target = $region49
    $region48: #{sap_alt_forward.1} parent=1 // pred_region
      %90 = sst [smem:[#allocation18]] [#allocation17]
      %91 = sst [smem:[#allocation19]] [#allocation16]
    $region49: #{sap_alt_forward.1} parent=1 // pred_fallthru
      _
    %93 = shalt.err (0)
    %s95 = sshll.u32 [#allocation2], 4
    %s96 = int_to_ptr.vmem [resolvable:$true] %s95
    %98 = dma.hbm_to_vmem [thread:$0]  %s3, 15360, %s96, [#allocation5]
    %s99 = scalar_lea.sflag [#allocation5], 1
    // Predicated region
    $region50: #{sap_alt_forward.1} parent=1 // pred_check
      _
    $region51: #{sap_alt_forward.1} parent=1 // pred_check_branch
      %101 = sbr.rel target = $region53
    $region52: #{sap_alt_forward.1} parent=1 // pred_region
      %102 = sst [smem:[#allocation18]] [#allocation21]
      %103 = sst [smem:[#allocation19]] [#allocation20]
    $region53: #{sap_alt_forward.1} parent=1 // pred_fallthru
      _
    %105 = shalt.err (0)
    %s107 = sshll.u32 [#allocation3], 4
    %s108 = int_to_ptr.vmem [resolvable:$true] %s107
    %110 = dma.hbm_to_vmem [thread:$0]  %s5, 15360, %s108, %s99
    %s111 = scalar_lea.sflag [#allocation5], 2
    // Predicated region
    $region54: #{sap_alt_forward.1} parent=1 // pred_check
      _
    $region55: #{sap_alt_forward.1} parent=1 // pred_check_branch
      %113 = sbr.rel target = $region57
    $region56: #{sap_alt_forward.1} parent=1 // pred_region
      %114 = sst [smem:[#allocation18]] [#allocation23]
      %115 = sst [smem:[#allocation19]] [#allocation22]
    $region57: #{sap_alt_forward.1} parent=1 // pred_fallthru
      _
    %117 = shalt.err (0)
    %s119 = sshll.u32 [#allocation4], 4
    %s120 = int_to_ptr.vmem [resolvable:$true] %s119
    %122 = dma.hbm_to_vmem [thread:$0]  %s7, 15360, %s120, %s111
    %s123 = scalar_lea.hbm %s7, 15360
    %s124 = scalar_lea.vmem [#allocation4], 960
    %s125 = scalar_lea.sflag [#allocation5], 3
    // Predicated region
    $region58: #{sap_alt_forward.1} parent=1 // pred_check
      _
    $region59: #{sap_alt_forward.1} parent=1 // pred_check_branch
      %127 = sbr.rel target = $region61
    $region60: #{sap_alt_forward.1} parent=1 // pred_region
      %128 = sst [smem:[#allocation18]] [#allocation25]
      %129 = sst [smem:[#allocation19]] [#allocation24]
    $region61: #{sap_alt_forward.1} parent=1 // pred_fallthru
      _
    %131 = shalt.err (0)
    %s133 = sshll.u32 %s124, 4
    %s134 = int_to_ptr.vmem [resolvable:$true] %s133
    %136 = dma.hbm_to_vmem [thread:$0]  %s123, 15360, %s134, %s125
    %s137 = scalar_lea.hbm %s7, 30720
    %s138 = scalar_lea.vmem [#allocation4], 1920
    %s139 = scalar_lea.sflag [#allocation5], 4
    // Predicated region
    $region62: #{sap_alt_forward.1} parent=1 // pred_check
      _
    $region63: #{sap_alt_forward.1} parent=1 // pred_check_branch
      %141 = sbr.rel target = $region65
    $region64: #{sap_alt_forward.1} parent=1 // pred_region
      %142 = sst [smem:[#allocation18]] [#allocation27]
      %143 = sst [smem:[#allocation19]] [#allocation26]
    $region65: #{sap_alt_forward.1} parent=1 // pred_fallthru
      _
    %145 = shalt.err (0)
    %s147 = sshll.u32 %s138, 4
    %s148 = int_to_ptr.vmem [resolvable:$true] %s147
    %150 = dma.hbm_to_vmem [thread:$0]  %s137, 15360, %s148, %s139
    %v151 = vld [vmem:[%s0] sm:$0xff]
    %v152 = vld [vmem:[#allocation6] sm:$0xff]
    %v153 = vld [vmem:[#allocation6 + $0x8] sm:$0xff]
    %v154 = vld [vmem:[#allocation6 + $0x10] sm:$0xff]
    %v155 = vld [vmem:[#allocation6 + $0x18] sm:$0xff]
    %v156 = vld [vmem:[#allocation6 + $0x20] sm:$0xff]
    %v157 = vld [vmem:[#allocation6 + $0x28] sm:$0xff]
    %v158 = vld [vmem:[#allocation6 + $0x30] sm:$0xff]
    %v159 = vld [vmem:[#allocation6 + $0x38] sm:$0xff]
    %v160 = vld [vmem:[#allocation6 + $0x40] sm:$0xff]
    %v161 = vld [vmem:[#allocation6 + $0x48] sm:$0xff]
    %v162 = vld [vmem:[#allocation6 + $0x50] sm:$0xff]
    %v163 = vld [vmem:[#allocation6 + $0x58] sm:$0xff]
    %v164 = vld [vmem:[#allocation6 + $0x60] sm:$0xff]
    %v165 = vld [vmem:[#allocation6 + $0x68] sm:$0xff]
    %v166 = vld [vmem:[#allocation6 + $0x70] sm:$0xff]
    %v167 = vld [vmem:[#allocation6 + $0x78] sm:$0xff]
    %v168 = vld [vmem:[#allocation6 + $0x80] sm:$0xff]
    %v169 = vld [vmem:[#allocation6 + $0x88] sm:$0xff]
    %v170 = vld [vmem:[#allocation6 + $0x90] sm:$0xff]
    %v171 = vld [vmem:[#allocation6 + $0x98] sm:$0xff]
    %v172 = vld [vmem:[#allocation6 + $0xa0] sm:$0xff]
    %v173 = vld [vmem:[#allocation6 + $0xa8] sm:$0xff]
    %v174 = vld [vmem:[#allocation6 + $0xb0] sm:$0xff]
    %v175 = vld [vmem:[#allocation6 + $0xb8] sm:$0xff]
    %v176 = vld [vmem:[#allocation6 + $0xc0] sm:$0xff]
    %v177 = vld [vmem:[#allocation6 + $0xc8] sm:$0xff]
    %v178 = vld [vmem:[#allocation6 + $0xd0] sm:$0xff]
    %v179 = vld [vmem:[#allocation6 + $0xd8] sm:$0xff]
    %v180 = vld [vmem:[#allocation6 + $0xe0] sm:$0xff]
    %v181 = vld [vmem:[#allocation6 + $0xe8] sm:$0xff]
    %v182 = vld [vmem:[#allocation6 + $0xf0] sm:$0xff]
    %v183 = vld [vmem:[#allocation6 + $0xf8] sm:$0xff]
    %v184 = vld [vmem:[#allocation6 + $0x100] sm:$0xff]
    %v185 = vld [vmem:[#allocation6 + $0x108] sm:$0xff]
    %v186 = vld [vmem:[#allocation6 + $0x110] sm:$0xff]
    %v187 = vld [vmem:[#allocation6 + $0x118] sm:$0xff]
    %v188 = vld [vmem:[#allocation6 + $0x120] sm:$0xff]
    %v189 = vld [vmem:[#allocation6 + $0x128] sm:$0xff]
    %v190 = vld [vmem:[#allocation6 + $0x130] sm:$0xff]
    %v191 = vld [vmem:[#allocation6 + $0x138] sm:$0xff]
    %v192 = vld [vmem:[#allocation6 + $0x140] sm:$0xff]
    %v193 = vld [vmem:[#allocation6 + $0x148] sm:$0xff]
    %v194 = vld [vmem:[#allocation6 + $0x150] sm:$0xff]
    %v195 = vld [vmem:[#allocation6 + $0x158] sm:$0xff]
    %v196 = vld [vmem:[#allocation6 + $0x160] sm:$0xff]
    %v197 = vld [vmem:[#allocation6 + $0x168] sm:$0xff]
    %v198 = vld [vmem:[#allocation6 + $0x170] sm:$0xff]
    %v199 = vld [vmem:[#allocation6 + $0x178] sm:$0xff]
    %v200 = vld [vmem:[#allocation6 + $0x180] sm:$0xff]
    %v201 = vld [vmem:[#allocation6 + $0x188] sm:$0xff]
    %v202 = vld [vmem:[#allocation6 + $0x190] sm:$0xff]
    %v203 = vld [vmem:[#allocation6 + $0x198] sm:$0xff]
    %v204 = vld [vmem:[#allocation6 + $0x1a0] sm:$0xff]
    %v205 = vld [vmem:[#allocation6 + $0x1a8] sm:$0xff]
    %v206 = vld [vmem:[#allocation6 + $0x1b0] sm:$0xff]
    %v207 = vld [vmem:[#allocation6 + $0x1b8] sm:$0xff]
    %v208 = vld [vmem:[#allocation6 + $0x1c0] sm:$0xff]
    %v209 = vld [vmem:[#allocation6 + $0x1c8] sm:$0xff]
    %v210 = vld [vmem:[#allocation6 + $0x1d0] sm:$0xff]
    %v211 = vld [vmem:[#allocation6 + $0x1d8] sm:$0xff]
    %v212 = vld [vmem:[#allocation6 + $0x1e0] sm:$0xff]
    %v213 = vld [vmem:[#allocation6 + $0x1e8] sm:$0xff]
    %v214 = vld [vmem:[#allocation6 + $0x1f0] sm:$0xff]
    %v215 = vld [vmem:[#allocation6 + $0x1f8] sm:$0xff]
    %v216 = vld [vmem:[#allocation6 + $0x200] sm:$0xff]
    %v217 = vld [vmem:[#allocation6 + $0x208] sm:$0xff]
    %v218 = vld [vmem:[#allocation6 + $0x210] sm:$0xff]
    %v219 = vld [vmem:[#allocation6 + $0x218] sm:$0xff]
    %v220 = vld [vmem:[#allocation6 + $0x220] sm:$0xff]
    %v221 = vld [vmem:[#allocation6 + $0x228] sm:$0xff]
    %v222 = vld [vmem:[#allocation6 + $0x230] sm:$0xff]
    %v223 = vld [vmem:[#allocation6 + $0x238] sm:$0xff]
    %v224 = vld [vmem:[#allocation6 + $0x240] sm:$0xff]
    %v225 = vld [vmem:[#allocation6 + $0x248] sm:$0xff]
    %v226 = vld [vmem:[#allocation6 + $0x250] sm:$0xff]
    %v227 = vld [vmem:[#allocation6 + $0x258] sm:$0xff]
    %v228 = vld [vmem:[#allocation6 + $0x260] sm:$0xff]
    %v229 = vld [vmem:[#allocation6 + $0x268] sm:$0xff]
    %v230 = vld [vmem:[#allocation6 + $0x270] sm:$0xff]
    %v231 = vld [vmem:[#allocation6 + $0x278] sm:$0xff]
    %v232 = vld [vmem:[#allocation6 + $0x280] sm:$0xff]
    %v233 = vld [vmem:[#allocation6 + $0x288] sm:$0xff]
    %v234 = vld [vmem:[#allocation6 + $0x290] sm:$0xff]
    %v235 = vld [vmem:[#allocation6 + $0x298] sm:$0xff]
    %v236 = vld [vmem:[#allocation6 + $0x2a0] sm:$0xff]
    %v237 = vld [vmem:[#allocation6 + $0x2a8] sm:$0xff]
    %v238 = vld [vmem:[#allocation6 + $0x2b0] sm:$0xff]
    %v239 = vld [vmem:[#allocation6 + $0x2b8] sm:$0xff]
    %v240 = vld [vmem:[#allocation6 + $0x2c0] sm:$0xff]
    %v241 = vld [vmem:[#allocation6 + $0x2c8] sm:$0xff]
    %v242 = vld [vmem:[#allocation6 + $0x2d0] sm:$0xff]
    %v243 = vld [vmem:[#allocation6 + $0x2d8] sm:$0xff]
    %v244 = vld [vmem:[#allocation6 + $0x2e0] sm:$0xff]
    %v245 = vld [vmem:[#allocation6 + $0x2e8] sm:$0xff]
    %v246 = vld [vmem:[#allocation6 + $0x2f0] sm:$0xff]
    %v247 = vld [vmem:[#allocation6 + $0x2f8] sm:$0xff]
    %v248 = vld [vmem:[#allocation6 + $0x300] sm:$0xff]
    %v249 = vld [vmem:[#allocation6 + $0x308] sm:$0xff]
    %v250 = vld [vmem:[#allocation6 + $0x310] sm:$0xff]
    %v251 = vld [vmem:[#allocation6 + $0x318] sm:$0xff]
    %v252 = vld [vmem:[#allocation6 + $0x320] sm:$0xff]
    %v253 = vld [vmem:[#allocation6 + $0x328] sm:$0xff]
    %v254 = vld [vmem:[#allocation6 + $0x330] sm:$0xff]
    %v255 = vld [vmem:[#allocation6 + $0x338] sm:$0xff]
    %v256 = vld [vmem:[#allocation6 + $0x340] sm:$0xff]
    %v257 = vld [vmem:[#allocation6 + $0x348] sm:$0xff]
    %v258 = vld [vmem:[#allocation6 + $0x350] sm:$0xff]
    %v259 = vld [vmem:[#allocation6 + $0x358] sm:$0xff]
    %v260 = vld [vmem:[#allocation6 + $0x360] sm:$0xff]
    %v261 = vld [vmem:[#allocation6 + $0x368] sm:$0xff]
    %v262 = vld [vmem:[#allocation6 + $0x370] sm:$0xff]
    %v263 = vld [vmem:[#allocation6 + $0x378] sm:$0xff]
    %v264 = vld [vmem:[#allocation6 + $0x380] sm:$0xff]
    %v265 = vld [vmem:[#allocation6 + $0x388] sm:$0xff]
    %v266 = vld [vmem:[#allocation6 + $0x390] sm:$0xff]
    %v267 = vld [vmem:[#allocation6 + $0x398] sm:$0xff]
    %v268 = vld [vmem:[#allocation6 + $0x3a0] sm:$0xff]
    %v269 = vld [vmem:[#allocation6 + $0x3a8] sm:$0xff]
    %v270 = vld [vmem:[#allocation6 + $0x3b0] sm:$0xff]
    %v271 = vld [vmem:[#allocation6 + $0x3b8] sm:$0xff]
    %v272 = vld [vmem:[#allocation9] sm:$0xf]
    %v274 = vlaneseq
    %v275 = vshrl.u32 %v274, 7
    %v276 = vsub.s32 0, %v275
    %v277 = vrot.slane %v272, %v276
    %v278 = vlaneseq
    %v279 = vshrl.u32 %v278, 7
    %v280 = vsub.s32 1, %v279
    %v281 = vrot.slane %v272, %v280
    %v282 = vlaneseq
    %v283 = vshrl.u32 %v282, 7
    %v284 = vsub.s32 2, %v283
    %v285 = vrot.slane %v272, %v284
    %v286 = vlaneseq
    %v287 = vshrl.u32 %v286, 7
    %v288 = vsub.s32 3, %v287
    %v289 = vrot.slane %v272, %v288
    %v295 = vcombine.high %v151, %v151
    %v297 = vunpack.c.l.s4 1983009808
    %v298 = vunpack.c.0.s8 %v297
    %v299 = vlaneseq
    %v300 = vshrl.u32 %v299, 7
    %v301 = vsub.s32 %v298, %v300
    %v302 = vrot.slane %v151, %v301
    %v304 = vunpack.c.l.s4 1983009808
    %v305 = vunpack.c.0.s8 %v304
    %v306 = vlaneseq
    %v307 = vshrl.u32 %v306, 7
    %v308 = vsub.s32 %v305, %v307
    %v309 = vrot.slane %v295, %v308
    %v310 = vcombine.high %v302, %v302
    %v311 = vcombine.high %v309, %v309
    %v435 = vunpack.c.l.b16 %v152
    %v436 = vunpack.c.h.b16 %v152
    %v437 = vunpack.c.l.b16 %v153
    %v438 = vunpack.c.h.b16 %v153
    %v439 = vunpack.c.l.b16 %v154
    %v440 = vunpack.c.h.b16 %v154
    %v441 = vunpack.c.l.b16 %v155
    %v442 = vunpack.c.h.b16 %v155
    %v443 = vunpack.c.l.b16 %v156
    %v444 = vunpack.c.h.b16 %v156
    %v445 = vunpack.c.l.b16 %v157
    %v446 = vunpack.c.h.b16 %v157
    %v447 = vunpack.c.l.b16 %v158
    %v448 = vunpack.c.h.b16 %v158
    %v449 = vunpack.c.l.b16 %v159
    %v450 = vunpack.c.h.b16 %v159
    %v451 = vunpack.c.l.b16 %v160
    %v452 = vunpack.c.h.b16 %v160
    %v453 = vunpack.c.l.b16 %v161
    %v454 = vunpack.c.h.b16 %v161
    %v455 = vunpack.c.l.b16 %v162
    %v456 = vunpack.c.h.b16 %v162
    %v457 = vunpack.c.l.b16 %v163
    %v458 = vunpack.c.h.b16 %v163
    %v459 = vunpack.c.l.b16 %v164
    %v460 = vunpack.c.h.b16 %v164
    %v461 = vunpack.c.l.b16 %v165
    %v462 = vunpack.c.h.b16 %v165
    %v463 = vunpack.c.l.b16 %v166
    %v464 = vunpack.c.h.b16 %v166
    %v465 = vunpack.c.l.b16 %v167
    %v466 = vunpack.c.h.b16 %v167
    %v467 = vunpack.c.l.b16 %v168
    %v468 = vunpack.c.h.b16 %v168
    %v469 = vunpack.c.l.b16 %v169
    %v470 = vunpack.c.h.b16 %v169
    %v471 = vunpack.c.l.b16 %v170
    %v472 = vunpack.c.h.b16 %v170
    %v473 = vunpack.c.l.b16 %v171
    %v474 = vunpack.c.h.b16 %v171
    %v475 = vunpack.c.l.b16 %v172
    %v476 = vunpack.c.h.b16 %v172
    %v477 = vunpack.c.l.b16 %v173
    %v478 = vunpack.c.h.b16 %v173
    %v479 = vunpack.c.l.b16 %v174
    %v480 = vunpack.c.h.b16 %v174
    %v481 = vunpack.c.l.b16 %v175
    %v482 = vunpack.c.h.b16 %v175
    %v483 = vunpack.c.l.b16 %v176
    %v484 = vunpack.c.h.b16 %v176
    %v485 = vunpack.c.l.b16 %v177
    %v486 = vunpack.c.h.b16 %v177
    %v487 = vunpack.c.l.b16 %v178
    %v488 = vunpack.c.h.b16 %v178
    %v489 = vunpack.c.l.b16 %v179
    %v490 = vunpack.c.h.b16 %v179
    %v491 = vunpack.c.l.b16 %v180
    %v492 = vunpack.c.h.b16 %v180
    %v493 = vunpack.c.l.b16 %v181
    %v494 = vunpack.c.h.b16 %v181
    %v495 = vunpack.c.l.b16 %v182
    %v496 = vunpack.c.h.b16 %v182
    %v497 = vunpack.c.l.b16 %v183
    %v498 = vunpack.c.h.b16 %v183
    %v499 = vunpack.c.l.b16 %v184
    %v500 = vunpack.c.h.b16 %v184
    %v501 = vunpack.c.l.b16 %v185
    %v502 = vunpack.c.h.b16 %v185
    %v503 = vunpack.c.l.b16 %v186
    %v504 = vunpack.c.h.b16 %v186
    %v505 = vunpack.c.l.b16 %v187
    %v506 = vunpack.c.h.b16 %v187
    %v507 = vunpack.c.l.b16 %v188
    %v508 = vunpack.c.h.b16 %v188
    %v509 = vunpack.c.l.b16 %v189
    %v510 = vunpack.c.h.b16 %v189
    %v511 = vunpack.c.l.b16 %v190
    %v512 = vunpack.c.h.b16 %v190
    %v513 = vunpack.c.l.b16 %v191
    %v514 = vunpack.c.h.b16 %v191
    %v515 = vunpack.c.l.b16 %v192
    %v516 = vunpack.c.h.b16 %v192
    %v517 = vunpack.c.l.b16 %v193
    %v518 = vunpack.c.h.b16 %v193
    %v519 = vunpack.c.l.b16 %v194
    %v520 = vunpack.c.h.b16 %v194
    %v521 = vunpack.c.l.b16 %v195
    %v522 = vunpack.c.h.b16 %v195
    %v523 = vunpack.c.l.b16 %v196
    %v524 = vunpack.c.h.b16 %v196
    %v525 = vunpack.c.l.b16 %v197
    %v526 = vunpack.c.h.b16 %v197
    %v527 = vunpack.c.l.b16 %v198
    %v528 = vunpack.c.h.b16 %v198
    %v529 = vunpack.c.l.b16 %v199
    %v530 = vunpack.c.h.b16 %v199
    %v531 = vunpack.c.l.b16 %v200
    %v532 = vunpack.c.h.b16 %v200
    %v533 = vunpack.c.l.b16 %v201
    %v534 = vunpack.c.h.b16 %v201
    %v535 = vunpack.c.l.b16 %v202
    %v536 = vunpack.c.h.b16 %v202
    %v537 = vunpack.c.l.b16 %v203
    %v538 = vunpack.c.h.b16 %v203
    %v539 = vunpack.c.l.b16 %v204
    %v540 = vunpack.c.h.b16 %v204
    %v541 = vunpack.c.l.b16 %v205
    %v542 = vunpack.c.h.b16 %v205
    %v543 = vunpack.c.l.b16 %v206
    %v544 = vunpack.c.h.b16 %v206
    %v545 = vunpack.c.l.b16 %v207
    %v546 = vunpack.c.h.b16 %v207
    %v547 = vunpack.c.l.b16 %v208
    %v548 = vunpack.c.h.b16 %v208
    %v549 = vunpack.c.l.b16 %v209
    %v550 = vunpack.c.h.b16 %v209
    %v551 = vunpack.c.l.b16 %v210
    %v552 = vunpack.c.h.b16 %v210
    %v553 = vunpack.c.l.b16 %v211
    %v554 = vunpack.c.h.b16 %v211
    %v555 = vunpack.c.l.b16 %v212
    %v556 = vunpack.c.h.b16 %v212
    %v557 = vunpack.c.l.b16 %v213
    %v558 = vunpack.c.h.b16 %v213
    %v559 = vunpack.c.l.b16 %v214
    %v560 = vunpack.c.h.b16 %v214
    %v561 = vunpack.c.l.b16 %v215
    %v562 = vunpack.c.h.b16 %v215
    %v563 = vunpack.c.l.b16 %v216
    %v564 = vunpack.c.h.b16 %v216
    %v565 = vunpack.c.l.b16 %v217
    %v566 = vunpack.c.h.b16 %v217
    %v567 = vunpack.c.l.b16 %v218
    %v568 = vunpack.c.h.b16 %v218
    %v569 = vunpack.c.l.b16 %v219
    %v570 = vunpack.c.h.b16 %v219
    %v571 = vunpack.c.l.b16 %v220
    %v572 = vunpack.c.h.b16 %v220
    %v573 = vunpack.c.l.b16 %v221
    %v574 = vunpack.c.h.b16 %v221
    %v575 = vunpack.c.l.b16 %v222
    %v576 = vunpack.c.h.b16 %v222
    %v577 = vunpack.c.l.b16 %v223
    %v578 = vunpack.c.h.b16 %v223
    %v579 = vunpack.c.l.b16 %v224
    %v580 = vunpack.c.h.b16 %v224
    %v581 = vunpack.c.l.b16 %v225
    %v582 = vunpack.c.h.b16 %v225
    %v583 = vunpack.c.l.b16 %v226
    %v584 = vunpack.c.h.b16 %v226
    %v585 = vunpack.c.l.b16 %v227
    %v586 = vunpack.c.h.b16 %v227
    %v587 = vunpack.c.l.b16 %v228
    %v588 = vunpack.c.h.b16 %v228
    %v589 = vunpack.c.l.b16 %v229
    %v590 = vunpack.c.h.b16 %v229
    %v591 = vunpack.c.l.b16 %v230
    %v592 = vunpack.c.h.b16 %v230
    %v593 = vunpack.c.l.b16 %v231
    %v594 = vunpack.c.h.b16 %v231
    %v595 = vunpack.c.l.b16 %v232
    %v596 = vunpack.c.h.b16 %v232
    %v597 = vunpack.c.l.b16 %v233
    %v598 = vunpack.c.h.b16 %v233
    %v599 = vunpack.c.l.b16 %v234
    %v600 = vunpack.c.h.b16 %v234
    %v601 = vunpack.c.l.b16 %v235
    %v602 = vunpack.c.h.b16 %v235
    %v603 = vunpack.c.l.b16 %v236
    %v604 = vunpack.c.h.b16 %v236
    %v605 = vunpack.c.l.b16 %v237
    %v606 = vunpack.c.h.b16 %v237
    %v607 = vunpack.c.l.b16 %v238
    %v608 = vunpack.c.h.b16 %v238
    %v609 = vunpack.c.l.b16 %v239
    %v610 = vunpack.c.h.b16 %v239
    %v611 = vunpack.c.l.b16 %v240
    %v612 = vunpack.c.h.b16 %v240
    %v613 = vunpack.c.l.b16 %v241
    %v614 = vunpack.c.h.b16 %v241
    %v615 = vunpack.c.l.b16 %v242
    %v616 = vunpack.c.h.b16 %v242
    %v617 = vunpack.c.l.b16 %v243
    %v618 = vunpack.c.h.b16 %v243
    %v619 = vunpack.c.l.b16 %v244
    %v620 = vunpack.c.h.b16 %v244
    %v621 = vunpack.c.l.b16 %v245
    %v622 = vunpack.c.h.b16 %v245
    %v623 = vunpack.c.l.b16 %v246
    %v624 = vunpack.c.h.b16 %v246
    %v625 = vunpack.c.l.b16 %v247
    %v626 = vunpack.c.h.b16 %v247
    %v627 = vunpack.c.l.b16 %v248
    %v628 = vunpack.c.h.b16 %v248
    %v629 = vunpack.c.l.b16 %v249
    %v630 = vunpack.c.h.b16 %v249
    %v631 = vunpack.c.l.b16 %v250
    %v632 = vunpack.c.h.b16 %v250
    %v633 = vunpack.c.l.b16 %v251
    %v634 = vunpack.c.h.b16 %v251
    %v635 = vunpack.c.l.b16 %v252
    %v636 = vunpack.c.h.b16 %v252
    %v637 = vunpack.c.l.b16 %v253
    %v638 = vunpack.c.h.b16 %v253
    %v639 = vunpack.c.l.b16 %v254
    %v640 = vunpack.c.h.b16 %v254
    %v641 = vunpack.c.l.b16 %v255
    %v642 = vunpack.c.h.b16 %v255
    %v643 = vunpack.c.l.b16 %v256
    %v644 = vunpack.c.h.b16 %v256
    %v645 = vunpack.c.l.b16 %v257
    %v646 = vunpack.c.h.b16 %v257
    %v647 = vunpack.c.l.b16 %v258
    %v648 = vunpack.c.h.b16 %v258
    %v649 = vunpack.c.l.b16 %v259
    %v650 = vunpack.c.h.b16 %v259
    %v651 = vunpack.c.l.b16 %v260
    %v652 = vunpack.c.h.b16 %v260
    %v653 = vunpack.c.l.b16 %v261
    %v654 = vunpack.c.h.b16 %v261
    %v655 = vunpack.c.l.b16 %v262
    %v656 = vunpack.c.h.b16 %v262
    %v657 = vunpack.c.l.b16 %v263
    %v658 = vunpack.c.h.b16 %v263
    %v659 = vunpack.c.l.b16 %v264
    %v660 = vunpack.c.h.b16 %v264
    %v661 = vunpack.c.l.b16 %v265
    %v662 = vunpack.c.h.b16 %v265
    %v663 = vunpack.c.l.b16 %v266
    %v664 = vunpack.c.h.b16 %v266
    %v665 = vunpack.c.l.b16 %v267
    %v666 = vunpack.c.h.b16 %v267
    %v667 = vunpack.c.l.b16 %v268
    %v668 = vunpack.c.h.b16 %v268
    %v669 = vunpack.c.l.b16 %v269
    %v670 = vunpack.c.h.b16 %v269
    %v671 = vunpack.c.l.b16 %v270
    %v672 = vunpack.c.h.b16 %v270
    %v673 = vunpack.c.l.b16 %v271
    %v674 = vunpack.c.h.b16 %v271
    %v675 = vpack.c.b16 %v439, %v435
    %v676 = vpack.c.b16 %v440, %v436
    %v677 = vpack.c.b16 %v441, %v437
    %v678 = vpack.c.b16 %v442, %v438
    %v679 = vpack.c.b16 %v447, %v443
    %v680 = vpack.c.b16 %v448, %v444
    %v681 = vpack.c.b16 %v449, %v445
    %v682 = vpack.c.b16 %v450, %v446
    %v683 = vpack.c.b16 %v455, %v451
    %v684 = vpack.c.b16 %v456, %v452
    %v685 = vpack.c.b16 %v457, %v453
    %v686 = vpack.c.b16 %v458, %v454
    %v687 = vpack.c.b16 %v463, %v459
    %v688 = vpack.c.b16 %v464, %v460
    %v689 = vpack.c.b16 %v465, %v461
    %v690 = vpack.c.b16 %v466, %v462
    %v691 = vpack.c.b16 %v471, %v467
    %v692 = vpack.c.b16 %v472, %v468
    %v693 = vpack.c.b16 %v473, %v469
    %v694 = vpack.c.b16 %v474, %v470
    %v695 = vpack.c.b16 %v479, %v475
    %v696 = vpack.c.b16 %v480, %v476
    %v697 = vpack.c.b16 %v481, %v477
    %v698 = vpack.c.b16 %v482, %v478
    %v699 = vpack.c.b16 %v487, %v483
    %v700 = vpack.c.b16 %v488, %v484
    %v701 = vpack.c.b16 %v489, %v485
    %v702 = vpack.c.b16 %v490, %v486
    %v703 = vpack.c.b16 %v495, %v491
    %v704 = vpack.c.b16 %v496, %v492
    %v705 = vpack.c.b16 %v497, %v493
    %v706 = vpack.c.b16 %v498, %v494
    %v707 = vpack.c.b16 %v503, %v499
    %v708 = vpack.c.b16 %v504, %v500
    %v709 = vpack.c.b16 %v505, %v501
    %v710 = vpack.c.b16 %v506, %v502
    %v711 = vpack.c.b16 %v511, %v507
    %v712 = vpack.c.b16 %v512, %v508
    %v713 = vpack.c.b16 %v513, %v509
    %v714 = vpack.c.b16 %v514, %v510
    %v715 = vpack.c.b16 %v519, %v515
    %v716 = vpack.c.b16 %v520, %v516
    %v717 = vpack.c.b16 %v521, %v517
    %v718 = vpack.c.b16 %v522, %v518
    %v719 = vpack.c.b16 %v527, %v523
    %v720 = vpack.c.b16 %v528, %v524
    %v721 = vpack.c.b16 %v529, %v525
    %v722 = vpack.c.b16 %v530, %v526
    %v723 = vpack.c.b16 %v535, %v531
    %v724 = vpack.c.b16 %v536, %v532
    %v725 = vpack.c.b16 %v537, %v533
    %v726 = vpack.c.b16 %v538, %v534
    %v727 = vpack.c.b16 %v543, %v539
    %v728 = vpack.c.b16 %v544, %v540
    %v729 = vpack.c.b16 %v545, %v541
    %v730 = vpack.c.b16 %v546, %v542
    %v731 = vpack.c.b16 %v551, %v547
    %v732 = vpack.c.b16 %v552, %v548
    %v733 = vpack.c.b16 %v553, %v549
    %v734 = vpack.c.b16 %v554, %v550
    %v735 = vpack.c.b16 %v559, %v555
    %v736 = vpack.c.b16 %v560, %v556
    %v737 = vpack.c.b16 %v561, %v557
    %v738 = vpack.c.b16 %v562, %v558
    %v739 = vpack.c.b16 %v567, %v563
    %v740 = vpack.c.b16 %v568, %v564
    %v741 = vpack.c.b16 %v569, %v565
    %v742 = vpack.c.b16 %v570, %v566
    %v743 = vpack.c.b16 %v575, %v571
    %v744 = vpack.c.b16 %v576, %v572
    %v745 = vpack.c.b16 %v577, %v573
    %v746 = vpack.c.b16 %v578, %v574
    %v747 = vpack.c.b16 %v583, %v579
    %v748 = vpack.c.b16 %v584, %v580
    %v749 = vpack.c.b16 %v585, %v581
    %v750 = vpack.c.b16 %v586, %v582
    %v751 = vpack.c.b16 %v591, %v587
    %v752 = vpack.c.b16 %v592, %v588
    %v753 = vpack.c.b16 %v593, %v589
    %v754 = vpack.c.b16 %v594, %v590
    %v755 = vpack.c.b16 %v599, %v595
    %v756 = vpack.c.b16 %v600, %v596
    %v757 = vpack.c.b16 %v601, %v597
    %v758 = vpack.c.b16 %v602, %v598
    %v759 = vpack.c.b16 %v607, %v603
    %v760 = vpack.c.b16 %v608, %v604
    %v761 = vpack.c.b16 %v609, %v605
    %v762 = vpack.c.b16 %v610, %v606
    %v763 = vpack.c.b16 %v615, %v611
    %v764 = vpack.c.b16 %v616, %v612
    %v765 = vpack.c.b16 %v617, %v613
    %v766 = vpack.c.b16 %v618, %v614
    %v767 = vpack.c.b16 %v623, %v619
    %v768 = vpack.c.b16 %v624, %v620
    %v769 = vpack.c.b16 %v625, %v621
    %v770 = vpack.c.b16 %v626, %v622
    %v771 = vpack.c.b16 %v631, %v627
    %v772 = vpack.c.b16 %v632, %v628
    %v773 = vpack.c.b16 %v633, %v629
    %v774 = vpack.c.b16 %v634, %v630
    %v775 = vpack.c.b16 %v639, %v635
    %v776 = vpack.c.b16 %v640, %v636
    %v777 = vpack.c.b16 %v641, %v637
    %v778 = vpack.c.b16 %v642, %v638
    %v779 = vpack.c.b16 %v647, %v643
    %v780 = vpack.c.b16 %v648, %v644
    %v781 = vpack.c.b16 %v649, %v645
    %v782 = vpack.c.b16 %v650, %v646
    %v783 = vpack.c.b16 %v655, %v651
    %v784 = vpack.c.b16 %v656, %v652
    %v785 = vpack.c.b16 %v657, %v653
    %v786 = vpack.c.b16 %v658, %v654
    %v787 = vpack.c.b16 %v663, %v659
    %v788 = vpack.c.b16 %v664, %v660
    %v789 = vpack.c.b16 %v665, %v661
    %v790 = vpack.c.b16 %v666, %v662
    %v791 = vpack.c.b16 %v671, %v667
    %v792 = vpack.c.b16 %v672, %v668
    %v793 = vpack.c.b16 %v673, %v669
    %v794 = vpack.c.b16 %v674, %v670
    %vm915 = vcmask 785408
    %v917 = vsel %vm915, %v311, 0
    %919 = vmatprep.subr.bf16.mxu0 %v704
    %920 = vmatpush1.bf16.msra.mxu0 %v703
    %921 = vmatprep.subr.bf16.mxu0 %v700
    %922 = vmatpush1.bf16.msra.mxu0 %v699
    %923 = vmatprep.subr.bf16.mxu0 %v696
    %924 = vmatpush1.bf16.msra.mxu0 %v695
    %925 = vmatprep.subr.bf16.mxu0 %v692
    %926 = vmatpush1.bf16.msra.mxu0 %v691
    %927 = vmatprep.subr.bf16.mxu0 %v688
    %928 = vmatpush1.bf16.msra.mxu0 %v687
    %929 = vmatprep.subr.bf16.mxu0 %v684
    %930 = vmatpush1.bf16.msra.mxu0 %v683
    %931 = vmatprep.subr.bf16.mxu0 %v680
    %932 = vmatpush1.bf16.msra.mxu0 %v679
    %933 = vmatprep.subr.bf16.mxu0 %v676
    %934 = vmatpush1.bf16.msra.mxu0 %v675
    %935 = vmatprep.subr.bf16.mxu0 %v736
    %936 = vmatpush2.bf16.msra.mxu0 %v735
    %937 = vmatprep.subr.bf16.mxu0 %v732
    %938 = vmatpush2.bf16.msra.mxu0 %v731
    %939 = vmatprep.subr.bf16.mxu0 %v728
    %940 = vmatpush2.bf16.msra.mxu0 %v727
    %941 = vmatprep.subr.bf16.mxu0 %v724
    %942 = vmatpush2.bf16.msra.mxu0 %v723
    %943 = vmatprep.subr.bf16.mxu0 %v720
    %944 = vmatpush2.bf16.msra.mxu0 %v719
    %945 = vmatprep.subr.bf16.mxu0 %v716
    %946 = vmatpush2.bf16.msra.mxu0 %v715
    %947 = vmatprep.subr.bf16.mxu0 %v712
    %948 = vmatpush2.bf16.msra.mxu0 %v711
    %949 = vmatprep.subr.bf16.mxu0 %v708
    %950 = vmatpush2.bf16.msra.mxu0 %v707
    %951 = vmatprep.mubr.bf16.mxu0 %v310
    %952 = vmatmul.mubr.bf16.gmra.mxu0 %v302
    %v953 = vpop.f32.mrf.mxu0
    %v954 = vadd.f32 %v277, %v953
    %v955 = vpop.f32.mrf.mxu0
    %v956 = vadd.f32 %v281, %v955
    %v957 = vpop.f32.mrf.mxu0
    %v958 = vpop.f32.mrf.mxu0
    %959 = vdwg.mxu0
    %960 = vmatprep.subr.bf16.mxu0 %v768
    %961 = vmatpush1.bf16.msra.mxu0 %v767
    %962 = vmatprep.subr.bf16.mxu0 %v764
    %963 = vmatpush1.bf16.msra.mxu0 %v763
    %964 = vmatprep.subr.bf16.mxu0 %v760
    %965 = vmatpush1.bf16.msra.mxu0 %v759
    %966 = vmatprep.subr.bf16.mxu0 %v756
    %967 = vmatpush1.bf16.msra.mxu0 %v755
    %968 = vmatprep.subr.bf16.mxu0 %v752
    %969 = vmatpush1.bf16.msra.mxu0 %v751
    %970 = vmatprep.subr.bf16.mxu0 %v748
    %971 = vmatpush1.bf16.msra.mxu0 %v747
    %972 = vmatprep.subr.bf16.mxu0 %v744
    %973 = vmatpush1.bf16.msra.mxu0 %v743
    %974 = vmatprep.subr.bf16.mxu0 %v740
    %975 = vmatpush1.bf16.msra.mxu0 %v739
    %976 = vmatprep.subr.bf16.mxu0 0
    %977 = vmatpush2.bf16.msra.mxu0 0
    %978 = vmatprep.subr.bf16.mxu0 0
    %979 = vmatpush2.bf16.msra.mxu0 0
    %980 = vmatprep.subr.bf16.mxu0 %v792
    %981 = vmatpush2.bf16.msra.mxu0 %v791
    %982 = vmatprep.subr.bf16.mxu0 %v788
    %983 = vmatpush2.bf16.msra.mxu0 %v787
    %984 = vmatprep.subr.bf16.mxu0 %v784
    %985 = vmatpush2.bf16.msra.mxu0 %v783
    %986 = vmatprep.subr.bf16.mxu0 %v780
    %987 = vmatpush2.bf16.msra.mxu0 %v779
    %988 = vmatprep.subr.bf16.mxu0 %v776
    %989 = vmatpush2.bf16.msra.mxu0 %v775
    %990 = vmatprep.subr.bf16.mxu0 %v772
    %991 = vmatpush2.bf16.msra.mxu0 %v771
    %992 = vmatprep.mubr.bf16.mxu0 %v917
    %993 = vmatmul.mubr.bf16.gmra.mxu0 %v309
    %v994 = vpop.f32.mrf.mxu0
    %v995 = vadd.f32 %v954, %v994
    %v996 = vpop.f32.mrf.mxu0
    %v997 = vadd.f32 %v956, %v996
    %v998 = vpop.f32.mrf.mxu0
    %v999 = vpop.f32.mrf.mxu0
    %1000 = vdwg.mxu0
    %1001 = vmatprep.subr.bf16.mxu0 %v706
    %1002 = vmatpush1.bf16.msra.mxu0 %v705
    %1003 = vmatprep.subr.bf16.mxu0 %v702
    %1004 = vmatpush1.bf16.msra.mxu0 %v701
    %1005 = vmatprep.subr.bf16.mxu0 %v698
    %1006 = vmatpush1.bf16.msra.mxu0 %v697
    %1007 = vmatprep.subr.bf16.mxu0 %v694
    %1008 = vmatpush1.bf16.msra.mxu0 %v693
    %1009 = vmatprep.subr.bf16.mxu0 %v690
    %1010 = vmatpush1.bf16.msra.mxu0 %v689
    %1011 = vmatprep.subr.bf16.mxu0 %v686
    %1012 = vmatpush1.bf16.msra.mxu0 %v685
    %1013 = vmatprep.subr.bf16.mxu0 %v682
    %1014 = vmatpush1.bf16.msra.mxu0 %v681
    %1015 = vmatprep.subr.bf16.mxu0 %v678
    %1016 = vmatpush1.bf16.msra.mxu0 %v677
    %1017 = vmatprep.subr.bf16.mxu0 %v738
    %1018 = vmatpush2.bf16.msra.mxu0 %v737
    %1019 = vmatprep.subr.bf16.mxu0 %v734
    %1020 = vmatpush2.bf16.msra.mxu0 %v733
    %1021 = vmatprep.subr.bf16.mxu0 %v730
    %1022 = vmatpush2.bf16.msra.mxu0 %v729
    %1023 = vmatprep.subr.bf16.mxu0 %v726
    %1024 = vmatpush2.bf16.msra.mxu0 %v725
    %1025 = vmatprep.subr.bf16.mxu0 %v722
    %1026 = vmatpush2.bf16.msra.mxu0 %v721
    %1027 = vmatprep.subr.bf16.mxu0 %v718
    %1028 = vmatpush2.bf16.msra.mxu0 %v717
    %1029 = vmatprep.subr.bf16.mxu0 %v714
    %1030 = vmatpush2.bf16.msra.mxu0 %v713
    %1031 = vmatprep.subr.bf16.mxu0 %v710
    %1032 = vmatpush2.bf16.msra.mxu0 %v709
    %1033 = vmatprep.mubr.bf16.mxu0 %v310
    %1034 = vmatmul.mubr.bf16.gmra.mxu0 %v302
    %v1035 = vpop.f32.mrf.mxu0
    %v1036 = vadd.f32 %v285, %v1035
    %v1037 = vpop.f32.mrf.mxu0
    %v1038 = vadd.f32 %v289, %v1037
    %v1039 = vpop.f32.mrf.mxu0
    %v1040 = vpop.f32.mrf.mxu0
    %1041 = vdwg.mxu0
    %1042 = vmatprep.subr.bf16.mxu0 %v770
    %1043 = vmatpush1.bf16.msra.mxu0 %v769
    %1044 = vmatprep.subr.bf16.mxu0 %v766
    %1045 = vmatpush1.bf16.msra.mxu0 %v765
    %1046 = vmatprep.subr.bf16.mxu0 %v762
    %1047 = vmatpush1.bf16.msra.mxu0 %v761
    %1048 = vmatprep.subr.bf16.mxu0 %v758
    %1049 = vmatpush1.bf16.msra.mxu0 %v757
    %1050 = vmatprep.subr.bf16.mxu0 %v754
    %1051 = vmatpush1.bf16.msra.mxu0 %v753
    %1052 = vmatprep.subr.bf16.mxu0 %v750
    %1053 = vmatpush1.bf16.msra.mxu0 %v749
    %1054 = vmatprep.subr.bf16.mxu0 %v746
    %1055 = vmatpush1.bf16.msra.mxu0 %v745
    %1056 = vmatprep.subr.bf16.mxu0 %v742
    %1057 = vmatpush1.bf16.msra.mxu0 %v741
    %1058 = vmatprep.subr.bf16.mxu0 0
    %1059 = vmatpush2.bf16.msra.mxu0 0
    %1060 = vmatprep.subr.bf16.mxu0 0
    %1061 = vmatpush2.bf16.msra.mxu0 0
    %1062 = vmatprep.subr.bf16.mxu0 %v794
    %1063 = vmatpush2.bf16.msra.mxu0 %v793
    %1064 = vmatprep.subr.bf16.mxu0 %v790
    %1065 = vmatpush2.bf16.msra.mxu0 %v789
    %1066 = vmatprep.subr.bf16.mxu0 %v786
    %1067 = vmatpush2.bf16.msra.mxu0 %v785
    %1068 = vmatprep.subr.bf16.mxu0 %v782
    %1069 = vmatpush2.bf16.msra.mxu0 %v781
    %1070 = vmatprep.subr.bf16.mxu0 %v778
    %1071 = vmatpush2.bf16.msra.mxu0 %v777
    %1072 = vmatprep.subr.bf16.mxu0 %v774
    %1073 = vmatpush2.bf16.msra.mxu0 %v773
    %1074 = vmatprep.mubr.bf16.mxu0 %v917
    %1075 = vmatmul.mubr.bf16.gmra.mxu0 %v309
    %v1076 = vpop.f32.mrf.mxu0
    %v1077 = vadd.f32 %v1036, %v1076
    %v1078 = vpop.f32.mrf.mxu0
    %v1079 = vadd.f32 %v1038, %v1078
    %v1080 = vpop.f32.mrf.mxu0
    %v1081 = vpop.f32.mrf.mxu0
    %1082 = vdwg.mxu0
    %s1083 = smul.u32 4, 60
    %s1084 = smul.u32 %s1083, 4
    %s1085 = sshll.u32 %s1084, 4
    %1086 = dma.done [#allocation5], %s1085
    %v1087 = vpack.c.bf16 %v995, %v995
    %v1088 = vpack.c.bf16 %v997, %v997
    %v1089 = vpack.c.bf16 %v1077, %v1077
    %v1090 = vpack.c.bf16 %v1079, %v1079
    %v1091 = vld [vmem:[#allocation2] sm:$0xff]
    %v1092 = vld [vmem:[#allocation2 + $0x8] sm:$0xff]
    %v1093 = vld [vmem:[#allocation2 + $0x10] sm:$0xff]
    %v1094 = vld [vmem:[#allocation2 + $0x18] sm:$0xff]
    %v1095 = vld [vmem:[#allocation2 + $0x20] sm:$0xff]
    %v1096 = vld [vmem:[#allocation2 + $0x28] sm:$0xff]
    %v1097 = vld [vmem:[#allocation2 + $0x30] sm:$0xff]
    %v1098 = vld [vmem:[#allocation2 + $0x38] sm:$0xff]
    %v1099 = vld [vmem:[#allocation2 + $0x40] sm:$0xff]
    %v1100 = vld [vmem:[#allocation2 + $0x48] sm:$0xff]
    %v1101 = vld [vmem:[#allocation2 + $0x50] sm:$0xff]
    %v1102 = vld [vmem:[#allocation2 + $0x58] sm:$0xff]
    %v1103 = vld [vmem:[#allocation2 + $0x60] sm:$0xff]
    %v1104 = vld [vmem:[#allocation2 + $0x68] sm:$0xff]
    %v1105 = vld [vmem:[#allocation2 + $0x70] sm:$0xff]
    %v1106 = vld [vmem:[#allocation2 + $0x78] sm:$0xff]
    %v1107 = vld [vmem:[#allocation2 + $0x80] sm:$0xff]
    %v1108 = vld [vmem:[#allocation2 + $0x88] sm:$0xff]
    %v1109 = vld [vmem:[#allocation2 + $0x90] sm:$0xff]
    %v1110 = vld [vmem:[#allocation2 + $0x98] sm:$0xff]
    %v1111 = vld [vmem:[#allocation2 + $0xa0] sm:$0xff]
    %v1112 = vld [vmem:[#allocation2 + $0xa8] sm:$0xff]
    %v1113 = vld [vmem:[#allocation2 + $0xb0] sm:$0xff]
    %v1114 = vld [vmem:[#allocation2 + $0xb8] sm:$0xff]
    %v1115 = vld [vmem:[#allocation2 + $0xc0] sm:$0xff]
    %v1116 = vld [vmem:[#allocation2 + $0xc8] sm:$0xff]
    %v1117 = vld [vmem:[#allocation2 + $0xd0] sm:$0xff]
    %v1118 = vld [vmem:[#allocation2 + $0xd8] sm:$0xff]
    %v1119 = vld [vmem:[#allocation2 + $0xe0] sm:$0xff]
    %v1120 = vld [vmem:[#allocation2 + $0xe8] sm:$0xff]
    %v1121 = vld [vmem:[#allocation2 + $0xf0] sm:$0xff]
    %v1122 = vld [vmem:[#allocation2 + $0xf8] sm:$0xff]
    %v1123 = vld [vmem:[#allocation2 + $0x100] sm:$0xff]
    %v1124 = vld [vmem:[#allocation2 + $0x108] sm:$0xff]
    %v1125 = vld [vmem:[#allocation2 + $0x110] sm:$0xff]
    %v1126 = vld [vmem:[#allocation2 + $0x118] sm:$0xff]
    %v1127 = vld [vmem:[#allocation2 + $0x120] sm:$0xff]
    %v1128 = vld [vmem:[#allocation2 + $0x128] sm:$0xff]
    %v1129 = vld [vmem:[#allocation2 + $0x130] sm:$0xff]
    %v1130 = vld [vmem:[#allocation2 + $0x138] sm:$0xff]
    %v1131 = vld [vmem:[#allocation2 + $0x140] sm:$0xff]
    %v1132 = vld [vmem:[#allocation2 + $0x148] sm:$0xff]
    %v1133 = vld [vmem:[#allocation2 + $0x150] sm:$0xff]
    %v1134 = vld [vmem:[#allocation2 + $0x158] sm:$0xff]
    %v1135 = vld [vmem:[#allocation2 + $0x160] sm:$0xff]
    %v1136 = vld [vmem:[#allocation2 + $0x168] sm:$0xff]
    %v1137 = vld [vmem:[#allocation2 + $0x170] sm:$0xff]
    %v1138 = vld [vmem:[#allocation2 + $0x178] sm:$0xff]
    %v1139 = vld [vmem:[#allocation2 + $0x180] sm:$0xff]
    %v1140 = vld [vmem:[#allocation2 + $0x188] sm:$0xff]
    %v1141 = vld [vmem:[#allocation2 + $0x190] sm:$0xff]
    %v1142 = vld [vmem:[#allocation2 + $0x198] sm:$0xff]
    %v1143 = vld [vmem:[#allocation2 + $0x1a0] sm:$0xff]
    %v1144 = vld [vmem:[#allocation2 + $0x1a8] sm:$0xff]
    %v1145 = vld [vmem:[#allocation2 + $0x1b0] sm:$0xff]
    %v1146 = vld [vmem:[#allocation2 + $0x1b8] sm:$0xff]
    %v1147 = vld [vmem:[#allocation2 + $0x1c0] sm:$0xff]
    %v1148 = vld [vmem:[#allocation2 + $0x1c8] sm:$0xff]
    %v1149 = vld [vmem:[#allocation2 + $0x1d0] sm:$0xff]
    %v1150 = vld [vmem:[#allocation2 + $0x1d8] sm:$0xff]
    %v1151 = vld [vmem:[#allocation2 + $0x1e0] sm:$0xff]
    %v1152 = vld [vmem:[#allocation2 + $0x1e8] sm:$0xff]
    %v1153 = vld [vmem:[#allocation2 + $0x1f0] sm:$0xff]
    %v1154 = vld [vmem:[#allocation2 + $0x1f8] sm:$0xff]
    %v1155 = vld [vmem:[#allocation2 + $0x200] sm:$0xff]
    %v1156 = vld [vmem:[#allocation2 + $0x208] sm:$0xff]
    %v1157 = vld [vmem:[#allocation2 + $0x210] sm:$0xff]
    %v1158 = vld [vmem:[#allocation2 + $0x218] sm:$0xff]
    %v1159 = vld [vmem:[#allocation2 + $0x220] sm:$0xff]
    %v1160 = vld [vmem:[#allocation2 + $0x228] sm:$0xff]
    %v1161 = vld [vmem:[#allocation2 + $0x230] sm:$0xff]
    %v1162 = vld [vmem:[#allocation2 + $0x238] sm:$0xff]
    %v1163 = vld [vmem:[#allocation2 + $0x240] sm:$0xff]
    %v1164 = vld [vmem:[#allocation2 + $0x248] sm:$0xff]
    %v1165 = vld [vmem:[#allocation2 + $0x250] sm:$0xff]
    %v1166 = vld [vmem:[#allocation2 + $0x258] sm:$0xff]
    %v1167 = vld [vmem:[#allocation2 + $0x260] sm:$0xff]
    %v1168 = vld [vmem:[#allocation2 + $0x268] sm:$0xff]
    %v1169 = vld [vmem:[#allocation2 + $0x270] sm:$0xff]
    %v1170 = vld [vmem:[#allocation2 + $0x278] sm:$0xff]
    %v1171 = vld [vmem:[#allocation2 + $0x280] sm:$0xff]
    %v1172 = vld [vmem:[#allocation2 + $0x288] sm:$0xff]
    %v1173 = vld [vmem:[#allocation2 + $0x290] sm:$0xff]
    %v1174 = vld [vmem:[#allocation2 + $0x298] sm:$0xff]
    %v1175 = vld [vmem:[#allocation2 + $0x2a0] sm:$0xff]
    %v1176 = vld [vmem:[#allocation2 + $0x2a8] sm:$0xff]
    %v1177 = vld [vmem:[#allocation2 + $0x2b0] sm:$0xff]
    %v1178 = vld [vmem:[#allocation2 + $0x2b8] sm:$0xff]
    %v1179 = vld [vmem:[#allocation2 + $0x2c0] sm:$0xff]
    %v1180 = vld [vmem:[#allocation2 + $0x2c8] sm:$0xff]
    %v1181 = vld [vmem:[#allocation2 + $0x2d0] sm:$0xff]
    %v1182 = vld [vmem:[#allocation2 + $0x2d8] sm:$0xff]
    %v1183 = vld [vmem:[#allocation2 + $0x2e0] sm:$0xff]
    %v1184 = vld [vmem:[#allocation2 + $0x2e8] sm:$0xff]
    %v1185 = vld [vmem:[#allocation2 + $0x2f0] sm:$0xff]
    %v1186 = vld [vmem:[#allocation2 + $0x2f8] sm:$0xff]
    %v1187 = vld [vmem:[#allocation2 + $0x300] sm:$0xff]
    %v1188 = vld [vmem:[#allocation2 + $0x308] sm:$0xff]
    %v1189 = vld [vmem:[#allocation2 + $0x310] sm:$0xff]
    %v1190 = vld [vmem:[#allocation2 + $0x318] sm:$0xff]
    %v1191 = vld [vmem:[#allocation2 + $0x320] sm:$0xff]
    %v1192 = vld [vmem:[#allocation2 + $0x328] sm:$0xff]
    %v1193 = vld [vmem:[#allocation2 + $0x330] sm:$0xff]
    %v1194 = vld [vmem:[#allocation2 + $0x338] sm:$0xff]
    %v1195 = vld [vmem:[#allocation2 + $0x340] sm:$0xff]
    %v1196 = vld [vmem:[#allocation2 + $0x348] sm:$0xff]
    %v1197 = vld [vmem:[#allocation2 + $0x350] sm:$0xff]
    %v1198 = vld [vmem:[#allocation2 + $0x358] sm:$0xff]
    %v1199 = vld [vmem:[#allocation2 + $0x360] sm:$0xff]
    %v1200 = vld [vmem:[#allocation2 + $0x368] sm:$0xff]
    %v1201 = vld [vmem:[#allocation2 + $0x370] sm:$0xff]
    %v1202 = vld [vmem:[#allocation2 + $0x378] sm:$0xff]
    %v1203 = vld [vmem:[#allocation2 + $0x380] sm:$0xff]
    %v1204 = vld [vmem:[#allocation2 + $0x388] sm:$0xff]
    %v1205 = vld [vmem:[#allocation2 + $0x390] sm:$0xff]
    %v1206 = vld [vmem:[#allocation2 + $0x398] sm:$0xff]
    %v1207 = vld [vmem:[#allocation2 + $0x3a0] sm:$0xff]
    %v1208 = vld [vmem:[#allocation2 + $0x3a8] sm:$0xff]
    %v1209 = vld [vmem:[#allocation2 + $0x3b0] sm:$0xff]
    %v1210 = vld [vmem:[#allocation2 + $0x3b8] sm:$0xff]
    %v1211 = vld [vmem:[#allocation11] sm:$0xf]
    %v1213 = vlaneseq
    %v1214 = vshrl.u32 %v1213, 7
    %v1215 = vsub.s32 0, %v1214
    %v1216 = vrot.slane %v1211, %v1215
    %v1217 = vlaneseq
    %v1218 = vshrl.u32 %v1217, 7
    %v1219 = vsub.s32 1, %v1218
    %v1220 = vrot.slane %v1211, %v1219
    %v1221 = vlaneseq
    %v1222 = vshrl.u32 %v1221, 7
    %v1223 = vsub.s32 2, %v1222
    %v1224 = vrot.slane %v1211, %v1223
    %v1225 = vlaneseq
    %v1226 = vshrl.u32 %v1225, 7
    %v1227 = vsub.s32 3, %v1226
    %v1228 = vrot.slane %v1211, %v1227
    %v1353 = vunpack.c.l.b16 %v1091
    %v1354 = vunpack.c.h.b16 %v1091
    %v1355 = vunpack.c.l.b16 %v1092
    %v1356 = vunpack.c.h.b16 %v1092
    %v1357 = vunpack.c.l.b16 %v1093
    %v1358 = vunpack.c.h.b16 %v1093
    %v1359 = vunpack.c.l.b16 %v1094
    %v1360 = vunpack.c.h.b16 %v1094
    %v1361 = vunpack.c.l.b16 %v1095
    %v1362 = vunpack.c.h.b16 %v1095
    %v1363 = vunpack.c.l.b16 %v1096
    %v1364 = vunpack.c.h.b16 %v1096
    %v1365 = vunpack.c.l.b16 %v1097
    %v1366 = vunpack.c.h.b16 %v1097
    %v1367 = vunpack.c.l.b16 %v1098
    %v1368 = vunpack.c.h.b16 %v1098
    %v1369 = vunpack.c.l.b16 %v1099
    %v1370 = vunpack.c.h.b16 %v1099
    %v1371 = vunpack.c.l.b16 %v1100
    %v1372 = vunpack.c.h.b16 %v1100
    %v1373 = vunpack.c.l.b16 %v1101
    %v1374 = vunpack.c.h.b16 %v1101
    %v1375 = vunpack.c.l.b16 %v1102
    %v1376 = vunpack.c.h.b16 %v1102
    %v1377 = vunpack.c.l.b16 %v1103
    %v1378 = vunpack.c.h.b16 %v1103
    %v1379 = vunpack.c.l.b16 %v1104
    %v1380 = vunpack.c.h.b16 %v1104
    %v1381 = vunpack.c.l.b16 %v1105
    %v1382 = vunpack.c.h.b16 %v1105
    %v1383 = vunpack.c.l.b16 %v1106
    %v1384 = vunpack.c.h.b16 %v1106
    %v1385 = vunpack.c.l.b16 %v1107
    %v1386 = vunpack.c.h.b16 %v1107
    %v1387 = vunpack.c.l.b16 %v1108
    %v1388 = vunpack.c.h.b16 %v1108
    %v1389 = vunpack.c.l.b16 %v1109
    %v1390 = vunpack.c.h.b16 %v1109
    %v1391 = vunpack.c.l.b16 %v1110
    %v1392 = vunpack.c.h.b16 %v1110
    %v1393 = vunpack.c.l.b16 %v1111
    %v1394 = vunpack.c.h.b16 %v1111
    %v1395 = vunpack.c.l.b16 %v1112
    %v1396 = vunpack.c.h.b16 %v1112
    %v1397 = vunpack.c.l.b16 %v1113
    %v1398 = vunpack.c.h.b16 %v1113
    %v1399 = vunpack.c.l.b16 %v1114
    %v1400 = vunpack.c.h.b16 %v1114
    %v1401 = vunpack.c.l.b16 %v1115
    %v1402 = vunpack.c.h.b16 %v1115
    %v1403 = vunpack.c.l.b16 %v1116
    %v1404 = vunpack.c.h.b16 %v1116
    %v1405 = vunpack.c.l.b16 %v1117
    %v1406 = vunpack.c.h.b16 %v1117
    %v1407 = vunpack.c.l.b16 %v1118
    %v1408 = vunpack.c.h.b16 %v1118
    %v1409 = vunpack.c.l.b16 %v1119
    %v1410 = vunpack.c.h.b16 %v1119
    %v1411 = vunpack.c.l.b16 %v1120
    %v1412 = vunpack.c.h.b16 %v1120
    %v1413 = vunpack.c.l.b16 %v1121
    %v1414 = vunpack.c.h.b16 %v1121
    %v1415 = vunpack.c.l.b16 %v1122
    %v1416 = vunpack.c.h.b16 %v1122
    %v1417 = vunpack.c.l.b16 %v1123
    %v1418 = vunpack.c.h.b16 %v1123
    %v1419 = vunpack.c.l.b16 %v1124
    %v1420 = vunpack.c.h.b16 %v1124
    %v1421 = vunpack.c.l.b16 %v1125
    %v1422 = vunpack.c.h.b16 %v1125
    %v1423 = vunpack.c.l.b16 %v1126
    %v1424 = vunpack.c.h.b16 %v1126
    %v1425 = vunpack.c.l.b16 %v1127
    %v1426 = vunpack.c.h.b16 %v1127
    %v1427 = vunpack.c.l.b16 %v1128
    %v1428 = vunpack.c.h.b16 %v1128
    %v1429 = vunpack.c.l.b16 %v1129
    %v1430 = vunpack.c.h.b16 %v1129
    %v1431 = vunpack.c.l.b16 %v1130
    %v1432 = vunpack.c.h.b16 %v1130
    %v1433 = vunpack.c.l.b16 %v1131
    %v1434 = vunpack.c.h.b16 %v1131
    %v1435 = vunpack.c.l.b16 %v1132
    %v1436 = vunpack.c.h.b16 %v1132
    %v1437 = vunpack.c.l.b16 %v1133
    %v1438 = vunpack.c.h.b16 %v1133
    %v1439 = vunpack.c.l.b16 %v1134
    %v1440 = vunpack.c.h.b16 %v1134
    %v1441 = vunpack.c.l.b16 %v1135
    %v1442 = vunpack.c.h.b16 %v1135
    %v1443 = vunpack.c.l.b16 %v1136
    %v1444 = vunpack.c.h.b16 %v1136
    %v1445 = vunpack.c.l.b16 %v1137
    %v1446 = vunpack.c.h.b16 %v1137
    %v1447 = vunpack.c.l.b16 %v1138
    %v1448 = vunpack.c.h.b16 %v1138
    %v1449 = vunpack.c.l.b16 %v1139
    %v1450 = vunpack.c.h.b16 %v1139
    %v1451 = vunpack.c.l.b16 %v1140
    %v1452 = vunpack.c.h.b16 %v1140
    %v1453 = vunpack.c.l.b16 %v1141
    %v1454 = vunpack.c.h.b16 %v1141
    %v1455 = vunpack.c.l.b16 %v1142
    %v1456 = vunpack.c.h.b16 %v1142
    %v1457 = vunpack.c.l.b16 %v1143
    %v1458 = vunpack.c.h.b16 %v1143
    %v1459 = vunpack.c.l.b16 %v1144
    %v1460 = vunpack.c.h.b16 %v1144
    %v1461 = vunpack.c.l.b16 %v1145
    %v1462 = vunpack.c.h.b16 %v1145
    %v1463 = vunpack.c.l.b16 %v1146
    %v1464 = vunpack.c.h.b16 %v1146
    %v1465 = vunpack.c.l.b16 %v1147
    %v1466 = vunpack.c.h.b16 %v1147
    %v1467 = vunpack.c.l.b16 %v1148
    %v1468 = vunpack.c.h.b16 %v1148
    %v1469 = vunpack.c.l.b16 %v1149
    %v1470 = vunpack.c.h.b16 %v1149
    %v1471 = vunpack.c.l.b16 %v1150
    %v1472 = vunpack.c.h.b16 %v1150
    %v1473 = vunpack.c.l.b16 %v1151
    %v1474 = vunpack.c.h.b16 %v1151
    %v1475 = vunpack.c.l.b16 %v1152
    %v1476 = vunpack.c.h.b16 %v1152
    %v1477 = vunpack.c.l.b16 %v1153
    %v1478 = vunpack.c.h.b16 %v1153
    %v1479 = vunpack.c.l.b16 %v1154
    %v1480 = vunpack.c.h.b16 %v1154
    %v1481 = vunpack.c.l.b16 %v1155
    %v1482 = vunpack.c.h.b16 %v1155
    %v1483 = vunpack.c.l.b16 %v1156
    %v1484 = vunpack.c.h.b16 %v1156
    %v1485 = vunpack.c.l.b16 %v1157
    %v1486 = vunpack.c.h.b16 %v1157
    %v1487 = vunpack.c.l.b16 %v1158
    %v1488 = vunpack.c.h.b16 %v1158
    %v1489 = vunpack.c.l.b16 %v1159
    %v1490 = vunpack.c.h.b16 %v1159
    %v1491 = vunpack.c.l.b16 %v1160
    %v1492 = vunpack.c.h.b16 %v1160
    %v1493 = vunpack.c.l.b16 %v1161
    %v1494 = vunpack.c.h.b16 %v1161
    %v1495 = vunpack.c.l.b16 %v1162
    %v1496 = vunpack.c.h.b16 %v1162
    %v1497 = vunpack.c.l.b16 %v1163
    %v1498 = vunpack.c.h.b16 %v1163
    %v1499 = vunpack.c.l.b16 %v1164
    %v1500 = vunpack.c.h.b16 %v1164
    %v1501 = vunpack.c.l.b16 %v1165
    %v1502 = vunpack.c.h.b16 %v1165
    %v1503 = vunpack.c.l.b16 %v1166
    %v1504 = vunpack.c.h.b16 %v1166
    %v1505 = vunpack.c.l.b16 %v1167
    %v1506 = vunpack.c.h.b16 %v1167
    %v1507 = vunpack.c.l.b16 %v1168
    %v1508 = vunpack.c.h.b16 %v1168
    %v1509 = vunpack.c.l.b16 %v1169
    %v1510 = vunpack.c.h.b16 %v1169
    %v1511 = vunpack.c.l.b16 %v1170
    %v1512 = vunpack.c.h.b16 %v1170
    %v1513 = vunpack.c.l.b16 %v1171
    %v1514 = vunpack.c.h.b16 %v1171
    %v1515 = vunpack.c.l.b16 %v1172
    %v1516 = vunpack.c.h.b16 %v1172
    %v1517 = vunpack.c.l.b16 %v1173
    %v1518 = vunpack.c.h.b16 %v1173
    %v1519 = vunpack.c.l.b16 %v1174
    %v1520 = vunpack.c.h.b16 %v1174
    %v1521 = vunpack.c.l.b16 %v1175
    %v1522 = vunpack.c.h.b16 %v1175
    %v1523 = vunpack.c.l.b16 %v1176
    %v1524 = vunpack.c.h.b16 %v1176
    %v1525 = vunpack.c.l.b16 %v1177
    %v1526 = vunpack.c.h.b16 %v1177
    %v1527 = vunpack.c.l.b16 %v1178
    %v1528 = vunpack.c.h.b16 %v1178
    %v1529 = vunpack.c.l.b16 %v1179
    %v1530 = vunpack.c.h.b16 %v1179
    %v1531 = vunpack.c.l.b16 %v1180
    %v1532 = vunpack.c.h.b16 %v1180
    %v1533 = vunpack.c.l.b16 %v1181
    %v1534 = vunpack.c.h.b16 %v1181
    %v1535 = vunpack.c.l.b16 %v1182
    %v1536 = vunpack.c.h.b16 %v1182
    %v1537 = vunpack.c.l.b16 %v1183
    %v1538 = vunpack.c.h.b16 %v1183
    %v1539 = vunpack.c.l.b16 %v1184
    %v1540 = vunpack.c.h.b16 %v1184
    %v1541 = vunpack.c.l.b16 %v1185
    %v1542 = vunpack.c.h.b16 %v1185
    %v1543 = vunpack.c.l.b16 %v1186
    %v1544 = vunpack.c.h.b16 %v1186
    %v1545 = vunpack.c.l.b16 %v1187
    %v1546 = vunpack.c.h.b16 %v1187
    %v1547 = vunpack.c.l.b16 %v1188
    %v1548 = vunpack.c.h.b16 %v1188
    %v1549 = vunpack.c.l.b16 %v1189
    %v1550 = vunpack.c.h.b16 %v1189
    %v1551 = vunpack.c.l.b16 %v1190
    %v1552 = vunpack.c.h.b16 %v1190
    %v1553 = vunpack.c.l.b16 %v1191
    %v1554 = vunpack.c.h.b16 %v1191
    %v1555 = vunpack.c.l.b16 %v1192
    %v1556 = vunpack.c.h.b16 %v1192
    %v1557 = vunpack.c.l.b16 %v1193
    %v1558 = vunpack.c.h.b16 %v1193
    %v1559 = vunpack.c.l.b16 %v1194
    %v1560 = vunpack.c.h.b16 %v1194
    %v1561 = vunpack.c.l.b16 %v1195
    %v1562 = vunpack.c.h.b16 %v1195
    %v1563 = vunpack.c.l.b16 %v1196
    %v1564 = vunpack.c.h.b16 %v1196
    %v1565 = vunpack.c.l.b16 %v1197
    %v1566 = vunpack.c.h.b16 %v1197
    %v1567 = vunpack.c.l.b16 %v1198
    %v1568 = vunpack.c.h.b16 %v1198
    %v1569 = vunpack.c.l.b16 %v1199
    %v1570 = vunpack.c.h.b16 %v1199
    %v1571 = vunpack.c.l.b16 %v1200
    %v1572 = vunpack.c.h.b16 %v1200
    %v1573 = vunpack.c.l.b16 %v1201
    %v1574 = vunpack.c.h.b16 %v1201
    %v1575 = vunpack.c.l.b16 %v1202
    %v1576 = vunpack.c.h.b16 %v1202
    %v1577 = vunpack.c.l.b16 %v1203
    %v1578 = vunpack.c.h.b16 %v1203
    %v1579 = vunpack.c.l.b16 %v1204
    %v1580 = vunpack.c.h.b16 %v1204
    %v1581 = vunpack.c.l.b16 %v1205
    %v1582 = vunpack.c.h.b16 %v1205
    %v1583 = vunpack.c.l.b16 %v1206
    %v1584 = vunpack.c.h.b16 %v1206
    %v1585 = vunpack.c.l.b16 %v1207
    %v1586 = vunpack.c.h.b16 %v1207
    %v1587 = vunpack.c.l.b16 %v1208
    %v1588 = vunpack.c.h.b16 %v1208
    %v1589 = vunpack.c.l.b16 %v1209
    %v1590 = vunpack.c.h.b16 %v1209
    %v1591 = vunpack.c.l.b16 %v1210
    %v1592 = vunpack.c.h.b16 %v1210
    %v1593 = vpack.c.b16 %v1357, %v1353
    %v1594 = vpack.c.b16 %v1358, %v1354
    %v1595 = vpack.c.b16 %v1359, %v1355
    %v1596 = vpack.c.b16 %v1360, %v1356
    %v1597 = vpack.c.b16 %v1365, %v1361
    %v1598 = vpack.c.b16 %v1366, %v1362
    %v1599 = vpack.c.b16 %v1367, %v1363
    %v1600 = vpack.c.b16 %v1368, %v1364
    %v1601 = vpack.c.b16 %v1373, %v1369
    %v1602 = vpack.c.b16 %v1374, %v1370
    %v1603 = vpack.c.b16 %v1375, %v1371
    %v1604 = vpack.c.b16 %v1376, %v1372
    %v1605 = vpack.c.b16 %v1381, %v1377
    %v1606 = vpack.c.b16 %v1382, %v1378
    %v1607 = vpack.c.b16 %v1383, %v1379
    %v1608 = vpack.c.b16 %v1384, %v1380
    %v1609 = vpack.c.b16 %v1389, %v1385
    %v1610 = vpack.c.b16 %v1390, %v1386
    %v1611 = vpack.c.b16 %v1391, %v1387
    %v1612 = vpack.c.b16 %v1392, %v1388
    %v1613 = vpack.c.b16 %v1397, %v1393
    %v1614 = vpack.c.b16 %v1398, %v1394
    %v1615 = vpack.c.b16 %v1399, %v1395
    %v1616 = vpack.c.b16 %v1400, %v1396
    %v1617 = vpack.c.b16 %v1405, %v1401
    %v1618 = vpack.c.b16 %v1406, %v1402
    %v1619 = vpack.c.b16 %v1407, %v1403
    %v1620 = vpack.c.b16 %v1408, %v1404
    %v1621 = vpack.c.b16 %v1413, %v1409
    %v1622 = vpack.c.b16 %v1414, %v1410
    %v1623 = vpack.c.b16 %v1415, %v1411
    %v1624 = vpack.c.b16 %v1416, %v1412
    %v1625 = vpack.c.b16 %v1421, %v1417
    %v1626 = vpack.c.b16 %v1422, %v1418
    %v1627 = vpack.c.b16 %v1423, %v1419
    %v1628 = vpack.c.b16 %v1424, %v1420
    %v1629 = vpack.c.b16 %v1429, %v1425
    %v1630 = vpack.c.b16 %v1430, %v1426
    %v1631 = vpack.c.b16 %v1431, %v1427
    %v1632 = vpack.c.b16 %v1432, %v1428
    %v1633 = vpack.c.b16 %v1437, %v1433
    %v1634 = vpack.c.b16 %v1438, %v1434
    %v1635 = vpack.c.b16 %v1439, %v1435
    %v1636 = vpack.c.b16 %v1440, %v1436
    %v1637 = vpack.c.b16 %v1445, %v1441
    %v1638 = vpack.c.b16 %v1446, %v1442
    %v1639 = vpack.c.b16 %v1447, %v1443
    %v1640 = vpack.c.b16 %v1448, %v1444
    %v1641 = vpack.c.b16 %v1453, %v1449
    %v1642 = vpack.c.b16 %v1454, %v1450
    %v1643 = vpack.c.b16 %v1455, %v1451
    %v1644 = vpack.c.b16 %v1456, %v1452
    %v1645 = vpack.c.b16 %v1461, %v1457
    %v1646 = vpack.c.b16 %v1462, %v1458
    %v1647 = vpack.c.b16 %v1463, %v1459
    %v1648 = vpack.c.b16 %v1464, %v1460
    %v1649 = vpack.c.b16 %v1469, %v1465
    %v1650 = vpack.c.b16 %v1470, %v1466
    %v1651 = vpack.c.b16 %v1471, %v1467
    %v1652 = vpack.c.b16 %v1472, %v1468
    %v1653 = vpack.c.b16 %v1477, %v1473
    %v1654 = vpack.c.b16 %v1478, %v1474
    %v1655 = vpack.c.b16 %v1479, %v1475
    %v1656 = vpack.c.b16 %v1480, %v1476
    %v1657 = vpack.c.b16 %v1485, %v1481
    %v1658 = vpack.c.b16 %v1486, %v1482
    %v1659 = vpack.c.b16 %v1487, %v1483
    %v1660 = vpack.c.b16 %v1488, %v1484
    %v1661 = vpack.c.b16 %v1493, %v1489
    %v1662 = vpack.c.b16 %v1494, %v1490
    %v1663 = vpack.c.b16 %v1495, %v1491
    %v1664 = vpack.c.b16 %v1496, %v1492
    %v1665 = vpack.c.b16 %v1501, %v1497
    %v1666 = vpack.c.b16 %v1502, %v1498
    %v1667 = vpack.c.b16 %v1503, %v1499
    %v1668 = vpack.c.b16 %v1504, %v1500
    %v1669 = vpack.c.b16 %v1509, %v1505
    %v1670 = vpack.c.b16 %v1510, %v1506
    %v1671 = vpack.c.b16 %v1511, %v1507
    %v1672 = vpack.c.b16 %v1512, %v1508
    %v1673 = vpack.c.b16 %v1517, %v1513
    %v1674 = vpack.c.b16 %v1518, %v1514
    %v1675 = vpack.c.b16 %v1519, %v1515
    %v1676 = vpack.c.b16 %v1520, %v1516
    %v1677 = vpack.c.b16 %v1525, %v1521
    %v1678 = vpack.c.b16 %v1526, %v1522
    %v1679 = vpack.c.b16 %v1527, %v1523
    %v1680 = vpack.c.b16 %v1528, %v1524
    %v1681 = vpack.c.b16 %v1533, %v1529
    %v1682 = vpack.c.b16 %v1534, %v1530
    %v1683 = vpack.c.b16 %v1535, %v1531
    %v1684 = vpack.c.b16 %v1536, %v1532
    %v1685 = vpack.c.b16 %v1541, %v1537
    %v1686 = vpack.c.b16 %v1542, %v1538
    %v1687 = vpack.c.b16 %v1543, %v1539
    %v1688 = vpack.c.b16 %v1544, %v1540
    %v1689 = vpack.c.b16 %v1549, %v1545
    %v1690 = vpack.c.b16 %v1550, %v1546
    %v1691 = vpack.c.b16 %v1551, %v1547
    %v1692 = vpack.c.b16 %v1552, %v1548
    %v1693 = vpack.c.b16 %v1557, %v1553
    %v1694 = vpack.c.b16 %v1558, %v1554
    %v1695 = vpack.c.b16 %v1559, %v1555
    %v1696 = vpack.c.b16 %v1560, %v1556
    %v1697 = vpack.c.b16 %v1565, %v1561
    %v1698 = vpack.c.b16 %v1566, %v1562
    %v1699 = vpack.c.b16 %v1567, %v1563
    %v1700 = vpack.c.b16 %v1568, %v1564
    %v1701 = vpack.c.b16 %v1573, %v1569
    %v1702 = vpack.c.b16 %v1574, %v1570
    %v1703 = vpack.c.b16 %v1575, %v1571
    %v1704 = vpack.c.b16 %v1576, %v1572
    %v1705 = vpack.c.b16 %v1581, %v1577
    %v1706 = vpack.c.b16 %v1582, %v1578
    %v1707 = vpack.c.b16 %v1583, %v1579
    %v1708 = vpack.c.b16 %v1584, %v1580
    %v1709 = vpack.c.b16 %v1589, %v1585
    %v1710 = vpack.c.b16 %v1590, %v1586
    %v1711 = vpack.c.b16 %v1591, %v1587
    %v1712 = vpack.c.b16 %v1592, %v1588
    %v1834 = vsel %vm915, %v1090, 0
    %1836 = vmatprep.subr.bf16.mxu0 %v1622
    %1837 = vmatpush1.bf16.msra.mxu0 %v1621
    %1838 = vmatprep.subr.bf16.mxu0 %v1618
    %1839 = vmatpush1.bf16.msra.mxu0 %v1617
    %1840 = vmatprep.subr.bf16.mxu0 %v1614
    %1841 = vmatpush1.bf16.msra.mxu0 %v1613
    %1842 = vmatprep.subr.bf16.mxu0 %v1610
    %1843 = vmatpush1.bf16.msra.mxu0 %v1609
    %1844 = vmatprep.subr.bf16.mxu0 %v1606
    %1845 = vmatpush1.bf16.msra.mxu0 %v1605
    %1846 = vmatprep.subr.bf16.mxu0 %v1602
    %1847 = vmatpush1.bf16.msra.mxu0 %v1601
    %1848 = vmatprep.subr.bf16.mxu0 %v1598
    %1849 = vmatpush1.bf16.msra.mxu0 %v1597
    %1850 = vmatprep.subr.bf16.mxu0 %v1594
    %1851 = vmatpush1.bf16.msra.mxu0 %v1593
    %1852 = vmatprep.subr.bf16.mxu0 %v1654
    %1853 = vmatpush2.bf16.msra.mxu0 %v1653
    %1854 = vmatprep.subr.bf16.mxu0 %v1650
    %1855 = vmatpush2.bf16.msra.mxu0 %v1649
    %1856 = vmatprep.subr.bf16.mxu0 %v1646
    %1857 = vmatpush2.bf16.msra.mxu0 %v1645
    %1858 = vmatprep.subr.bf16.mxu0 %v1642
    %1859 = vmatpush2.bf16.msra.mxu0 %v1641
    %1860 = vmatprep.subr.bf16.mxu0 %v1638
    %1861 = vmatpush2.bf16.msra.mxu0 %v1637
    %1862 = vmatprep.subr.bf16.mxu0 %v1634
    %1863 = vmatpush2.bf16.msra.mxu0 %v1633
    %1864 = vmatprep.subr.bf16.mxu0 %v1630
    %1865 = vmatpush2.bf16.msra.mxu0 %v1629
    %1866 = vmatprep.subr.bf16.mxu0 %v1626
    %1867 = vmatpush2.bf16.msra.mxu0 %v1625
    %1868 = vmatprep.mubr.bf16.mxu0 %v1088
    %1869 = vmatmul.mubr.bf16.gmra.mxu0 %v1087
    %v1870 = vpop.f32.mrf.mxu0
    %v1871 = vadd.f32 %v1216, %v1870
    %v1872 = vpop.f32.mrf.mxu0
    %v1873 = vadd.f32 %v1220, %v1872
    %v1874 = vpop.f32.mrf.mxu0
    %v1875 = vpop.f32.mrf.mxu0
    %1876 = vdwg.mxu0
    %1877 = vmatprep.subr.bf16.mxu0 %v1686
    %1878 = vmatpush1.bf16.msra.mxu0 %v1685
    %1879 = vmatprep.subr.bf16.mxu0 %v1682
    %1880 = vmatpush1.bf16.msra.mxu0 %v1681
    %1881 = vmatprep.subr.bf16.mxu0 %v1678
    %1882 = vmatpush1.bf16.msra.mxu0 %v1677
    %1883 = vmatprep.subr.bf16.mxu0 %v1674
    %1884 = vmatpush1.bf16.msra.mxu0 %v1673
    %1885 = vmatprep.subr.bf16.mxu0 %v1670
    %1886 = vmatpush1.bf16.msra.mxu0 %v1669
    %1887 = vmatprep.subr.bf16.mxu0 %v1666
    %1888 = vmatpush1.bf16.msra.mxu0 %v1665
    %1889 = vmatprep.subr.bf16.mxu0 %v1662
    %1890 = vmatpush1.bf16.msra.mxu0 %v1661
    %1891 = vmatprep.subr.bf16.mxu0 %v1658
    %1892 = vmatpush1.bf16.msra.mxu0 %v1657
    %1893 = vmatprep.subr.bf16.mxu0 0
    %1894 = vmatpush2.bf16.msra.mxu0 0
    %1895 = vmatprep.subr.bf16.mxu0 0
    %1896 = vmatpush2.bf16.msra.mxu0 0
    %1897 = vmatprep.subr.bf16.mxu0 %v1710
    %1898 = vmatpush2.bf16.msra.mxu0 %v1709
    %1899 = vmatprep.subr.bf16.mxu0 %v1706
    %1900 = vmatpush2.bf16.msra.mxu0 %v1705
    %1901 = vmatprep.subr.bf16.mxu0 %v1702
    %1902 = vmatpush2.bf16.msra.mxu0 %v1701
    %1903 = vmatprep.subr.bf16.mxu0 %v1698
    %1904 = vmatpush2.bf16.msra.mxu0 %v1697
    %1905 = vmatprep.subr.bf16.mxu0 %v1694
    %1906 = vmatpush2.bf16.msra.mxu0 %v1693
    %1907 = vmatprep.subr.bf16.mxu0 %v1690
    %1908 = vmatpush2.bf16.msra.mxu0 %v1689
    %1909 = vmatprep.mubr.bf16.mxu0 %v1834
    %1910 = vmatmul.mubr.bf16.gmra.mxu0 %v1089
    %v1911 = vpop.f32.mrf.mxu0
    %v1912 = vadd.f32 %v1871, %v1911
    %v1913 = vpop.f32.mrf.mxu0
    %v1914 = vadd.f32 %v1873, %v1913
    %v1915 = vpop.f32.mrf.mxu0
    %v1916 = vpop.f32.mrf.mxu0
    %1917 = vdwg.mxu0
    %1918 = vmatprep.subr.bf16.mxu0 %v1624
    %1919 = vmatpush1.bf16.msra.mxu0 %v1623
    %1920 = vmatprep.subr.bf16.mxu0 %v1620
    %1921 = vmatpush1.bf16.msra.mxu0 %v1619
    %1922 = vmatprep.subr.bf16.mxu0 %v1616
    %1923 = vmatpush1.bf16.msra.mxu0 %v1615
    %1924 = vmatprep.subr.bf16.mxu0 %v1612
    %1925 = vmatpush1.bf16.msra.mxu0 %v1611
    %1926 = vmatprep.subr.bf16.mxu0 %v1608
    %1927 = vmatpush1.bf16.msra.mxu0 %v1607
    %1928 = vmatprep.subr.bf16.mxu0 %v1604
    %1929 = vmatpush1.bf16.msra.mxu0 %v1603
    %1930 = vmatprep.subr.bf16.mxu0 %v1600
    %1931 = vmatpush1.bf16.msra.mxu0 %v1599
    %1932 = vmatprep.subr.bf16.mxu0 %v1596
    %1933 = vmatpush1.bf16.msra.mxu0 %v1595
    %1934 = vmatprep.subr.bf16.mxu0 %v1656
    %1935 = vmatpush2.bf16.msra.mxu0 %v1655
    %1936 = vmatprep.subr.bf16.mxu0 %v1652
    %1937 = vmatpush2.bf16.msra.mxu0 %v1651
    %1938 = vmatprep.subr.bf16.mxu0 %v1648
    %1939 = vmatpush2.bf16.msra.mxu0 %v1647
    %1940 = vmatprep.subr.bf16.mxu0 %v1644
    %1941 = vmatpush2.bf16.msra.mxu0 %v1643
    %1942 = vmatprep.subr.bf16.mxu0 %v1640
    %1943 = vmatpush2.bf16.msra.mxu0 %v1639
    %1944 = vmatprep.subr.bf16.mxu0 %v1636
    %1945 = vmatpush2.bf16.msra.mxu0 %v1635
    %1946 = vmatprep.subr.bf16.mxu0 %v1632
    %1947 = vmatpush2.bf16.msra.mxu0 %v1631
    %1948 = vmatprep.subr.bf16.mxu0 %v1628
    %1949 = vmatpush2.bf16.msra.mxu0 %v1627
    %1950 = vmatprep.mubr.bf16.mxu0 %v1088
    %1951 = vmatmul.mubr.bf16.gmra.mxu0 %v1087
    %v1952 = vpop.f32.mrf.mxu0
    %v1953 = vadd.f32 %v1224, %v1952
    %v1954 = vpop.f32.mrf.mxu0
    %v1955 = vadd.f32 %v1228, %v1954
    %v1956 = vpop.f32.mrf.mxu0
    %v1957 = vpop.f32.mrf.mxu0
    %1958 = vdwg.mxu0
    %1959 = vmatprep.subr.bf16.mxu0 %v1688
    %1960 = vmatpush1.bf16.msra.mxu0 %v1687
    %1961 = vmatprep.subr.bf16.mxu0 %v1684
    %1962 = vmatpush1.bf16.msra.mxu0 %v1683
    %1963 = vmatprep.subr.bf16.mxu0 %v1680
    %1964 = vmatpush1.bf16.msra.mxu0 %v1679
    %1965 = vmatprep.subr.bf16.mxu0 %v1676
    %1966 = vmatpush1.bf16.msra.mxu0 %v1675
    %1967 = vmatprep.subr.bf16.mxu0 %v1672
    %1968 = vmatpush1.bf16.msra.mxu0 %v1671
    %1969 = vmatprep.subr.bf16.mxu0 %v1668
    %1970 = vmatpush1.bf16.msra.mxu0 %v1667
    %1971 = vmatprep.subr.bf16.mxu0 %v1664
    %1972 = vmatpush1.bf16.msra.mxu0 %v1663
    %1973 = vmatprep.subr.bf16.mxu0 %v1660
    %1974 = vmatpush1.bf16.msra.mxu0 %v1659
    %1975 = vmatprep.subr.bf16.mxu0 0
    %1976 = vmatpush2.bf16.msra.mxu0 0
    %1977 = vmatprep.subr.bf16.mxu0 0
    %1978 = vmatpush2.bf16.msra.mxu0 0
    %1979 = vmatprep.subr.bf16.mxu0 %v1712
    %1980 = vmatpush2.bf16.msra.mxu0 %v1711
    %1981 = vmatprep.subr.bf16.mxu0 %v1708
    %1982 = vmatpush2.bf16.msra.mxu0 %v1707
    %1983 = vmatprep.subr.bf16.mxu0 %v1704
    %1984 = vmatpush2.bf16.msra.mxu0 %v1703
    %1985 = vmatprep.subr.bf16.mxu0 %v1700
    %1986 = vmatpush2.bf16.msra.mxu0 %v1699
    %1987 = vmatprep.subr.bf16.mxu0 %v1696
    %1988 = vmatpush2.bf16.msra.mxu0 %v1695
    %1989 = vmatprep.subr.bf16.mxu0 %v1692
    %1990 = vmatpush2.bf16.msra.mxu0 %v1691
    %1991 = vmatprep.mubr.bf16.mxu0 %v1834
    %1992 = vmatmul.mubr.bf16.gmra.mxu0 %v1089
    %v1993 = vpop.f32.mrf.mxu0
    %v1994 = vadd.f32 %v1953, %v1993
    %v1995 = vpop.f32.mrf.mxu0
    %v1996 = vadd.f32 %v1955, %v1995
    %v1997 = vpop.f32.mrf.mxu0
    %v1998 = vpop.f32.mrf.mxu0
    %1999 = vdwg.mxu0
    %s2000 = sshll.u32 %s1084, 4
    %2001 = dma.done %s99, %s2000
    %v2002 = vpack.c.bf16 %v1912, %v1912
    %v2003 = vpack.c.bf16 %v1914, %v1914
    %v2004 = vpack.c.bf16 %v1994, %v1994
    %v2005 = vpack.c.bf16 %v1996, %v1996
    %v2006 = vld [vmem:[#allocation3] sm:$0xff]
    %v2007 = vld [vmem:[#allocation3 + $0x8] sm:$0xff]
    %v2008 = vld [vmem:[#allocation3 + $0x10] sm:$0xff]
    %v2009 = vld [vmem:[#allocation3 + $0x18] sm:$0xff]
    %v2010 = vld [vmem:[#allocation3 + $0x20] sm:$0xff]
    %v2011 = vld [vmem:[#allocation3 + $0x28] sm:$0xff]
    %v2012 = vld [vmem:[#allocation3 + $0x30] sm:$0xff]
    %v2013 = vld [vmem:[#allocation3 + $0x38] sm:$0xff]
    %v2014 = vld [vmem:[#allocation3 + $0x40] sm:$0xff]
    %v2015 = vld [vmem:[#allocation3 + $0x48] sm:$0xff]
    %v2016 = vld [vmem:[#allocation3 + $0x50] sm:$0xff]
    %v2017 = vld [vmem:[#allocation3 + $0x58] sm:$0xff]
    %v2018 = vld [vmem:[#allocation3 + $0x60] sm:$0xff]
    %v2019 = vld [vmem:[#allocation3 + $0x68] sm:$0xff]
    %v2020 = vld [vmem:[#allocation3 + $0x70] sm:$0xff]
    %v2021 = vld [vmem:[#allocation3 + $0x78] sm:$0xff]
    %v2022 = vld [vmem:[#allocation3 + $0x80] sm:$0xff]
    %v2023 = vld [vmem:[#allocation3 + $0x88] sm:$0xff]
    %v2024 = vld [vmem:[#allocation3 + $0x90] sm:$0xff]
    %v2025 = vld [vmem:[#allocation3 + $0x98] sm:$0xff]
    %v2026 = vld [vmem:[#allocation3 + $0xa0] sm:$0xff]
    %v2027 = vld [vmem:[#allocation3 + $0xa8] sm:$0xff]
    %v2028 = vld [vmem:[#allocation3 + $0xb0] sm:$0xff]
    %v2029 = vld [vmem:[#allocation3 + $0xb8] sm:$0xff]
    %v2030 = vld [vmem:[#allocation3 + $0xc0] sm:$0xff]
    %v2031 = vld [vmem:[#allocation3 + $0xc8] sm:$0xff]
    %v2032 = vld [vmem:[#allocation3 + $0xd0] sm:$0xff]
    %v2033 = vld [vmem:[#allocation3 + $0xd8] sm:$0xff]
    %v2034 = vld [vmem:[#allocation3 + $0xe0] sm:$0xff]
    %v2035 = vld [vmem:[#allocation3 + $0xe8] sm:$0xff]
    %v2036 = vld [vmem:[#allocation3 + $0xf0] sm:$0xff]
    %v2037 = vld [vmem:[#allocation3 + $0xf8] sm:$0xff]
    %v2038 = vld [vmem:[#allocation3 + $0x100] sm:$0xff]
    %v2039 = vld [vmem:[#allocation3 + $0x108] sm:$0xff]
    %v2040 = vld [vmem:[#allocation3 + $0x110] sm:$0xff]
    %v2041 = vld [vmem:[#allocation3 + $0x118] sm:$0xff]
    %v2042 = vld [vmem:[#allocation3 + $0x120] sm:$0xff]
    %v2043 = vld [vmem:[#allocation3 + $0x128] sm:$0xff]
    %v2044 = vld [vmem:[#allocation3 + $0x130] sm:$0xff]
    %v2045 = vld [vmem:[#allocation3 + $0x138] sm:$0xff]
    %v2046 = vld [vmem:[#allocation3 + $0x140] sm:$0xff]
    %v2047 = vld [vmem:[#allocation3 + $0x148] sm:$0xff]
    %v2048 = vld [vmem:[#allocation3 + $0x150] sm:$0xff]
    %v2049 = vld [vmem:[#allocation3 + $0x158] sm:$0xff]
    %v2050 = vld [vmem:[#allocation3 + $0x160] sm:$0xff]
    %v2051 = vld [vmem:[#allocation3 + $0x168] sm:$0xff]
    %v2052 = vld [vmem:[#allocation3 + $0x170] sm:$0xff]
    %v2053 = vld [vmem:[#allocation3 + $0x178] sm:$0xff]
    %v2054 = vld [vmem:[#allocation3 + $0x180] sm:$0xff]
    %v2055 = vld [vmem:[#allocation3 + $0x188] sm:$0xff]
    %v2056 = vld [vmem:[#allocation3 + $0x190] sm:$0xff]
    %v2057 = vld [vmem:[#allocation3 + $0x198] sm:$0xff]
    %v2058 = vld [vmem:[#allocation3 + $0x1a0] sm:$0xff]
    %v2059 = vld [vmem:[#allocation3 + $0x1a8] sm:$0xff]
    %v2060 = vld [vmem:[#allocation3 + $0x1b0] sm:$0xff]
    %v2061 = vld [vmem:[#allocation3 + $0x1b8] sm:$0xff]
    %v2062 = vld [vmem:[#allocation3 + $0x1c0] sm:$0xff]
    %v2063 = vld [vmem:[#allocation3 + $0x1c8] sm:$0xff]
    %v2064 = vld [vmem:[#allocation3 + $0x1d0] sm:$0xff]
    %v2065 = vld [vmem:[#allocation3 + $0x1d8] sm:$0xff]
    %v2066 = vld [vmem:[#allocation3 + $0x1e0] sm:$0xff]
    %v2067 = vld [vmem:[#allocation3 + $0x1e8] sm:$0xff]
    %v2068 = vld [vmem:[#allocation3 + $0x1f0] sm:$0xff]
    %v2069 = vld [vmem:[#allocation3 + $0x1f8] sm:$0xff]
    %v2070 = vld [vmem:[#allocation3 + $0x200] sm:$0xff]
    %v2071 = vld [vmem:[#allocation3 + $0x208] sm:$0xff]
    %v2072 = vld [vmem:[#allocation3 + $0x210] sm:$0xff]
    %v2073 = vld [vmem:[#allocation3 + $0x218] sm:$0xff]
    %v2074 = vld [vmem:[#allocation3 + $0x220] sm:$0xff]
    %v2075 = vld [vmem:[#allocation3 + $0x228] sm:$0xff]
    %v2076 = vld [vmem:[#allocation3 + $0x230] sm:$0xff]
    %v2077 = vld [vmem:[#allocation3 + $0x238] sm:$0xff]
    %v2078 = vld [vmem:[#allocation3 + $0x240] sm:$0xff]
    %v2079 = vld [vmem:[#allocation3 + $0x248] sm:$0xff]
    %v2080 = vld [vmem:[#allocation3 + $0x250] sm:$0xff]
    %v2081 = vld [vmem:[#allocation3 + $0x258] sm:$0xff]
    %v2082 = vld [vmem:[#allocation3 + $0x260] sm:$0xff]
    %v2083 = vld [vmem:[#allocation3 + $0x268] sm:$0xff]
    %v2084 = vld [vmem:[#allocation3 + $0x270] sm:$0xff]
    %v2085 = vld [vmem:[#allocation3 + $0x278] sm:$0xff]
    %v2086 = vld [vmem:[#allocation3 + $0x280] sm:$0xff]
    %v2087 = vld [vmem:[#allocation3 + $0x288] sm:$0xff]
    %v2088 = vld [vmem:[#allocation3 + $0x290] sm:$0xff]
    %v2089 = vld [vmem:[#allocation3 + $0x298] sm:$0xff]
    %v2090 = vld [vmem:[#allocation3 + $0x2a0] sm:$0xff]
    %v2091 = vld [vmem:[#allocation3 + $0x2a8] sm:$0xff]
    %v2092 = vld [vmem:[#allocation3 + $0x2b0] sm:$0xff]
    %v2093 = vld [vmem:[#allocation3 + $0x2b8] sm:$0xff]
    %v2094 = vld [vmem:[#allocation3 + $0x2c0] sm:$0xff]
    %v2095 = vld [vmem:[#allocation3 + $0x2c8] sm:$0xff]
    %v2096 = vld [vmem:[#allocation3 + $0x2d0] sm:$0xff]
    %v2097 = vld [vmem:[#allocation3 + $0x2d8] sm:$0xff]
    %v2098 = vld [vmem:[#allocation3 + $0x2e0] sm:$0xff]
    %v2099 = vld [vmem:[#allocation3 + $0x2e8] sm:$0xff]
    %v2100 = vld [vmem:[#allocation3 + $0x2f0] sm:$0xff]
    %v2101 = vld [vmem:[#allocation3 + $0x2f8] sm:$0xff]
    %v2102 = vld [vmem:[#allocation3 + $0x300] sm:$0xff]
    %v2103 = vld [vmem:[#allocation3 + $0x308] sm:$0xff]
    %v2104 = vld [vmem:[#allocation3 + $0x310] sm:$0xff]
    %v2105 = vld [vmem:[#allocation3 + $0x318] sm:$0xff]
    %v2106 = vld [vmem:[#allocation3 + $0x320] sm:$0xff]
    %v2107 = vld [vmem:[#allocation3 + $0x328] sm:$0xff]
    %v2108 = vld [vmem:[#allocation3 + $0x330] sm:$0xff]
    %v2109 = vld [vmem:[#allocation3 + $0x338] sm:$0xff]
    %v2110 = vld [vmem:[#allocation3 + $0x340] sm:$0xff]
    %v2111 = vld [vmem:[#allocation3 + $0x348] sm:$0xff]
    %v2112 = vld [vmem:[#allocation3 + $0x350] sm:$0xff]
    %v2113 = vld [vmem:[#allocation3 + $0x358] sm:$0xff]
    %v2114 = vld [vmem:[#allocation3 + $0x360] sm:$0xff]
    %v2115 = vld [vmem:[#allocation3 + $0x368] sm:$0xff]
    %v2116 = vld [vmem:[#allocation3 + $0x370] sm:$0xff]
    %v2117 = vld [vmem:[#allocation3 + $0x378] sm:$0xff]
    %v2118 = vld [vmem:[#allocation3 + $0x380] sm:$0xff]
    %v2119 = vld [vmem:[#allocation3 + $0x388] sm:$0xff]
    %v2120 = vld [vmem:[#allocation3 + $0x390] sm:$0xff]
    %v2121 = vld [vmem:[#allocation3 + $0x398] sm:$0xff]
    %v2122 = vld [vmem:[#allocation3 + $0x3a0] sm:$0xff]
    %v2123 = vld [vmem:[#allocation3 + $0x3a8] sm:$0xff]
    %v2124 = vld [vmem:[#allocation3 + $0x3b0] sm:$0xff]
    %v2125 = vld [vmem:[#allocation3 + $0x3b8] sm:$0xff]
    %v2126 = vld [vmem:[#allocation12] sm:$0xf]
    %v2128 = vlaneseq
    %v2129 = vshrl.u32 %v2128, 7
    %v2130 = vsub.s32 0, %v2129
    %v2131 = vrot.slane %v2126, %v2130
    %v2132 = vlaneseq
    %v2133 = vshrl.u32 %v2132, 7
    %v2134 = vsub.s32 1, %v2133
    %v2135 = vrot.slane %v2126, %v2134
    %v2136 = vlaneseq
    %v2137 = vshrl.u32 %v2136, 7
    %v2138 = vsub.s32 2, %v2137
    %v2139 = vrot.slane %v2126, %v2138
    %v2140 = vlaneseq
    %v2141 = vshrl.u32 %v2140, 7
    %v2142 = vsub.s32 3, %v2141
    %v2143 = vrot.slane %v2126, %v2142
    %v2268 = vunpack.c.l.b16 %v2006
    %v2269 = vunpack.c.h.b16 %v2006
    %v2270 = vunpack.c.l.b16 %v2007
    %v2271 = vunpack.c.h.b16 %v2007
    %v2272 = vunpack.c.l.b16 %v2008
    %v2273 = vunpack.c.h.b16 %v2008
    %v2274 = vunpack.c.l.b16 %v2009
    %v2275 = vunpack.c.h.b16 %v2009
    %v2276 = vunpack.c.l.b16 %v2010
    %v2277 = vunpack.c.h.b16 %v2010
    %v2278 = vunpack.c.l.b16 %v2011
    %v2279 = vunpack.c.h.b16 %v2011
    %v2280 = vunpack.c.l.b16 %v2012
    %v2281 = vunpack.c.h.b16 %v2012
    %v2282 = vunpack.c.l.b16 %v2013
    %v2283 = vunpack.c.h.b16 %v2013
    %v2284 = vunpack.c.l.b16 %v2014
    %v2285 = vunpack.c.h.b16 %v2014
    %v2286 = vunpack.c.l.b16 %v2015
    %v2287 = vunpack.c.h.b16 %v2015
    %v2288 = vunpack.c.l.b16 %v2016
    %v2289 = vunpack.c.h.b16 %v2016
    %v2290 = vunpack.c.l.b16 %v2017
    %v2291 = vunpack.c.h.b16 %v2017
    %v2292 = vunpack.c.l.b16 %v2018
    %v2293 = vunpack.c.h.b16 %v2018
    %v2294 = vunpack.c.l.b16 %v2019
    %v2295 = vunpack.c.h.b16 %v2019
    %v2296 = vunpack.c.l.b16 %v2020
    %v2297 = vunpack.c.h.b16 %v2020
    %v2298 = vunpack.c.l.b16 %v2021
    %v2299 = vunpack.c.h.b16 %v2021
    %v2300 = vunpack.c.l.b16 %v2022
    %v2301 = vunpack.c.h.b16 %v2022
    %v2302 = vunpack.c.l.b16 %v2023
    %v2303 = vunpack.c.h.b16 %v2023
    %v2304 = vunpack.c.l.b16 %v2024
    %v2305 = vunpack.c.h.b16 %v2024
    %v2306 = vunpack.c.l.b16 %v2025
    %v2307 = vunpack.c.h.b16 %v2025
    %v2308 = vunpack.c.l.b16 %v2026
    %v2309 = vunpack.c.h.b16 %v2026
    %v2310 = vunpack.c.l.b16 %v2027
    %v2311 = vunpack.c.h.b16 %v2027
    %v2312 = vunpack.c.l.b16 %v2028
    %v2313 = vunpack.c.h.b16 %v2028
    %v2314 = vunpack.c.l.b16 %v2029
    %v2315 = vunpack.c.h.b16 %v2029
    %v2316 = vunpack.c.l.b16 %v2030
    %v2317 = vunpack.c.h.b16 %v2030
    %v2318 = vunpack.c.l.b16 %v2031
    %v2319 = vunpack.c.h.b16 %v2031
    %v2320 = vunpack.c.l.b16 %v2032
    %v2321 = vunpack.c.h.b16 %v2032
    %v2322 = vunpack.c.l.b16 %v2033
    %v2323 = vunpack.c.h.b16 %v2033
    %v2324 = vunpack.c.l.b16 %v2034
    %v2325 = vunpack.c.h.b16 %v2034
    %v2326 = vunpack.c.l.b16 %v2035
    %v2327 = vunpack.c.h.b16 %v2035
    %v2328 = vunpack.c.l.b16 %v2036
    %v2329 = vunpack.c.h.b16 %v2036
    %v2330 = vunpack.c.l.b16 %v2037
    %v2331 = vunpack.c.h.b16 %v2037
    %v2332 = vunpack.c.l.b16 %v2038
    %v2333 = vunpack.c.h.b16 %v2038
    %v2334 = vunpack.c.l.b16 %v2039
    %v2335 = vunpack.c.h.b16 %v2039
    %v2336 = vunpack.c.l.b16 %v2040
    %v2337 = vunpack.c.h.b16 %v2040
    %v2338 = vunpack.c.l.b16 %v2041
    %v2339 = vunpack.c.h.b16 %v2041
    %v2340 = vunpack.c.l.b16 %v2042
    %v2341 = vunpack.c.h.b16 %v2042
    %v2342 = vunpack.c.l.b16 %v2043
    %v2343 = vunpack.c.h.b16 %v2043
    %v2344 = vunpack.c.l.b16 %v2044
    %v2345 = vunpack.c.h.b16 %v2044
    %v2346 = vunpack.c.l.b16 %v2045
    %v2347 = vunpack.c.h.b16 %v2045
    %v2348 = vunpack.c.l.b16 %v2046
    %v2349 = vunpack.c.h.b16 %v2046
    %v2350 = vunpack.c.l.b16 %v2047
    %v2351 = vunpack.c.h.b16 %v2047
    %v2352 = vunpack.c.l.b16 %v2048
    %v2353 = vunpack.c.h.b16 %v2048
    %v2354 = vunpack.c.l.b16 %v2049
    %v2355 = vunpack.c.h.b16 %v2049
    %v2356 = vunpack.c.l.b16 %v2050
    %v2357 = vunpack.c.h.b16 %v2050
    %v2358 = vunpack.c.l.b16 %v2051
    %v2359 = vunpack.c.h.b16 %v2051
    %v2360 = vunpack.c.l.b16 %v2052
    %v2361 = vunpack.c.h.b16 %v2052
    %v2362 = vunpack.c.l.b16 %v2053
    %v2363 = vunpack.c.h.b16 %v2053
    %v2364 = vunpack.c.l.b16 %v2054
    %v2365 = vunpack.c.h.b16 %v2054
    %v2366 = vunpack.c.l.b16 %v2055
    %v2367 = vunpack.c.h.b16 %v2055
    %v2368 = vunpack.c.l.b16 %v2056
    %v2369 = vunpack.c.h.b16 %v2056
    %v2370 = vunpack.c.l.b16 %v2057
    %v2371 = vunpack.c.h.b16 %v2057
    %v2372 = vunpack.c.l.b16 %v2058
    %v2373 = vunpack.c.h.b16 %v2058
    %v2374 = vunpack.c.l.b16 %v2059
    %v2375 = vunpack.c.h.b16 %v2059
    %v2376 = vunpack.c.l.b16 %v2060
    %v2377 = vunpack.c.h.b16 %v2060
    %v2378 = vunpack.c.l.b16 %v2061
    %v2379 = vunpack.c.h.b16 %v2061
    %v2380 = vunpack.c.l.b16 %v2062
    %v2381 = vunpack.c.h.b16 %v2062
    %v2382 = vunpack.c.l.b16 %v2063
    %v2383 = vunpack.c.h.b16 %v2063
    %v2384 = vunpack.c.l.b16 %v2064
    %v2385 = vunpack.c.h.b16 %v2064
    %v2386 = vunpack.c.l.b16 %v2065
    %v2387 = vunpack.c.h.b16 %v2065
    %v2388 = vunpack.c.l.b16 %v2066
    %v2389 = vunpack.c.h.b16 %v2066
    %v2390 = vunpack.c.l.b16 %v2067
    %v2391 = vunpack.c.h.b16 %v2067
    %v2392 = vunpack.c.l.b16 %v2068
    %v2393 = vunpack.c.h.b16 %v2068
    %v2394 = vunpack.c.l.b16 %v2069
    %v2395 = vunpack.c.h.b16 %v2069
    %v2396 = vunpack.c.l.b16 %v2070
    %v2397 = vunpack.c.h.b16 %v2070
    %v2398 = vunpack.c.l.b16 %v2071
    %v2399 = vunpack.c.h.b16 %v2071
    %v2400 = vunpack.c.l.b16 %v2072
    %v2401 = vunpack.c.h.b16 %v2072
    %v2402 = vunpack.c.l.b16 %v2073
    %v2403 = vunpack.c.h.b16 %v2073
    %v2404 = vunpack.c.l.b16 %v2074
    %v2405 = vunpack.c.h.b16 %v2074
    %v2406 = vunpack.c.l.b16 %v2075
    %v2407 = vunpack.c.h.b16 %v2075
    %v2408 = vunpack.c.l.b16 %v2076
    %v2409 = vunpack.c.h.b16 %v2076
    %v2410 = vunpack.c.l.b16 %v2077
    %v2411 = vunpack.c.h.b16 %v2077
    %v2412 = vunpack.c.l.b16 %v2078
    %v2413 = vunpack.c.h.b16 %v2078
    %v2414 = vunpack.c.l.b16 %v2079
    %v2415 = vunpack.c.h.b16 %v2079
    %v2416 = vunpack.c.l.b16 %v2080
    %v2417 = vunpack.c.h.b16 %v2080
    %v2418 = vunpack.c.l.b16 %v2081
    %v2419 = vunpack.c.h.b16 %v2081
    %v2420 = vunpack.c.l.b16 %v2082
    %v2421 = vunpack.c.h.b16 %v2082
    %v2422 = vunpack.c.l.b16 %v2083
    %v2423 = vunpack.c.h.b16 %v2083
    %v2424 = vunpack.c.l.b16 %v2084
    %v2425 = vunpack.c.h.b16 %v2084
    %v2426 = vunpack.c.l.b16 %v2085
    %v2427 = vunpack.c.h.b16 %v2085
    %v2428 = vunpack.c.l.b16 %v2086
    %v2429 = vunpack.c.h.b16 %v2086
    %v2430 = vunpack.c.l.b16 %v2087
    %v2431 = vunpack.c.h.b16 %v2087
    %v2432 = vunpack.c.l.b16 %v2088
    %v2433 = vunpack.c.h.b16 %v2088
    %v2434 = vunpack.c.l.b16 %v2089
    %v2435 = vunpack.c.h.b16 %v2089
    %v2436 = vunpack.c.l.b16 %v2090
    %v2437 = vunpack.c.h.b16 %v2090
    %v2438 = vunpack.c.l.b16 %v2091
    %v2439 = vunpack.c.h.b16 %v2091
    %v2440 = vunpack.c.l.b16 %v2092
    %v2441 = vunpack.c.h.b16 %v2092
    %v2442 = vunpack.c.l.b16 %v2093
    %v2443 = vunpack.c.h.b16 %v2093
    %v2444 = vunpack.c.l.b16 %v2094
    %v2445 = vunpack.c.h.b16 %v2094
    %v2446 = vunpack.c.l.b16 %v2095
    %v2447 = vunpack.c.h.b16 %v2095
    %v2448 = vunpack.c.l.b16 %v2096
    %v2449 = vunpack.c.h.b16 %v2096
    %v2450 = vunpack.c.l.b16 %v2097
    %v2451 = vunpack.c.h.b16 %v2097
    %v2452 = vunpack.c.l.b16 %v2098
    %v2453 = vunpack.c.h.b16 %v2098
    %v2454 = vunpack.c.l.b16 %v2099
    %v2455 = vunpack.c.h.b16 %v2099
    %v2456 = vunpack.c.l.b16 %v2100
    %v2457 = vunpack.c.h.b16 %v2100
    %v2458 = vunpack.c.l.b16 %v2101
    %v2459 = vunpack.c.h.b16 %v2101
    %v2460 = vunpack.c.l.b16 %v2102
    %v2461 = vunpack.c.h.b16 %v2102
    %v2462 = vunpack.c.l.b16 %v2103
    %v2463 = vunpack.c.h.b16 %v2103
    %v2464 = vunpack.c.l.b16 %v2104
    %v2465 = vunpack.c.h.b16 %v2104
    %v2466 = vunpack.c.l.b16 %v2105
    %v2467 = vunpack.c.h.b16 %v2105
    %v2468 = vunpack.c.l.b16 %v2106
    %v2469 = vunpack.c.h.b16 %v2106
    %v2470 = vunpack.c.l.b16 %v2107
    %v2471 = vunpack.c.h.b16 %v2107
    %v2472 = vunpack.c.l.b16 %v2108
    %v2473 = vunpack.c.h.b16 %v2108
    %v2474 = vunpack.c.l.b16 %v2109
    %v2475 = vunpack.c.h.b16 %v2109
    %v2476 = vunpack.c.l.b16 %v2110
    %v2477 = vunpack.c.h.b16 %v2110
    %v2478 = vunpack.c.l.b16 %v2111
    %v2479 = vunpack.c.h.b16 %v2111
    %v2480 = vunpack.c.l.b16 %v2112
    %v2481 = vunpack.c.h.b16 %v2112
    %v2482 = vunpack.c.l.b16 %v2113
    %v2483 = vunpack.c.h.b16 %v2113
    %v2484 = vunpack.c.l.b16 %v2114
    %v2485 = vunpack.c.h.b16 %v2114
    %v2486 = vunpack.c.l.b16 %v2115
    %v2487 = vunpack.c.h.b16 %v2115
    %v2488 = vunpack.c.l.b16 %v2116
    %v2489 = vunpack.c.h.b16 %v2116
    %v2490 = vunpack.c.l.b16 %v2117
    %v2491 = vunpack.c.h.b16 %v2117
    %v2492 = vunpack.c.l.b16 %v2118
    %v2493 = vunpack.c.h.b16 %v2118
    %v2494 = vunpack.c.l.b16 %v2119
    %v2495 = vunpack.c.h.b16 %v2119
    %v2496 = vunpack.c.l.b16 %v2120
    %v2497 = vunpack.c.h.b16 %v2120
    %v2498 = vunpack.c.l.b16 %v2121
    %v2499 = vunpack.c.h.b16 %v2121
    %v2500 = vunpack.c.l.b16 %v2122
    %v2501 = vunpack.c.h.b16 %v2122
    %v2502 = vunpack.c.l.b16 %v2123
    %v2503 = vunpack.c.h.b16 %v2123
    %v2504 = vunpack.c.l.b16 %v2124
    %v2505 = vunpack.c.h.b16 %v2124
    %v2506 = vunpack.c.l.b16 %v2125
    %v2507 = vunpack.c.h.b16 %v2125
    %v2508 = vpack.c.b16 %v2272, %v2268
    %v2509 = vpack.c.b16 %v2273, %v2269
    %v2510 = vpack.c.b16 %v2274, %v2270
    %v2511 = vpack.c.b16 %v2275, %v2271
    %v2512 = vpack.c.b16 %v2280, %v2276
    %v2513 = vpack.c.b16 %v2281, %v2277
    %v2514 = vpack.c.b16 %v2282, %v2278
    %v2515 = vpack.c.b16 %v2283, %v2279
    %v2516 = vpack.c.b16 %v2288, %v2284
    %v2517 = vpack.c.b16 %v2289, %v2285
    %v2518 = vpack.c.b16 %v2290, %v2286
    %v2519 = vpack.c.b16 %v2291, %v2287
    %v2520 = vpack.c.b16 %v2296, %v2292
    %v2521 = vpack.c.b16 %v2297, %v2293
    %v2522 = vpack.c.b16 %v2298, %v2294
    %v2523 = vpack.c.b16 %v2299, %v2295
    %v2524 = vpack.c.b16 %v2304, %v2300
    %v2525 = vpack.c.b16 %v2305, %v2301
    %v2526 = vpack.c.b16 %v2306, %v2302
    %v2527 = vpack.c.b16 %v2307, %v2303
    %v2528 = vpack.c.b16 %v2312, %v2308
    %v2529 = vpack.c.b16 %v2313, %v2309
    %v2530 = vpack.c.b16 %v2314, %v2310
    %v2531 = vpack.c.b16 %v2315, %v2311
    %v2532 = vpack.c.b16 %v2320, %v2316
    %v2533 = vpack.c.b16 %v2321, %v2317
    %v2534 = vpack.c.b16 %v2322, %v2318
    %v2535 = vpack.c.b16 %v2323, %v2319
    %v2536 = vpack.c.b16 %v2328, %v2324
    %v2537 = vpack.c.b16 %v2329, %v2325
    %v2538 = vpack.c.b16 %v2330, %v2326
    %v2539 = vpack.c.b16 %v2331, %v2327
    %v2540 = vpack.c.b16 %v2336, %v2332
    %v2541 = vpack.c.b16 %v2337, %v2333
    %v2542 = vpack.c.b16 %v2338, %v2334
    %v2543 = vpack.c.b16 %v2339, %v2335
    %v2544 = vpack.c.b16 %v2344, %v2340
    %v2545 = vpack.c.b16 %v2345, %v2341
    %v2546 = vpack.c.b16 %v2346, %v2342
    %v2547 = vpack.c.b16 %v2347, %v2343
    %v2548 = vpack.c.b16 %v2352, %v2348
    %v2549 = vpack.c.b16 %v2353, %v2349
    %v2550 = vpack.c.b16 %v2354, %v2350
    %v2551 = vpack.c.b16 %v2355, %v2351
    %v2552 = vpack.c.b16 %v2360, %v2356
    %v2553 = vpack.c.b16 %v2361, %v2357
    %v2554 = vpack.c.b16 %v2362, %v2358
    %v2555 = vpack.c.b16 %v2363, %v2359
    %v2556 = vpack.c.b16 %v2368, %v2364
    %v2557 = vpack.c.b16 %v2369, %v2365
    %v2558 = vpack.c.b16 %v2370, %v2366
    %v2559 = vpack.c.b16 %v2371, %v2367
    %v2560 = vpack.c.b16 %v2376, %v2372
    %v2561 = vpack.c.b16 %v2377, %v2373
    %v2562 = vpack.c.b16 %v2378, %v2374
    %v2563 = vpack.c.b16 %v2379, %v2375
    %v2564 = vpack.c.b16 %v2384, %v2380
    %v2565 = vpack.c.b16 %v2385, %v2381
    %v2566 = vpack.c.b16 %v2386, %v2382
    %v2567 = vpack.c.b16 %v2387, %v2383
    %v2568 = vpack.c.b16 %v2392, %v2388
    %v2569 = vpack.c.b16 %v2393, %v2389
    %v2570 = vpack.c.b16 %v2394, %v2390
    %v2571 = vpack.c.b16 %v2395, %v2391
    %v2572 = vpack.c.b16 %v2400, %v2396
    %v2573 = vpack.c.b16 %v2401, %v2397
    %v2574 = vpack.c.b16 %v2402, %v2398
    %v2575 = vpack.c.b16 %v2403, %v2399
    %v2576 = vpack.c.b16 %v2408, %v2404
    %v2577 = vpack.c.b16 %v2409, %v2405
    %v2578 = vpack.c.b16 %v2410, %v2406
    %v2579 = vpack.c.b16 %v2411, %v2407
    %v2580 = vpack.c.b16 %v2416, %v2412
    %v2581 = vpack.c.b16 %v2417, %v2413
    %v2582 = vpack.c.b16 %v2418, %v2414
    %v2583 = vpack.c.b16 %v2419, %v2415
    %v2584 = vpack.c.b16 %v2424, %v2420
    %v2585 = vpack.c.b16 %v2425, %v2421
    %v2586 = vpack.c.b16 %v2426, %v2422
    %v2587 = vpack.c.b16 %v2427, %v2423
    %v2588 = vpack.c.b16 %v2432, %v2428
    %v2589 = vpack.c.b16 %v2433, %v2429
    %v2590 = vpack.c.b16 %v2434, %v2430
    %v2591 = vpack.c.b16 %v2435, %v2431
    %v2592 = vpack.c.b16 %v2440, %v2436
    %v2593 = vpack.c.b16 %v2441, %v2437
    %v2594 = vpack.c.b16 %v2442, %v2438
    %v2595 = vpack.c.b16 %v2443, %v2439
    %v2596 = vpack.c.b16 %v2448, %v2444
    %v2597 = vpack.c.b16 %v2449, %v2445
    %v2598 = vpack.c.b16 %v2450, %v2446
    %v2599 = vpack.c.b16 %v2451, %v2447
    %v2600 = vpack.c.b16 %v2456, %v2452
    %v2601 = vpack.c.b16 %v2457, %v2453
    %v2602 = vpack.c.b16 %v2458, %v2454
    %v2603 = vpack.c.b16 %v2459, %v2455
    %v2604 = vpack.c.b16 %v2464, %v2460
    %v2605 = vpack.c.b16 %v2465, %v2461
    %v2606 = vpack.c.b16 %v2466, %v2462
    %v2607 = vpack.c.b16 %v2467, %v2463
    %v2608 = vpack.c.b16 %v2472, %v2468
    %v2609 = vpack.c.b16 %v2473, %v2469
    %v2610 = vpack.c.b16 %v2474, %v2470
    %v2611 = vpack.c.b16 %v2475, %v2471
    %v2612 = vpack.c.b16 %v2480, %v2476
    %v2613 = vpack.c.b16 %v2481, %v2477
    %v2614 = vpack.c.b16 %v2482, %v2478
    %v2615 = vpack.c.b16 %v2483, %v2479
    %v2616 = vpack.c.b16 %v2488, %v2484
    %v2617 = vpack.c.b16 %v2489, %v2485
    %v2618 = vpack.c.b16 %v2490, %v2486
    %v2619 = vpack.c.b16 %v2491, %v2487
    %v2620 = vpack.c.b16 %v2496, %v2492
    %v2621 = vpack.c.b16 %v2497, %v2493
    %v2622 = vpack.c.b16 %v2498, %v2494
    %v2623 = vpack.c.b16 %v2499, %v2495
    %v2624 = vpack.c.b16 %v2504, %v2500
    %v2625 = vpack.c.b16 %v2505, %v2501
    %v2626 = vpack.c.b16 %v2506, %v2502
    %v2627 = vpack.c.b16 %v2507, %v2503
    %v2749 = vsel %vm915, %v2005, 0
    %2751 = vmatprep.subr.bf16.mxu0 %v2537
    %2752 = vmatpush1.bf16.msra.mxu0 %v2536
    %2753 = vmatprep.subr.bf16.mxu0 %v2533
    %2754 = vmatpush1.bf16.msra.mxu0 %v2532
    %2755 = vmatprep.subr.bf16.mxu0 %v2529
    %2756 = vmatpush1.bf16.msra.mxu0 %v2528
    %2757 = vmatprep.subr.bf16.mxu0 %v2525
    %2758 = vmatpush1.bf16.msra.mxu0 %v2524
    %2759 = vmatprep.subr.bf16.mxu0 %v2521
    %2760 = vmatpush1.bf16.msra.mxu0 %v2520
    %2761 = vmatprep.subr.bf16.mxu0 %v2517
    %2762 = vmatpush1.bf16.msra.mxu0 %v2516
    %2763 = vmatprep.subr.bf16.mxu0 %v2513
    %2764 = vmatpush1.bf16.msra.mxu0 %v2512
    %2765 = vmatprep.subr.bf16.mxu0 %v2509
    %2766 = vmatpush1.bf16.msra.mxu0 %v2508
    %2767 = vmatprep.subr.bf16.mxu0 %v2569
    %2768 = vmatpush2.bf16.msra.mxu0 %v2568
    %2769 = vmatprep.subr.bf16.mxu0 %v2565
    %2770 = vmatpush2.bf16.msra.mxu0 %v2564
    %2771 = vmatprep.subr.bf16.mxu0 %v2561
    %2772 = vmatpush2.bf16.msra.mxu0 %v2560
    %2773 = vmatprep.subr.bf16.mxu0 %v2557
    %2774 = vmatpush2.bf16.msra.mxu0 %v2556
    %2775 = vmatprep.subr.bf16.mxu0 %v2553
    %2776 = vmatpush2.bf16.msra.mxu0 %v2552
    %2777 = vmatprep.subr.bf16.mxu0 %v2549
    %2778 = vmatpush2.bf16.msra.mxu0 %v2548
    %2779 = vmatprep.subr.bf16.mxu0 %v2545
    %2780 = vmatpush2.bf16.msra.mxu0 %v2544
    %2781 = vmatprep.subr.bf16.mxu0 %v2541
    %2782 = vmatpush2.bf16.msra.mxu0 %v2540
    %2783 = vmatprep.mubr.bf16.mxu0 %v2003
    %2784 = vmatmul.mubr.bf16.gmra.mxu0 %v2002
    %v2785 = vpop.f32.mrf.mxu0
    %v2786 = vadd.f32 %v2131, %v2785
    %v2787 = vpop.f32.mrf.mxu0
    %v2788 = vadd.f32 %v2135, %v2787
    %v2789 = vpop.f32.mrf.mxu0
    %v2790 = vpop.f32.mrf.mxu0
    %2791 = vdwg.mxu0
    %2792 = vmatprep.subr.bf16.mxu0 %v2601
    %2793 = vmatpush1.bf16.msra.mxu0 %v2600
    %2794 = vmatprep.subr.bf16.mxu0 %v2597
    %2795 = vmatpush1.bf16.msra.mxu0 %v2596
    %2796 = vmatprep.subr.bf16.mxu0 %v2593
    %2797 = vmatpush1.bf16.msra.mxu0 %v2592
    %2798 = vmatprep.subr.bf16.mxu0 %v2589
    %2799 = vmatpush1.bf16.msra.mxu0 %v2588
    %2800 = vmatprep.subr.bf16.mxu0 %v2585
    %2801 = vmatpush1.bf16.msra.mxu0 %v2584
    %2802 = vmatprep.subr.bf16.mxu0 %v2581
    %2803 = vmatpush1.bf16.msra.mxu0 %v2580
    %2804 = vmatprep.subr.bf16.mxu0 %v2577
    %2805 = vmatpush1.bf16.msra.mxu0 %v2576
    %2806 = vmatprep.subr.bf16.mxu0 %v2573
    %2807 = vmatpush1.bf16.msra.mxu0 %v2572
    %2808 = vmatprep.subr.bf16.mxu0 0
    %2809 = vmatpush2.bf16.msra.mxu0 0
    %2810 = vmatprep.subr.bf16.mxu0 0
    %2811 = vmatpush2.bf16.msra.mxu0 0
    %2812 = vmatprep.subr.bf16.mxu0 %v2625
    %2813 = vmatpush2.bf16.msra.mxu0 %v2624
    %2814 = vmatprep.subr.bf16.mxu0 %v2621
    %2815 = vmatpush2.bf16.msra.mxu0 %v2620
    %2816 = vmatprep.subr.bf16.mxu0 %v2617
    %2817 = vmatpush2.bf16.msra.mxu0 %v2616
    %2818 = vmatprep.subr.bf16.mxu0 %v2613
    %2819 = vmatpush2.bf16.msra.mxu0 %v2612
    %2820 = vmatprep.subr.bf16.mxu0 %v2609
    %2821 = vmatpush2.bf16.msra.mxu0 %v2608
    %2822 = vmatprep.subr.bf16.mxu0 %v2605
    %2823 = vmatpush2.bf16.msra.mxu0 %v2604
    %2824 = vmatprep.mubr.bf16.mxu0 %v2749
    %2825 = vmatmul.mubr.bf16.gmra.mxu0 %v2004
    %v2826 = vpop.f32.mrf.mxu0
    %v2827 = vadd.f32 %v2786, %v2826
    %v2828 = vpop.f32.mrf.mxu0
    %v2829 = vadd.f32 %v2788, %v2828
    %v2830 = vpop.f32.mrf.mxu0
    %v2831 = vpop.f32.mrf.mxu0
    %2832 = vdwg.mxu0
    %2833 = vmatprep.subr.bf16.mxu0 %v2539
    %2834 = vmatpush1.bf16.msra.mxu0 %v2538
    %2835 = vmatprep.subr.bf16.mxu0 %v2535
    %2836 = vmatpush1.bf16.msra.mxu0 %v2534
    %2837 = vmatprep.subr.bf16.mxu0 %v2531
    %2838 = vmatpush1.bf16.msra.mxu0 %v2530
    %2839 = vmatprep.subr.bf16.mxu0 %v2527
    %2840 = vmatpush1.bf16.msra.mxu0 %v2526
    %2841 = vmatprep.subr.bf16.mxu0 %v2523
    %2842 = vmatpush1.bf16.msra.mxu0 %v2522
    %2843 = vmatprep.subr.bf16.mxu0 %v2519
    %2844 = vmatpush1.bf16.msra.mxu0 %v2518
    %2845 = vmatprep.subr.bf16.mxu0 %v2515
    %2846 = vmatpush1.bf16.msra.mxu0 %v2514
    %2847 = vmatprep.subr.bf16.mxu0 %v2511
    %2848 = vmatpush1.bf16.msra.mxu0 %v2510
    %2849 = vmatprep.subr.bf16.mxu0 %v2571
    %2850 = vmatpush2.bf16.msra.mxu0 %v2570
    %2851 = vmatprep.subr.bf16.mxu0 %v2567
    %2852 = vmatpush2.bf16.msra.mxu0 %v2566
    %2853 = vmatprep.subr.bf16.mxu0 %v2563
    %2854 = vmatpush2.bf16.msra.mxu0 %v2562
    %2855 = vmatprep.subr.bf16.mxu0 %v2559
    %2856 = vmatpush2.bf16.msra.mxu0 %v2558
    %2857 = vmatprep.subr.bf16.mxu0 %v2555
    %2858 = vmatpush2.bf16.msra.mxu0 %v2554
    %2859 = vmatprep.subr.bf16.mxu0 %v2551
    %2860 = vmatpush2.bf16.msra.mxu0 %v2550
    %2861 = vmatprep.subr.bf16.mxu0 %v2547
    %2862 = vmatpush2.bf16.msra.mxu0 %v2546
    %2863 = vmatprep.subr.bf16.mxu0 %v2543
    %2864 = vmatpush2.bf16.msra.mxu0 %v2542
    %2865 = vmatprep.mubr.bf16.mxu0 %v2003
    %2866 = vmatmul.mubr.bf16.gmra.mxu0 %v2002
    %v2867 = vpop.f32.mrf.mxu0
    %v2868 = vadd.f32 %v2139, %v2867
    %v2869 = vpop.f32.mrf.mxu0
    %v2870 = vadd.f32 %v2143, %v2869
    %v2871 = vpop.f32.mrf.mxu0
    %v2872 = vpop.f32.mrf.mxu0
    %2873 = vdwg.mxu0
    %2874 = vmatprep.subr.bf16.mxu0 %v2603
    %2875 = vmatpush1.bf16.msra.mxu0 %v2602
    %2876 = vmatprep.subr.bf16.mxu0 %v2599
    %2877 = vmatpush1.bf16.msra.mxu0 %v2598
    %2878 = vmatprep.subr.bf16.mxu0 %v2595
    %2879 = vmatpush1.bf16.msra.mxu0 %v2594
    %2880 = vmatprep.subr.bf16.mxu0 %v2591
    %2881 = vmatpush1.bf16.msra.mxu0 %v2590
    %2882 = vmatprep.subr.bf16.mxu0 %v2587
    %2883 = vmatpush1.bf16.msra.mxu0 %v2586
    %2884 = vmatprep.subr.bf16.mxu0 %v2583
    %2885 = vmatpush1.bf16.msra.mxu0 %v2582
    %2886 = vmatprep.subr.bf16.mxu0 %v2579
    %2887 = vmatpush1.bf16.msra.mxu0 %v2578
    %2888 = vmatprep.subr.bf16.mxu0 %v2575
    %2889 = vmatpush1.bf16.msra.mxu0 %v2574
    %2890 = vmatprep.subr.bf16.mxu0 0
    %2891 = vmatpush2.bf16.msra.mxu0 0
    %2892 = vmatprep.subr.bf16.mxu0 0
    %2893 = vmatpush2.bf16.msra.mxu0 0
    %2894 = vmatprep.subr.bf16.mxu0 %v2627
    %2895 = vmatpush2.bf16.msra.mxu0 %v2626
    %2896 = vmatprep.subr.bf16.mxu0 %v2623
    %2897 = vmatpush2.bf16.msra.mxu0 %v2622
    %2898 = vmatprep.subr.bf16.mxu0 %v2619
    %2899 = vmatpush2.bf16.msra.mxu0 %v2618
    %2900 = vmatprep.subr.bf16.mxu0 %v2615
    %2901 = vmatpush2.bf16.msra.mxu0 %v2614
    %2902 = vmatprep.subr.bf16.mxu0 %v2611
    %2903 = vmatpush2.bf16.msra.mxu0 %v2610
    %2904 = vmatprep.subr.bf16.mxu0 %v2607
    %2905 = vmatpush2.bf16.msra.mxu0 %v2606
    %2906 = vmatprep.mubr.bf16.mxu0 %v2749
    %2907 = vmatmul.mubr.bf16.gmra.mxu0 %v2004
    %v2908 = vpop.f32.mrf.mxu0
    %v2909 = vadd.f32 %v2868, %v2908
    %v2910 = vpop.f32.mrf.mxu0
    %v2911 = vadd.f32 %v2870, %v2910
    %v2912 = vpop.f32.mrf.mxu0
    %v2913 = vpop.f32.mrf.mxu0
    %2914 = vdwg.mxu0
    %v2915 = vpack.c.bf16 %v2827, %v2827
    %v2916 = vpack.c.bf16 %v2829, %v2829
    %v2917 = vpack.c.bf16 %v2909, %v2909
    %v2918 = vpack.c.bf16 %v2911, %v2911
    %s2919 = sshll.u32 %s1084, 4
    %2920 = dma.done %s111, %s2919
    %v2921 = vld [vmem:[#allocation4] sm:$0xff]
    %v2922 = vld [vmem:[#allocation4 + $0x8] sm:$0xff]
    %v2923 = vld [vmem:[#allocation4 + $0x10] sm:$0xff]
    %v2924 = vld [vmem:[#allocation4 + $0x18] sm:$0xff]
    %v2925 = vld [vmem:[#allocation4 + $0x20] sm:$0xff]
    %v2926 = vld [vmem:[#allocation4 + $0x28] sm:$0xff]
    %v2927 = vld [vmem:[#allocation4 + $0x30] sm:$0xff]
    %v2928 = vld [vmem:[#allocation4 + $0x38] sm:$0xff]
    %v2929 = vld [vmem:[#allocation4 + $0x40] sm:$0xff]
    %v2930 = vld [vmem:[#allocation4 + $0x48] sm:$0xff]
    %v2931 = vld [vmem:[#allocation4 + $0x50] sm:$0xff]
    %v2932 = vld [vmem:[#allocation4 + $0x58] sm:$0xff]
    %v2933 = vld [vmem:[#allocation4 + $0x60] sm:$0xff]
    %v2934 = vld [vmem:[#allocation4 + $0x68] sm:$0xff]
    %v2935 = vld [vmem:[#allocation4 + $0x70] sm:$0xff]
    %v2936 = vld [vmem:[#allocation4 + $0x78] sm:$0xff]
    %v2937 = vld [vmem:[#allocation4 + $0x80] sm:$0xff]
    %v2938 = vld [vmem:[#allocation4 + $0x88] sm:$0xff]
    %v2939 = vld [vmem:[#allocation4 + $0x90] sm:$0xff]
    %v2940 = vld [vmem:[#allocation4 + $0x98] sm:$0xff]
    %v2941 = vld [vmem:[#allocation4 + $0xa0] sm:$0xff]
    %v2942 = vld [vmem:[#allocation4 + $0xa8] sm:$0xff]
    %v2943 = vld [vmem:[#allocation4 + $0xb0] sm:$0xff]
    %v2944 = vld [vmem:[#allocation4 + $0xb8] sm:$0xff]
    %v2945 = vld [vmem:[#allocation4 + $0xc0] sm:$0xff]
    %v2946 = vld [vmem:[#allocation4 + $0xc8] sm:$0xff]
    %v2947 = vld [vmem:[#allocation4 + $0xd0] sm:$0xff]
    %v2948 = vld [vmem:[#allocation4 + $0xd8] sm:$0xff]
    %v2949 = vld [vmem:[#allocation4 + $0xe0] sm:$0xff]
    %v2950 = vld [vmem:[#allocation4 + $0xe8] sm:$0xff]
    %v2951 = vld [vmem:[#allocation4 + $0xf0] sm:$0xff]
    %v2952 = vld [vmem:[#allocation4 + $0xf8] sm:$0xff]
    %v2953 = vld [vmem:[#allocation4 + $0x100] sm:$0xff]
    %v2954 = vld [vmem:[#allocation4 + $0x108] sm:$0xff]
    %v2955 = vld [vmem:[#allocation4 + $0x110] sm:$0xff]
    %v2956 = vld [vmem:[#allocation4 + $0x118] sm:$0xff]
    %v2957 = vld [vmem:[#allocation4 + $0x120] sm:$0xff]
    %v2958 = vld [vmem:[#allocation4 + $0x128] sm:$0xff]
    %v2959 = vld [vmem:[#allocation4 + $0x130] sm:$0xff]
    %v2960 = vld [vmem:[#allocation4 + $0x138] sm:$0xff]
    %v2961 = vld [vmem:[#allocation4 + $0x140] sm:$0xff]
    %v2962 = vld [vmem:[#allocation4 + $0x148] sm:$0xff]
    %v2963 = vld [vmem:[#allocation4 + $0x150] sm:$0xff]
    %v2964 = vld [vmem:[#allocation4 + $0x158] sm:$0xff]
    %v2965 = vld [vmem:[#allocation4 + $0x160] sm:$0xff]
    %v2966 = vld [vmem:[#allocation4 + $0x168] sm:$0xff]
    %v2967 = vld [vmem:[#allocation4 + $0x170] sm:$0xff]
    %v2968 = vld [vmem:[#allocation4 + $0x178] sm:$0xff]
    %v2969 = vld [vmem:[#allocation4 + $0x180] sm:$0xff]
    %v2970 = vld [vmem:[#allocation4 + $0x188] sm:$0xff]
    %v2971 = vld [vmem:[#allocation4 + $0x190] sm:$0xff]
    %v2972 = vld [vmem:[#allocation4 + $0x198] sm:$0xff]
    %v2973 = vld [vmem:[#allocation4 + $0x1a0] sm:$0xff]
    %v2974 = vld [vmem:[#allocation4 + $0x1a8] sm:$0xff]
    %v2975 = vld [vmem:[#allocation4 + $0x1b0] sm:$0xff]
    %v2976 = vld [vmem:[#allocation4 + $0x1b8] sm:$0xff]
    %v2977 = vld [vmem:[#allocation4 + $0x1c0] sm:$0xff]
    %v2978 = vld [vmem:[#allocation4 + $0x1c8] sm:$0xff]
    %v2979 = vld [vmem:[#allocation4 + $0x1d0] sm:$0xff]
    %v2980 = vld [vmem:[#allocation4 + $0x1d8] sm:$0xff]
    %v2981 = vld [vmem:[#allocation4 + $0x1e0] sm:$0xff]
    %v2982 = vld [vmem:[#allocation4 + $0x1e8] sm:$0xff]
    %v2983 = vld [vmem:[#allocation4 + $0x1f0] sm:$0xff]
    %v2984 = vld [vmem:[#allocation4 + $0x1f8] sm:$0xff]
    %v2985 = vld [vmem:[#allocation4 + $0x200] sm:$0xff]
    %v2986 = vld [vmem:[#allocation4 + $0x208] sm:$0xff]
    %v2987 = vld [vmem:[#allocation4 + $0x210] sm:$0xff]
    %v2988 = vld [vmem:[#allocation4 + $0x218] sm:$0xff]
    %v2989 = vld [vmem:[#allocation4 + $0x220] sm:$0xff]
    %v2990 = vld [vmem:[#allocation4 + $0x228] sm:$0xff]
    %v2991 = vld [vmem:[#allocation4 + $0x230] sm:$0xff]
    %v2992 = vld [vmem:[#allocation4 + $0x238] sm:$0xff]
    %v2993 = vld [vmem:[#allocation4 + $0x240] sm:$0xff]
    %v2994 = vld [vmem:[#allocation4 + $0x248] sm:$0xff]
    %v2995 = vld [vmem:[#allocation4 + $0x250] sm:$0xff]
    %v2996 = vld [vmem:[#allocation4 + $0x258] sm:$0xff]
    %v2997 = vld [vmem:[#allocation4 + $0x260] sm:$0xff]
    %v2998 = vld [vmem:[#allocation4 + $0x268] sm:$0xff]
    %v2999 = vld [vmem:[#allocation4 + $0x270] sm:$0xff]
    %v3000 = vld [vmem:[#allocation4 + $0x278] sm:$0xff]
    %v3001 = vld [vmem:[#allocation4 + $0x280] sm:$0xff]
    %v3002 = vld [vmem:[#allocation4 + $0x288] sm:$0xff]
    %v3003 = vld [vmem:[#allocation4 + $0x290] sm:$0xff]
    %v3004 = vld [vmem:[#allocation4 + $0x298] sm:$0xff]
    %v3005 = vld [vmem:[#allocation4 + $0x2a0] sm:$0xff]
    %v3006 = vld [vmem:[#allocation4 + $0x2a8] sm:$0xff]
    %v3007 = vld [vmem:[#allocation4 + $0x2b0] sm:$0xff]
    %v3008 = vld [vmem:[#allocation4 + $0x2b8] sm:$0xff]
    %v3009 = vld [vmem:[#allocation4 + $0x2c0] sm:$0xff]
    %v3010 = vld [vmem:[#allocation4 + $0x2c8] sm:$0xff]
    %v3011 = vld [vmem:[#allocation4 + $0x2d0] sm:$0xff]
    %v3012 = vld [vmem:[#allocation4 + $0x2d8] sm:$0xff]
    %v3013 = vld [vmem:[#allocation4 + $0x2e0] sm:$0xff]
    %v3014 = vld [vmem:[#allocation4 + $0x2e8] sm:$0xff]
    %v3015 = vld [vmem:[#allocation4 + $0x2f0] sm:$0xff]
    %v3016 = vld [vmem:[#allocation4 + $0x2f8] sm:$0xff]
    %v3017 = vld [vmem:[#allocation4 + $0x300] sm:$0xff]
    %v3018 = vld [vmem:[#allocation4 + $0x308] sm:$0xff]
    %v3019 = vld [vmem:[#allocation4 + $0x310] sm:$0xff]
    %v3020 = vld [vmem:[#allocation4 + $0x318] sm:$0xff]
    %v3021 = vld [vmem:[#allocation4 + $0x320] sm:$0xff]
    %v3022 = vld [vmem:[#allocation4 + $0x328] sm:$0xff]
    %v3023 = vld [vmem:[#allocation4 + $0x330] sm:$0xff]
    %v3024 = vld [vmem:[#allocation4 + $0x338] sm:$0xff]
    %v3025 = vld [vmem:[#allocation4 + $0x340] sm:$0xff]
    %v3026 = vld [vmem:[#allocation4 + $0x348] sm:$0xff]
    %v3027 = vld [vmem:[#allocation4 + $0x350] sm:$0xff]
    %v3028 = vld [vmem:[#allocation4 + $0x358] sm:$0xff]
    %v3029 = vld [vmem:[#allocation4 + $0x360] sm:$0xff]
    %v3030 = vld [vmem:[#allocation4 + $0x368] sm:$0xff]
    %v3031 = vld [vmem:[#allocation4 + $0x370] sm:$0xff]
    %v3032 = vld [vmem:[#allocation4 + $0x378] sm:$0xff]
    %v3033 = vld [vmem:[#allocation4 + $0x380] sm:$0xff]
    %v3034 = vld [vmem:[#allocation4 + $0x388] sm:$0xff]
    %v3035 = vld [vmem:[#allocation4 + $0x390] sm:$0xff]
    %v3036 = vld [vmem:[#allocation4 + $0x398] sm:$0xff]
    %v3037 = vld [vmem:[#allocation4 + $0x3a0] sm:$0xff]
    %v3038 = vld [vmem:[#allocation4 + $0x3a8] sm:$0xff]
    %v3039 = vld [vmem:[#allocation4 + $0x3b0] sm:$0xff]
    %v3040 = vld [vmem:[#allocation4 + $0x3b8] sm:$0xff]
    %v3161 = vunpack.c.l.b16 %v2921
    %v3162 = vunpack.c.h.b16 %v2921
    %v3163 = vunpack.c.l.b16 %v2922
    %v3164 = vunpack.c.h.b16 %v2922
    %v3165 = vunpack.c.l.b16 %v2923
    %v3166 = vunpack.c.h.b16 %v2923
    %v3167 = vunpack.c.l.b16 %v2924
    %v3168 = vunpack.c.h.b16 %v2924
    %v3169 = vunpack.c.l.b16 %v2925
    %v3170 = vunpack.c.h.b16 %v2925
    %v3171 = vunpack.c.l.b16 %v2926
    %v3172 = vunpack.c.h.b16 %v2926
    %v3173 = vunpack.c.l.b16 %v2927
    %v3174 = vunpack.c.h.b16 %v2927
    %v3175 = vunpack.c.l.b16 %v2928
    %v3176 = vunpack.c.h.b16 %v2928
    %v3177 = vunpack.c.l.b16 %v2929
    %v3178 = vunpack.c.h.b16 %v2929
    %v3179 = vunpack.c.l.b16 %v2930
    %v3180 = vunpack.c.h.b16 %v2930
    %v3181 = vunpack.c.l.b16 %v2931
    %v3182 = vunpack.c.h.b16 %v2931
    %v3183 = vunpack.c.l.b16 %v2932
    %v3184 = vunpack.c.h.b16 %v2932
    %v3185 = vunpack.c.l.b16 %v2933
    %v3186 = vunpack.c.h.b16 %v2933
    %v3187 = vunpack.c.l.b16 %v2934
    %v3188 = vunpack.c.h.b16 %v2934
    %v3189 = vunpack.c.l.b16 %v2935
    %v3190 = vunpack.c.h.b16 %v2935
    %v3191 = vunpack.c.l.b16 %v2936
    %v3192 = vunpack.c.h.b16 %v2936
    %v3193 = vunpack.c.l.b16 %v2937
    %v3194 = vunpack.c.h.b16 %v2937
    %v3195 = vunpack.c.l.b16 %v2938
    %v3196 = vunpack.c.h.b16 %v2938
    %v3197 = vunpack.c.l.b16 %v2939
    %v3198 = vunpack.c.h.b16 %v2939
    %v3199 = vunpack.c.l.b16 %v2940
    %v3200 = vunpack.c.h.b16 %v2940
    %v3201 = vunpack.c.l.b16 %v2941
    %v3202 = vunpack.c.h.b16 %v2941
    %v3203 = vunpack.c.l.b16 %v2942
    %v3204 = vunpack.c.h.b16 %v2942
    %v3205 = vunpack.c.l.b16 %v2943
    %v3206 = vunpack.c.h.b16 %v2943
    %v3207 = vunpack.c.l.b16 %v2944
    %v3208 = vunpack.c.h.b16 %v2944
    %v3209 = vunpack.c.l.b16 %v2945
    %v3210 = vunpack.c.h.b16 %v2945
    %v3211 = vunpack.c.l.b16 %v2946
    %v3212 = vunpack.c.h.b16 %v2946
    %v3213 = vunpack.c.l.b16 %v2947
    %v3214 = vunpack.c.h.b16 %v2947
    %v3215 = vunpack.c.l.b16 %v2948
    %v3216 = vunpack.c.h.b16 %v2948
    %v3217 = vunpack.c.l.b16 %v2949
    %v3218 = vunpack.c.h.b16 %v2949
    %v3219 = vunpack.c.l.b16 %v2950
    %v3220 = vunpack.c.h.b16 %v2950
    %v3221 = vunpack.c.l.b16 %v2951
    %v3222 = vunpack.c.h.b16 %v2951
    %v3223 = vunpack.c.l.b16 %v2952
    %v3224 = vunpack.c.h.b16 %v2952
    %v3225 = vunpack.c.l.b16 %v2953
    %v3226 = vunpack.c.h.b16 %v2953
    %v3227 = vunpack.c.l.b16 %v2954
    %v3228 = vunpack.c.h.b16 %v2954
    %v3229 = vunpack.c.l.b16 %v2955
    %v3230 = vunpack.c.h.b16 %v2955
    %v3231 = vunpack.c.l.b16 %v2956
    %v3232 = vunpack.c.h.b16 %v2956
    %v3233 = vunpack.c.l.b16 %v2957
    %v3234 = vunpack.c.h.b16 %v2957
    %v3235 = vunpack.c.l.b16 %v2958
    %v3236 = vunpack.c.h.b16 %v2958
    %v3237 = vunpack.c.l.b16 %v2959
    %v3238 = vunpack.c.h.b16 %v2959
    %v3239 = vunpack.c.l.b16 %v2960
    %v3240 = vunpack.c.h.b16 %v2960
    %v3241 = vunpack.c.l.b16 %v2961
    %v3242 = vunpack.c.h.b16 %v2961
    %v3243 = vunpack.c.l.b16 %v2962
    %v3244 = vunpack.c.h.b16 %v2962
    %v3245 = vunpack.c.l.b16 %v2963
    %v3246 = vunpack.c.h.b16 %v2963
    %v3247 = vunpack.c.l.b16 %v2964
    %v3248 = vunpack.c.h.b16 %v2964
    %v3249 = vunpack.c.l.b16 %v2965
    %v3250 = vunpack.c.h.b16 %v2965
    %v3251 = vunpack.c.l.b16 %v2966
    %v3252 = vunpack.c.h.b16 %v2966
    %v3253 = vunpack.c.l.b16 %v2967
    %v3254 = vunpack.c.h.b16 %v2967
    %v3255 = vunpack.c.l.b16 %v2968
    %v3256 = vunpack.c.h.b16 %v2968
    %v3257 = vunpack.c.l.b16 %v2969
    %v3258 = vunpack.c.h.b16 %v2969
    %v3259 = vunpack.c.l.b16 %v2970
    %v3260 = vunpack.c.h.b16 %v2970
    %v3261 = vunpack.c.l.b16 %v2971
    %v3262 = vunpack.c.h.b16 %v2971
    %v3263 = vunpack.c.l.b16 %v2972
    %v3264 = vunpack.c.h.b16 %v2972
    %v3265 = vunpack.c.l.b16 %v2973
    %v3266 = vunpack.c.h.b16 %v2973
    %v3267 = vunpack.c.l.b16 %v2974
    %v3268 = vunpack.c.h.b16 %v2974
    %v3269 = vunpack.c.l.b16 %v2975
    %v3270 = vunpack.c.h.b16 %v2975
    %v3271 = vunpack.c.l.b16 %v2976
    %v3272 = vunpack.c.h.b16 %v2976
    %v3273 = vunpack.c.l.b16 %v2977
    %v3274 = vunpack.c.h.b16 %v2977
    %v3275 = vunpack.c.l.b16 %v2978
    %v3276 = vunpack.c.h.b16 %v2978
    %v3277 = vunpack.c.l.b16 %v2979
    %v3278 = vunpack.c.h.b16 %v2979
    %v3279 = vunpack.c.l.b16 %v2980
    %v3280 = vunpack.c.h.b16 %v2980
    %v3281 = vunpack.c.l.b16 %v2981
    %v3282 = vunpack.c.h.b16 %v2981
    %v3283 = vunpack.c.l.b16 %v2982
    %v3284 = vunpack.c.h.b16 %v2982
    %v3285 = vunpack.c.l.b16 %v2983
    %v3286 = vunpack.c.h.b16 %v2983
    %v3287 = vunpack.c.l.b16 %v2984
    %v3288 = vunpack.c.h.b16 %v2984
    %v3289 = vunpack.c.l.b16 %v2985
    %v3290 = vunpack.c.h.b16 %v2985
    %v3291 = vunpack.c.l.b16 %v2986
    %v3292 = vunpack.c.h.b16 %v2986
    %v3293 = vunpack.c.l.b16 %v2987
    %v3294 = vunpack.c.h.b16 %v2987
    %v3295 = vunpack.c.l.b16 %v2988
    %v3296 = vunpack.c.h.b16 %v2988
    %v3297 = vunpack.c.l.b16 %v2989
    %v3298 = vunpack.c.h.b16 %v2989
    %v3299 = vunpack.c.l.b16 %v2990
    %v3300 = vunpack.c.h.b16 %v2990
    %v3301 = vunpack.c.l.b16 %v2991
    %v3302 = vunpack.c.h.b16 %v2991
    %v3303 = vunpack.c.l.b16 %v2992
    %v3304 = vunpack.c.h.b16 %v2992
    %v3305 = vunpack.c.l.b16 %v2993
    %v3306 = vunpack.c.h.b16 %v2993
    %v3307 = vunpack.c.l.b16 %v2994
    %v3308 = vunpack.c.h.b16 %v2994
    %v3309 = vunpack.c.l.b16 %v2995
    %v3310 = vunpack.c.h.b16 %v2995
    %v3311 = vunpack.c.l.b16 %v2996
    %v3312 = vunpack.c.h.b16 %v2996
    %v3313 = vunpack.c.l.b16 %v2997
    %v3314 = vunpack.c.h.b16 %v2997
    %v3315 = vunpack.c.l.b16 %v2998
    %v3316 = vunpack.c.h.b16 %v2998
    %v3317 = vunpack.c.l.b16 %v2999
    %v3318 = vunpack.c.h.b16 %v2999
    %v3319 = vunpack.c.l.b16 %v3000
    %v3320 = vunpack.c.h.b16 %v3000
    %v3321 = vunpack.c.l.b16 %v3001
    %v3322 = vunpack.c.h.b16 %v3001
    %v3323 = vunpack.c.l.b16 %v3002
    %v3324 = vunpack.c.h.b16 %v3002
    %v3325 = vunpack.c.l.b16 %v3003
    %v3326 = vunpack.c.h.b16 %v3003
    %v3327 = vunpack.c.l.b16 %v3004
    %v3328 = vunpack.c.h.b16 %v3004
    %v3329 = vunpack.c.l.b16 %v3005
    %v3330 = vunpack.c.h.b16 %v3005
    %v3331 = vunpack.c.l.b16 %v3006
    %v3332 = vunpack.c.h.b16 %v3006
    %v3333 = vunpack.c.l.b16 %v3007
    %v3334 = vunpack.c.h.b16 %v3007
    %v3335 = vunpack.c.l.b16 %v3008
    %v3336 = vunpack.c.h.b16 %v3008
    %v3337 = vunpack.c.l.b16 %v3009
    %v3338 = vunpack.c.h.b16 %v3009
    %v3339 = vunpack.c.l.b16 %v3010
    %v3340 = vunpack.c.h.b16 %v3010
    %v3341 = vunpack.c.l.b16 %v3011
    %v3342 = vunpack.c.h.b16 %v3011
    %v3343 = vunpack.c.l.b16 %v3012
    %v3344 = vunpack.c.h.b16 %v3012
    %v3345 = vunpack.c.l.b16 %v3013
    %v3346 = vunpack.c.h.b16 %v3013
    %v3347 = vunpack.c.l.b16 %v3014
    %v3348 = vunpack.c.h.b16 %v3014
    %v3349 = vunpack.c.l.b16 %v3015
    %v3350 = vunpack.c.h.b16 %v3015
    %v3351 = vunpack.c.l.b16 %v3016
    %v3352 = vunpack.c.h.b16 %v3016
    %v3353 = vunpack.c.l.b16 %v3017
    %v3354 = vunpack.c.h.b16 %v3017
    %v3355 = vunpack.c.l.b16 %v3018
    %v3356 = vunpack.c.h.b16 %v3018
    %v3357 = vunpack.c.l.b16 %v3019
    %v3358 = vunpack.c.h.b16 %v3019
    %v3359 = vunpack.c.l.b16 %v3020
    %v3360 = vunpack.c.h.b16 %v3020
    %v3361 = vunpack.c.l.b16 %v3021
    %v3362 = vunpack.c.h.b16 %v3021
    %v3363 = vunpack.c.l.b16 %v3022
    %v3364 = vunpack.c.h.b16 %v3022
    %v3365 = vunpack.c.l.b16 %v3023
    %v3366 = vunpack.c.h.b16 %v3023
    %v3367 = vunpack.c.l.b16 %v3024
    %v3368 = vunpack.c.h.b16 %v3024
    %v3369 = vunpack.c.l.b16 %v3025
    %v3370 = vunpack.c.h.b16 %v3025
    %v3371 = vunpack.c.l.b16 %v3026
    %v3372 = vunpack.c.h.b16 %v3026
    %v3373 = vunpack.c.l.b16 %v3027
    %v3374 = vunpack.c.h.b16 %v3027
    %v3375 = vunpack.c.l.b16 %v3028
    %v3376 = vunpack.c.h.b16 %v3028
    %v3377 = vunpack.c.l.b16 %v3029
    %v3378 = vunpack.c.h.b16 %v3029
    %v3379 = vunpack.c.l.b16 %v3030
    %v3380 = vunpack.c.h.b16 %v3030
    %v3381 = vunpack.c.l.b16 %v3031
    %v3382 = vunpack.c.h.b16 %v3031
    %v3383 = vunpack.c.l.b16 %v3032
    %v3384 = vunpack.c.h.b16 %v3032
    %v3385 = vunpack.c.l.b16 %v3033
    %v3386 = vunpack.c.h.b16 %v3033
    %v3387 = vunpack.c.l.b16 %v3034
    %v3388 = vunpack.c.h.b16 %v3034
    %v3389 = vunpack.c.l.b16 %v3035
    %v3390 = vunpack.c.h.b16 %v3035
    %v3391 = vunpack.c.l.b16 %v3036
    %v3392 = vunpack.c.h.b16 %v3036
    %v3393 = vunpack.c.l.b16 %v3037
    %v3394 = vunpack.c.h.b16 %v3037
    %v3395 = vunpack.c.l.b16 %v3038
    %v3396 = vunpack.c.h.b16 %v3038
    %v3397 = vunpack.c.l.b16 %v3039
    %v3398 = vunpack.c.h.b16 %v3039
    %v3399 = vunpack.c.l.b16 %v3040
    %v3400 = vunpack.c.h.b16 %v3040
    %v3401 = vpack.c.b16 %v3165, %v3161
    %v3402 = vpack.c.b16 %v3166, %v3162
    %v3403 = vpack.c.b16 %v3167, %v3163
    %v3404 = vpack.c.b16 %v3168, %v3164
    %v3405 = vpack.c.b16 %v3173, %v3169
    %v3406 = vpack.c.b16 %v3174, %v3170
    %v3407 = vpack.c.b16 %v3175, %v3171
    %v3408 = vpack.c.b16 %v3176, %v3172
    %v3409 = vpack.c.b16 %v3181, %v3177
    %v3410 = vpack.c.b16 %v3182, %v3178
    %v3411 = vpack.c.b16 %v3183, %v3179
    %v3412 = vpack.c.b16 %v3184, %v3180
    %v3413 = vpack.c.b16 %v3189, %v3185
    %v3414 = vpack.c.b16 %v3190, %v3186
    %v3415 = vpack.c.b16 %v3191, %v3187
    %v3416 = vpack.c.b16 %v3192, %v3188
    %v3417 = vpack.c.b16 %v3197, %v3193
    %v3418 = vpack.c.b16 %v3198, %v3194
    %v3419 = vpack.c.b16 %v3199, %v3195
    %v3420 = vpack.c.b16 %v3200, %v3196
    %v3421 = vpack.c.b16 %v3205, %v3201
    %v3422 = vpack.c.b16 %v3206, %v3202
    %v3423 = vpack.c.b16 %v3207, %v3203
    %v3424 = vpack.c.b16 %v3208, %v3204
    %v3425 = vpack.c.b16 %v3213, %v3209
    %v3426 = vpack.c.b16 %v3214, %v3210
    %v3427 = vpack.c.b16 %v3215, %v3211
    %v3428 = vpack.c.b16 %v3216, %v3212
    %v3429 = vpack.c.b16 %v3221, %v3217
    %v3430 = vpack.c.b16 %v3222, %v3218
    %v3431 = vpack.c.b16 %v3223, %v3219
    %v3432 = vpack.c.b16 %v3224, %v3220
    %v3433 = vpack.c.b16 %v3229, %v3225
    %v3434 = vpack.c.b16 %v3230, %v3226
    %v3435 = vpack.c.b16 %v3231, %v3227
    %v3436 = vpack.c.b16 %v3232, %v3228
    %v3437 = vpack.c.b16 %v3237, %v3233
    %v3438 = vpack.c.b16 %v3238, %v3234
    %v3439 = vpack.c.b16 %v3239, %v3235
    %v3440 = vpack.c.b16 %v3240, %v3236
    %v3441 = vpack.c.b16 %v3245, %v3241
    %v3442 = vpack.c.b16 %v3246, %v3242
    %v3443 = vpack.c.b16 %v3247, %v3243
    %v3444 = vpack.c.b16 %v3248, %v3244
    %v3445 = vpack.c.b16 %v3253, %v3249
    %v3446 = vpack.c.b16 %v3254, %v3250
    %v3447 = vpack.c.b16 %v3255, %v3251
    %v3448 = vpack.c.b16 %v3256, %v3252
    %v3449 = vpack.c.b16 %v3261, %v3257
    %v3450 = vpack.c.b16 %v3262, %v3258
    %v3451 = vpack.c.b16 %v3263, %v3259
    %v3452 = vpack.c.b16 %v3264, %v3260
    %v3453 = vpack.c.b16 %v3269, %v3265
    %v3454 = vpack.c.b16 %v3270, %v3266
    %v3455 = vpack.c.b16 %v3271, %v3267
    %v3456 = vpack.c.b16 %v3272, %v3268
    %v3457 = vpack.c.b16 %v3277, %v3273
    %v3458 = vpack.c.b16 %v3278, %v3274
    %v3459 = vpack.c.b16 %v3279, %v3275
    %v3460 = vpack.c.b16 %v3280, %v3276
    %v3461 = vpack.c.b16 %v3285, %v3281
    %v3462 = vpack.c.b16 %v3286, %v3282
    %v3463 = vpack.c.b16 %v3287, %v3283
    %v3464 = vpack.c.b16 %v3288, %v3284
    %v3465 = vpack.c.b16 %v3293, %v3289
    %v3466 = vpack.c.b16 %v3294, %v3290
    %v3467 = vpack.c.b16 %v3295, %v3291
    %v3468 = vpack.c.b16 %v3296, %v3292
    %v3469 = vpack.c.b16 %v3301, %v3297
    %v3470 = vpack.c.b16 %v3302, %v3298
    %v3471 = vpack.c.b16 %v3303, %v3299
    %v3472 = vpack.c.b16 %v3304, %v3300
    %v3473 = vpack.c.b16 %v3309, %v3305
    %v3474 = vpack.c.b16 %v3310, %v3306
    %v3475 = vpack.c.b16 %v3311, %v3307
    %v3476 = vpack.c.b16 %v3312, %v3308
    %v3477 = vpack.c.b16 %v3317, %v3313
    %v3478 = vpack.c.b16 %v3318, %v3314
    %v3479 = vpack.c.b16 %v3319, %v3315
    %v3480 = vpack.c.b16 %v3320, %v3316
    %v3481 = vpack.c.b16 %v3325, %v3321
    %v3482 = vpack.c.b16 %v3326, %v3322
    %v3483 = vpack.c.b16 %v3327, %v3323
    %v3484 = vpack.c.b16 %v3328, %v3324
    %v3485 = vpack.c.b16 %v3333, %v3329
    %v3486 = vpack.c.b16 %v3334, %v3330
    %v3487 = vpack.c.b16 %v3335, %v3331
    %v3488 = vpack.c.b16 %v3336, %v3332
    %v3489 = vpack.c.b16 %v3341, %v3337
    %v3490 = vpack.c.b16 %v3342, %v3338
    %v3491 = vpack.c.b16 %v3343, %v3339
    %v3492 = vpack.c.b16 %v3344, %v3340
    %v3493 = vpack.c.b16 %v3349, %v3345
    %v3494 = vpack.c.b16 %v3350, %v3346
    %v3495 = vpack.c.b16 %v3351, %v3347
    %v3496 = vpack.c.b16 %v3352, %v3348
    %v3497 = vpack.c.b16 %v3357, %v3353
    %v3498 = vpack.c.b16 %v3358, %v3354
    %v3499 = vpack.c.b16 %v3359, %v3355
    %v3500 = vpack.c.b16 %v3360, %v3356
    %v3501 = vpack.c.b16 %v3365, %v3361
    %v3502 = vpack.c.b16 %v3366, %v3362
    %v3503 = vpack.c.b16 %v3367, %v3363
    %v3504 = vpack.c.b16 %v3368, %v3364
    %v3505 = vpack.c.b16 %v3373, %v3369
    %v3506 = vpack.c.b16 %v3374, %v3370
    %v3507 = vpack.c.b16 %v3375, %v3371
    %v3508 = vpack.c.b16 %v3376, %v3372
    %v3509 = vpack.c.b16 %v3381, %v3377
    %v3510 = vpack.c.b16 %v3382, %v3378
    %v3511 = vpack.c.b16 %v3383, %v3379
    %v3512 = vpack.c.b16 %v3384, %v3380
    %v3513 = vpack.c.b16 %v3389, %v3385
    %v3514 = vpack.c.b16 %v3390, %v3386
    %v3515 = vpack.c.b16 %v3391, %v3387
    %v3516 = vpack.c.b16 %v3392, %v3388
    %v3517 = vpack.c.b16 %v3397, %v3393
    %v3518 = vpack.c.b16 %v3398, %v3394
    %v3519 = vpack.c.b16 %v3399, %v3395
    %v3520 = vpack.c.b16 %v3400, %v3396
    %v3642 = vsel %vm915, %v2918, 0
    %3644 = vmatprep.subr.bf16.mxu0 %v3430
    %3645 = vmatpush1.bf16.msra.mxu0 %v3429
    %3646 = vmatprep.subr.bf16.mxu0 %v3426
    %3647 = vmatpush1.bf16.msra.mxu0 %v3425
    %3648 = vmatprep.subr.bf16.mxu0 %v3422
    %3649 = vmatpush1.bf16.msra.mxu0 %v3421
    %3650 = vmatprep.subr.bf16.mxu0 %v3418
    %3651 = vmatpush1.bf16.msra.mxu0 %v3417
    %3652 = vmatprep.subr.bf16.mxu0 %v3414
    %3653 = vmatpush1.bf16.msra.mxu0 %v3413
    %3654 = vmatprep.subr.bf16.mxu0 %v3410
    %3655 = vmatpush1.bf16.msra.mxu0 %v3409
    %3656 = vmatprep.subr.bf16.mxu0 %v3406
    %3657 = vmatpush1.bf16.msra.mxu0 %v3405
    %3658 = vmatprep.subr.bf16.mxu0 %v3402
    %3659 = vmatpush1.bf16.msra.mxu0 %v3401
    %3660 = vmatprep.subr.bf16.mxu0 %v3462
    %3661 = vmatpush2.bf16.msra.mxu0 %v3461
    %3662 = vmatprep.subr.bf16.mxu0 %v3458
    %3663 = vmatpush2.bf16.msra.mxu0 %v3457
    %3664 = vmatprep.subr.bf16.mxu0 %v3454
    %3665 = vmatpush2.bf16.msra.mxu0 %v3453
    %3666 = vmatprep.subr.bf16.mxu0 %v3450
    %3667 = vmatpush2.bf16.msra.mxu0 %v3449
    %3668 = vmatprep.subr.bf16.mxu0 %v3446
    %3669 = vmatpush2.bf16.msra.mxu0 %v3445
    %3670 = vmatprep.subr.bf16.mxu0 %v3442
    %3671 = vmatpush2.bf16.msra.mxu0 %v3441
    %3672 = vmatprep.subr.bf16.mxu0 %v3438
    %3673 = vmatpush2.bf16.msra.mxu0 %v3437
    %3674 = vmatprep.subr.bf16.mxu0 %v3434
    %3675 = vmatpush2.bf16.msra.mxu0 %v3433
    %3676 = vmatprep.mubr.bf16.mxu0 %v2916
    %3677 = vmatmul.mubr.bf16.gmra.mxu0 %v2915
    %v3678 = vpop.f32.mrf.mxu0
    %v3679 = vadd.f32 0.0, %v3678
    %v3680 = vpop.f32.mrf.mxu0
    %v3681 = vadd.f32 0.0, %v3680
    %v3682 = vpop.f32.mrf.mxu0
    %v3683 = vpop.f32.mrf.mxu0
    %3684 = vdwg.mxu0
    %3685 = vmatprep.subr.bf16.mxu0 %v3494
    %3686 = vmatpush1.bf16.msra.mxu0 %v3493
    %3687 = vmatprep.subr.bf16.mxu0 %v3490
    %3688 = vmatpush1.bf16.msra.mxu0 %v3489
    %3689 = vmatprep.subr.bf16.mxu0 %v3486
    %3690 = vmatpush1.bf16.msra.mxu0 %v3485
    %3691 = vmatprep.subr.bf16.mxu0 %v3482
    %3692 = vmatpush1.bf16.msra.mxu0 %v3481
    %3693 = vmatprep.subr.bf16.mxu0 %v3478
    %3694 = vmatpush1.bf16.msra.mxu0 %v3477
    %3695 = vmatprep.subr.bf16.mxu0 %v3474
    %3696 = vmatpush1.bf16.msra.mxu0 %v3473
    %3697 = vmatprep.subr.bf16.mxu0 %v3470
    %3698 = vmatpush1.bf16.msra.mxu0 %v3469
    %3699 = vmatprep.subr.bf16.mxu0 %v3466
    %3700 = vmatpush1.bf16.msra.mxu0 %v3465
    %3701 = vmatprep.subr.bf16.mxu0 0
    %3702 = vmatpush2.bf16.msra.mxu0 0
    %3703 = vmatprep.subr.bf16.mxu0 0
    %3704 = vmatpush2.bf16.msra.mxu0 0
    %3705 = vmatprep.subr.bf16.mxu0 %v3518
    %3706 = vmatpush2.bf16.msra.mxu0 %v3517
    %3707 = vmatprep.subr.bf16.mxu0 %v3514
    %3708 = vmatpush2.bf16.msra.mxu0 %v3513
    %3709 = vmatprep.subr.bf16.mxu0 %v3510
    %3710 = vmatpush2.bf16.msra.mxu0 %v3509
    %3711 = vmatprep.subr.bf16.mxu0 %v3506
    %3712 = vmatpush2.bf16.msra.mxu0 %v3505
    %3713 = vmatprep.subr.bf16.mxu0 %v3502
    %3714 = vmatpush2.bf16.msra.mxu0 %v3501
    %3715 = vmatprep.subr.bf16.mxu0 %v3498
    %3716 = vmatpush2.bf16.msra.mxu0 %v3497
    %3717 = vmatprep.mubr.bf16.mxu0 %v3642
    %3718 = vmatmul.mubr.bf16.gmra.mxu0 %v2917
    %v3719 = vpop.f32.mrf.mxu0
    %v3720 = vadd.f32 %v3679, %v3719
    %v3721 = vpop.f32.mrf.mxu0
    %v3722 = vadd.f32 %v3681, %v3721
    %v3723 = vpop.f32.mrf.mxu0
    %v3724 = vpop.f32.mrf.mxu0
    %3725 = vdwg.mxu0
    %3726 = vmatprep.subr.bf16.mxu0 %v3432
    %3727 = vmatpush1.bf16.msra.mxu0 %v3431
    %3728 = vmatprep.subr.bf16.mxu0 %v3428
    %3729 = vmatpush1.bf16.msra.mxu0 %v3427
    %3730 = vmatprep.subr.bf16.mxu0 %v3424
    %3731 = vmatpush1.bf16.msra.mxu0 %v3423
    %3732 = vmatprep.subr.bf16.mxu0 %v3420
    %3733 = vmatpush1.bf16.msra.mxu0 %v3419
    %3734 = vmatprep.subr.bf16.mxu0 %v3416
    %3735 = vmatpush1.bf16.msra.mxu0 %v3415
    %3736 = vmatprep.subr.bf16.mxu0 %v3412
    %3737 = vmatpush1.bf16.msra.mxu0 %v3411
    %3738 = vmatprep.subr.bf16.mxu0 %v3408
    %3739 = vmatpush1.bf16.msra.mxu0 %v3407
    %3740 = vmatprep.subr.bf16.mxu0 %v3404
    %3741 = vmatpush1.bf16.msra.mxu0 %v3403
    %3742 = vmatprep.subr.bf16.mxu0 %v3464
    %3743 = vmatpush2.bf16.msra.mxu0 %v3463
    %3744 = vmatprep.subr.bf16.mxu0 %v3460
    %3745 = vmatpush2.bf16.msra.mxu0 %v3459
    %3746 = vmatprep.subr.bf16.mxu0 %v3456
    %3747 = vmatpush2.bf16.msra.mxu0 %v3455
    %3748 = vmatprep.subr.bf16.mxu0 %v3452
    %3749 = vmatpush2.bf16.msra.mxu0 %v3451
    %3750 = vmatprep.subr.bf16.mxu0 %v3448
    %3751 = vmatpush2.bf16.msra.mxu0 %v3447
    %3752 = vmatprep.subr.bf16.mxu0 %v3444
    %3753 = vmatpush2.bf16.msra.mxu0 %v3443
    %3754 = vmatprep.subr.bf16.mxu0 %v3440
    %3755 = vmatpush2.bf16.msra.mxu0 %v3439
    %3756 = vmatprep.subr.bf16.mxu0 %v3436
    %3757 = vmatpush2.bf16.msra.mxu0 %v3435
    %3758 = vmatprep.mubr.bf16.mxu0 %v2916
    %3759 = vmatmul.mubr.bf16.gmra.mxu0 %v2915
    %v3760 = vpop.f32.mrf.mxu0
    %v3761 = vadd.f32 0.0, %v3760
    %v3762 = vpop.f32.mrf.mxu0
    %v3763 = vadd.f32 0.0, %v3762
    %v3764 = vpop.f32.mrf.mxu0
    %v3765 = vpop.f32.mrf.mxu0
    %3766 = vdwg.mxu0
    %3767 = vmatprep.subr.bf16.mxu0 %v3496
    %3768 = vmatpush1.bf16.msra.mxu0 %v3495
    %3769 = vmatprep.subr.bf16.mxu0 %v3492
    %3770 = vmatpush1.bf16.msra.mxu0 %v3491
    %3771 = vmatprep.subr.bf16.mxu0 %v3488
    %3772 = vmatpush1.bf16.msra.mxu0 %v3487
    %3773 = vmatprep.subr.bf16.mxu0 %v3484
    %3774 = vmatpush1.bf16.msra.mxu0 %v3483
    %3775 = vmatprep.subr.bf16.mxu0 %v3480
    %3776 = vmatpush1.bf16.msra.mxu0 %v3479
    %3777 = vmatprep.subr.bf16.mxu0 %v3476
    %3778 = vmatpush1.bf16.msra.mxu0 %v3475
    %3779 = vmatprep.subr.bf16.mxu0 %v3472
    %3780 = vmatpush1.bf16.msra.mxu0 %v3471
    %3781 = vmatprep.subr.bf16.mxu0 %v3468
    %3782 = vmatpush1.bf16.msra.mxu0 %v3467
    %3783 = vmatprep.subr.bf16.mxu0 0
    %3784 = vmatpush2.bf16.msra.mxu0 0
    %3785 = vmatprep.subr.bf16.mxu0 0
    %3786 = vmatpush2.bf16.msra.mxu0 0
    %3787 = vmatprep.subr.bf16.mxu0 %v3520
    %3788 = vmatpush2.bf16.msra.mxu0 %v3519
    %3789 = vmatprep.subr.bf16.mxu0 %v3516
    %3790 = vmatpush2.bf16.msra.mxu0 %v3515
    %3791 = vmatprep.subr.bf16.mxu0 %v3512
    %3792 = vmatpush2.bf16.msra.mxu0 %v3511
    %3793 = vmatprep.subr.bf16.mxu0 %v3508
    %3794 = vmatpush2.bf16.msra.mxu0 %v3507
    %3795 = vmatprep.subr.bf16.mxu0 %v3504
    %3796 = vmatpush2.bf16.msra.mxu0 %v3503
    %3797 = vmatprep.subr.bf16.mxu0 %v3500
    %3798 = vmatpush2.bf16.msra.mxu0 %v3499
    %3799 = vmatprep.mubr.bf16.mxu0 %v3642
    %3800 = vmatmul.mubr.bf16.gmra.mxu0 %v2917
    %v3801 = vpop.f32.mrf.mxu0
    %v3802 = vadd.f32 %v3761, %v3801
    %v3803 = vpop.f32.mrf.mxu0
    %v3804 = vadd.f32 %v3763, %v3803
    %v3805 = vpop.f32.mrf.mxu0
    %v3806 = vpop.f32.mrf.mxu0
    %3807 = vdwg.mxu0
    %s3808 = sshll.u32 %s1084, 4
    %3809 = dma.done %s125, %s3808
    %v3810 = vld [vmem:[%s124] sm:$0xff]
    %v3811 = vld [vmem:[%s124 + $0x8] sm:$0xff]
    %v3812 = vld [vmem:[%s124 + $0x10] sm:$0xff]
    %v3813 = vld [vmem:[%s124 + $0x18] sm:$0xff]
    %v3814 = vld [vmem:[%s124 + $0x20] sm:$0xff]
    %v3815 = vld [vmem:[%s124 + $0x28] sm:$0xff]
    %v3816 = vld [vmem:[%s124 + $0x30] sm:$0xff]
    %v3817 = vld [vmem:[%s124 + $0x38] sm:$0xff]
    %v3818 = vld [vmem:[%s124 + $0x40] sm:$0xff]
    %v3819 = vld [vmem:[%s124 + $0x48] sm:$0xff]
    %v3820 = vld [vmem:[%s124 + $0x50] sm:$0xff]
    %v3821 = vld [vmem:[%s124 + $0x58] sm:$0xff]
    %v3822 = vld [vmem:[%s124 + $0x60] sm:$0xff]
    %v3823 = vld [vmem:[%s124 + $0x68] sm:$0xff]
    %v3824 = vld [vmem:[%s124 + $0x70] sm:$0xff]
    %v3825 = vld [vmem:[%s124 + $0x78] sm:$0xff]
    %v3826 = vld [vmem:[%s124 + $0x80] sm:$0xff]
    %v3827 = vld [vmem:[%s124 + $0x88] sm:$0xff]
    %v3828 = vld [vmem:[%s124 + $0x90] sm:$0xff]
    %v3829 = vld [vmem:[%s124 + $0x98] sm:$0xff]
    %v3830 = vld [vmem:[%s124 + $0xa0] sm:$0xff]
    %v3831 = vld [vmem:[%s124 + $0xa8] sm:$0xff]
    %v3832 = vld [vmem:[%s124 + $0xb0] sm:$0xff]
    %v3833 = vld [vmem:[%s124 + $0xb8] sm:$0xff]
    %v3834 = vld [vmem:[%s124 + $0xc0] sm:$0xff]
    %v3835 = vld [vmem:[%s124 + $0xc8] sm:$0xff]
    %v3836 = vld [vmem:[%s124 + $0xd0] sm:$0xff]
    %v3837 = vld [vmem:[%s124 + $0xd8] sm:$0xff]
    %v3838 = vld [vmem:[%s124 + $0xe0] sm:$0xff]
    %v3839 = vld [vmem:[%s124 + $0xe8] sm:$0xff]
    %v3840 = vld [vmem:[%s124 + $0xf0] sm:$0xff]
    %v3841 = vld [vmem:[%s124 + $0xf8] sm:$0xff]
    %v3842 = vld [vmem:[%s124 + $0x100] sm:$0xff]
    %v3843 = vld [vmem:[%s124 + $0x108] sm:$0xff]
    %v3844 = vld [vmem:[%s124 + $0x110] sm:$0xff]
    %v3845 = vld [vmem:[%s124 + $0x118] sm:$0xff]
    %v3846 = vld [vmem:[%s124 + $0x120] sm:$0xff]
    %v3847 = vld [vmem:[%s124 + $0x128] sm:$0xff]
    %v3848 = vld [vmem:[%s124 + $0x130] sm:$0xff]
    %v3849 = vld [vmem:[%s124 + $0x138] sm:$0xff]
    %v3850 = vld [vmem:[%s124 + $0x140] sm:$0xff]
    %v3851 = vld [vmem:[%s124 + $0x148] sm:$0xff]
    %v3852 = vld [vmem:[%s124 + $0x150] sm:$0xff]
    %v3853 = vld [vmem:[%s124 + $0x158] sm:$0xff]
    %v3854 = vld [vmem:[%s124 + $0x160] sm:$0xff]
    %v3855 = vld [vmem:[%s124 + $0x168] sm:$0xff]
    %v3856 = vld [vmem:[%s124 + $0x170] sm:$0xff]
    %v3857 = vld [vmem:[%s124 + $0x178] sm:$0xff]
    %v3858 = vld [vmem:[%s124 + $0x180] sm:$0xff]
    %v3859 = vld [vmem:[%s124 + $0x188] sm:$0xff]
    %v3860 = vld [vmem:[%s124 + $0x190] sm:$0xff]
    %v3861 = vld [vmem:[%s124 + $0x198] sm:$0xff]
    %v3862 = vld [vmem:[%s124 + $0x1a0] sm:$0xff]
    %v3863 = vld [vmem:[%s124 + $0x1a8] sm:$0xff]
    %v3864 = vld [vmem:[%s124 + $0x1b0] sm:$0xff]
    %v3865 = vld [vmem:[%s124 + $0x1b8] sm:$0xff]
    %v3866 = vld [vmem:[%s124 + $0x1c0] sm:$0xff]
    %v3867 = vld [vmem:[%s124 + $0x1c8] sm:$0xff]
    %v3868 = vld [vmem:[%s124 + $0x1d0] sm:$0xff]
    %v3869 = vld [vmem:[%s124 + $0x1d8] sm:$0xff]
    %v3870 = vld [vmem:[%s124 + $0x1e0] sm:$0xff]
    %v3871 = vld [vmem:[%s124 + $0x1e8] sm:$0xff]
    %v3872 = vld [vmem:[%s124 + $0x1f0] sm:$0xff]
    %v3873 = vld [vmem:[%s124 + $0x1f8] sm:$0xff]
    %v3874 = vld [vmem:[%s124 + $0x200] sm:$0xff]
    %v3875 = vld [vmem:[%s124 + $0x208] sm:$0xff]
    %v3876 = vld [vmem:[%s124 + $0x210] sm:$0xff]
    %v3877 = vld [vmem:[%s124 + $0x218] sm:$0xff]
    %v3878 = vld [vmem:[%s124 + $0x220] sm:$0xff]
    %v3879 = vld [vmem:[%s124 + $0x228] sm:$0xff]
    %v3880 = vld [vmem:[%s124 + $0x230] sm:$0xff]
    %v3881 = vld [vmem:[%s124 + $0x238] sm:$0xff]
    %v3882 = vld [vmem:[%s124 + $0x240] sm:$0xff]
    %v3883 = vld [vmem:[%s124 + $0x248] sm:$0xff]
    %v3884 = vld [vmem:[%s124 + $0x250] sm:$0xff]
    %v3885 = vld [vmem:[%s124 + $0x258] sm:$0xff]
    %v3886 = vld [vmem:[%s124 + $0x260] sm:$0xff]
    %v3887 = vld [vmem:[%s124 + $0x268] sm:$0xff]
    %v3888 = vld [vmem:[%s124 + $0x270] sm:$0xff]
    %v3889 = vld [vmem:[%s124 + $0x278] sm:$0xff]
    %v3890 = vld [vmem:[%s124 + $0x280] sm:$0xff]
    %v3891 = vld [vmem:[%s124 + $0x288] sm:$0xff]
    %v3892 = vld [vmem:[%s124 + $0x290] sm:$0xff]
    %v3893 = vld [vmem:[%s124 + $0x298] sm:$0xff]
    %v3894 = vld [vmem:[%s124 + $0x2a0] sm:$0xff]
    %v3895 = vld [vmem:[%s124 + $0x2a8] sm:$0xff]
    %v3896 = vld [vmem:[%s124 + $0x2b0] sm:$0xff]
    %v3897 = vld [vmem:[%s124 + $0x2b8] sm:$0xff]
    %v3898 = vld [vmem:[%s124 + $0x2c0] sm:$0xff]
    %v3899 = vld [vmem:[%s124 + $0x2c8] sm:$0xff]
    %v3900 = vld [vmem:[%s124 + $0x2d0] sm:$0xff]
    %v3901 = vld [vmem:[%s124 + $0x2d8] sm:$0xff]
    %v3902 = vld [vmem:[%s124 + $0x2e0] sm:$0xff]
    %v3903 = vld [vmem:[%s124 + $0x2e8] sm:$0xff]
    %v3904 = vld [vmem:[%s124 + $0x2f0] sm:$0xff]
    %v3905 = vld [vmem:[%s124 + $0x2f8] sm:$0xff]
    %v3906 = vld [vmem:[%s124 + $0x300] sm:$0xff]
    %v3907 = vld [vmem:[%s124 + $0x308] sm:$0xff]
    %v3908 = vld [vmem:[%s124 + $0x310] sm:$0xff]
    %v3909 = vld [vmem:[%s124 + $0x318] sm:$0xff]
    %v3910 = vld [vmem:[%s124 + $0x320] sm:$0xff]
    %v3911 = vld [vmem:[%s124 + $0x328] sm:$0xff]
    %v3912 = vld [vmem:[%s124 + $0x330] sm:$0xff]
    %v3913 = vld [vmem:[%s124 + $0x338] sm:$0xff]
    %v3914 = vld [vmem:[%s124 + $0x340] sm:$0xff]
    %v3915 = vld [vmem:[%s124 + $0x348] sm:$0xff]
    %v3916 = vld [vmem:[%s124 + $0x350] sm:$0xff]
    %v3917 = vld [vmem:[%s124 + $0x358] sm:$0xff]
    %v3918 = vld [vmem:[%s124 + $0x360] sm:$0xff]
    %v3919 = vld [vmem:[%s124 + $0x368] sm:$0xff]
    %v3920 = vld [vmem:[%s124 + $0x370] sm:$0xff]
    %v3921 = vld [vmem:[%s124 + $0x378] sm:$0xff]
    %v3922 = vld [vmem:[%s124 + $0x380] sm:$0xff]
    %v3923 = vld [vmem:[%s124 + $0x388] sm:$0xff]
    %v3924 = vld [vmem:[%s124 + $0x390] sm:$0xff]
    %v3925 = vld [vmem:[%s124 + $0x398] sm:$0xff]
    %v3926 = vld [vmem:[%s124 + $0x3a0] sm:$0xff]
    %v3927 = vld [vmem:[%s124 + $0x3a8] sm:$0xff]
    %v3928 = vld [vmem:[%s124 + $0x3b0] sm:$0xff]
    %v3929 = vld [vmem:[%s124 + $0x3b8] sm:$0xff]
    %v3931 = vshrl.u32 %v2915, 16
    %v3934 = vshrl.u32 %v2916, 16
    %v3937 = vshrl.u32 %v2917, 16
    %v3939 = vshrl.u32 %v2918, 16
    %v4064 = vunpack.c.l.b16 %v3810
    %v4065 = vunpack.c.h.b16 %v3810
    %v4066 = vunpack.c.l.b16 %v3811
    %v4067 = vunpack.c.h.b16 %v3811
    %v4068 = vunpack.c.l.b16 %v3812
    %v4069 = vunpack.c.h.b16 %v3812
    %v4070 = vunpack.c.l.b16 %v3813
    %v4071 = vunpack.c.h.b16 %v3813
    %v4072 = vunpack.c.l.b16 %v3814
    %v4073 = vunpack.c.h.b16 %v3814
    %v4074 = vunpack.c.l.b16 %v3815
    %v4075 = vunpack.c.h.b16 %v3815
    %v4076 = vunpack.c.l.b16 %v3816
    %v4077 = vunpack.c.h.b16 %v3816
    %v4078 = vunpack.c.l.b16 %v3817
    %v4079 = vunpack.c.h.b16 %v3817
    %v4080 = vunpack.c.l.b16 %v3818
    %v4081 = vunpack.c.h.b16 %v3818
    %v4082 = vunpack.c.l.b16 %v3819
    %v4083 = vunpack.c.h.b16 %v3819
    %v4084 = vunpack.c.l.b16 %v3820
    %v4085 = vunpack.c.h.b16 %v3820
    %v4086 = vunpack.c.l.b16 %v3821
    %v4087 = vunpack.c.h.b16 %v3821
    %v4088 = vunpack.c.l.b16 %v3822
    %v4089 = vunpack.c.h.b16 %v3822
    %v4090 = vunpack.c.l.b16 %v3823
    %v4091 = vunpack.c.h.b16 %v3823
    %v4092 = vunpack.c.l.b16 %v3824
    %v4093 = vunpack.c.h.b16 %v3824
    %v4094 = vunpack.c.l.b16 %v3825
    %v4095 = vunpack.c.h.b16 %v3825
    %v4096 = vunpack.c.l.b16 %v3826
    %v4097 = vunpack.c.h.b16 %v3826
    %v4098 = vunpack.c.l.b16 %v3827
    %v4099 = vunpack.c.h.b16 %v3827
    %v4100 = vunpack.c.l.b16 %v3828
    %v4101 = vunpack.c.h.b16 %v3828
    %v4102 = vunpack.c.l.b16 %v3829
    %v4103 = vunpack.c.h.b16 %v3829
    %v4104 = vunpack.c.l.b16 %v3830
    %v4105 = vunpack.c.h.b16 %v3830
    %v4106 = vunpack.c.l.b16 %v3831
    %v4107 = vunpack.c.h.b16 %v3831
    %v4108 = vunpack.c.l.b16 %v3832
    %v4109 = vunpack.c.h.b16 %v3832
    %v4110 = vunpack.c.l.b16 %v3833
    %v4111 = vunpack.c.h.b16 %v3833
    %v4112 = vunpack.c.l.b16 %v3834
    %v4113 = vunpack.c.h.b16 %v3834
    %v4114 = vunpack.c.l.b16 %v3835
    %v4115 = vunpack.c.h.b16 %v3835
    %v4116 = vunpack.c.l.b16 %v3836
    %v4117 = vunpack.c.h.b16 %v3836
    %v4118 = vunpack.c.l.b16 %v3837
    %v4119 = vunpack.c.h.b16 %v3837
    %v4120 = vunpack.c.l.b16 %v3838
    %v4121 = vunpack.c.h.b16 %v3838
    %v4122 = vunpack.c.l.b16 %v3839
    %v4123 = vunpack.c.h.b16 %v3839
    %v4124 = vunpack.c.l.b16 %v3840
    %v4125 = vunpack.c.h.b16 %v3840
    %v4126 = vunpack.c.l.b16 %v3841
    %v4127 = vunpack.c.h.b16 %v3841
    %v4128 = vunpack.c.l.b16 %v3842
    %v4129 = vunpack.c.h.b16 %v3842
    %v4130 = vunpack.c.l.b16 %v3843
    %v4131 = vunpack.c.h.b16 %v3843
    %v4132 = vunpack.c.l.b16 %v3844
    %v4133 = vunpack.c.h.b16 %v3844
    %v4134 = vunpack.c.l.b16 %v3845
    %v4135 = vunpack.c.h.b16 %v3845
    %v4136 = vunpack.c.l.b16 %v3846
    %v4137 = vunpack.c.h.b16 %v3846
    %v4138 = vunpack.c.l.b16 %v3847
    %v4139 = vunpack.c.h.b16 %v3847
    %v4140 = vunpack.c.l.b16 %v3848
    %v4141 = vunpack.c.h.b16 %v3848
    %v4142 = vunpack.c.l.b16 %v3849
    %v4143 = vunpack.c.h.b16 %v3849
    %v4144 = vunpack.c.l.b16 %v3850
    %v4145 = vunpack.c.h.b16 %v3850
    %v4146 = vunpack.c.l.b16 %v3851
    %v4147 = vunpack.c.h.b16 %v3851
    %v4148 = vunpack.c.l.b16 %v3852
    %v4149 = vunpack.c.h.b16 %v3852
    %v4150 = vunpack.c.l.b16 %v3853
    %v4151 = vunpack.c.h.b16 %v3853
    %v4152 = vunpack.c.l.b16 %v3854
    %v4153 = vunpack.c.h.b16 %v3854
    %v4154 = vunpack.c.l.b16 %v3855
    %v4155 = vunpack.c.h.b16 %v3855
    %v4156 = vunpack.c.l.b16 %v3856
    %v4157 = vunpack.c.h.b16 %v3856
    %v4158 = vunpack.c.l.b16 %v3857
    %v4159 = vunpack.c.h.b16 %v3857
    %v4160 = vunpack.c.l.b16 %v3858
    %v4161 = vunpack.c.h.b16 %v3858
    %v4162 = vunpack.c.l.b16 %v3859
    %v4163 = vunpack.c.h.b16 %v3859
    %v4164 = vunpack.c.l.b16 %v3860
    %v4165 = vunpack.c.h.b16 %v3860
    %v4166 = vunpack.c.l.b16 %v3861
    %v4167 = vunpack.c.h.b16 %v3861
    %v4168 = vunpack.c.l.b16 %v3862
    %v4169 = vunpack.c.h.b16 %v3862
    %v4170 = vunpack.c.l.b16 %v3863
    %v4171 = vunpack.c.h.b16 %v3863
    %v4172 = vunpack.c.l.b16 %v3864
    %v4173 = vunpack.c.h.b16 %v3864
    %v4174 = vunpack.c.l.b16 %v3865
    %v4175 = vunpack.c.h.b16 %v3865
    %v4176 = vunpack.c.l.b16 %v3866
    %v4177 = vunpack.c.h.b16 %v3866
    %v4178 = vunpack.c.l.b16 %v3867
    %v4179 = vunpack.c.h.b16 %v3867
    %v4180 = vunpack.c.l.b16 %v3868
    %v4181 = vunpack.c.h.b16 %v3868
    %v4182 = vunpack.c.l.b16 %v3869
    %v4183 = vunpack.c.h.b16 %v3869
    %v4184 = vunpack.c.l.b16 %v3870
    %v4185 = vunpack.c.h.b16 %v3870
    %v4186 = vunpack.c.l.b16 %v3871
    %v4187 = vunpack.c.h.b16 %v3871
    %v4188 = vunpack.c.l.b16 %v3872
    %v4189 = vunpack.c.h.b16 %v3872
    %v4190 = vunpack.c.l.b16 %v3873
    %v4191 = vunpack.c.h.b16 %v3873
    %v4192 = vunpack.c.l.b16 %v3874
    %v4193 = vunpack.c.h.b16 %v3874
    %v4194 = vunpack.c.l.b16 %v3875
    %v4195 = vunpack.c.h.b16 %v3875
    %v4196 = vunpack.c.l.b16 %v3876
    %v4197 = vunpack.c.h.b16 %v3876
    %v4198 = vunpack.c.l.b16 %v3877
    %v4199 = vunpack.c.h.b16 %v3877
    %v4200 = vunpack.c.l.b16 %v3878
    %v4201 = vunpack.c.h.b16 %v3878
    %v4202 = vunpack.c.l.b16 %v3879
    %v4203 = vunpack.c.h.b16 %v3879
    %v4204 = vunpack.c.l.b16 %v3880
    %v4205 = vunpack.c.h.b16 %v3880
    %v4206 = vunpack.c.l.b16 %v3881
    %v4207 = vunpack.c.h.b16 %v3881
    %v4208 = vunpack.c.l.b16 %v3882
    %v4209 = vunpack.c.h.b16 %v3882
    %v4210 = vunpack.c.l.b16 %v3883
    %v4211 = vunpack.c.h.b16 %v3883
    %v4212 = vunpack.c.l.b16 %v3884
    %v4213 = vunpack.c.h.b16 %v3884
    %v4214 = vunpack.c.l.b16 %v3885
    %v4215 = vunpack.c.h.b16 %v3885
    %v4216 = vunpack.c.l.b16 %v3886
    %v4217 = vunpack.c.h.b16 %v3886
    %v4218 = vunpack.c.l.b16 %v3887
    %v4219 = vunpack.c.h.b16 %v3887
    %v4220 = vunpack.c.l.b16 %v3888
    %v4221 = vunpack.c.h.b16 %v3888
    %v4222 = vunpack.c.l.b16 %v3889
    %v4223 = vunpack.c.h.b16 %v3889
    %v4224 = vunpack.c.l.b16 %v3890
    %v4225 = vunpack.c.h.b16 %v3890
    %v4226 = vunpack.c.l.b16 %v3891
    %v4227 = vunpack.c.h.b16 %v3891
    %v4228 = vunpack.c.l.b16 %v3892
    %v4229 = vunpack.c.h.b16 %v3892
    %v4230 = vunpack.c.l.b16 %v3893
    %v4231 = vunpack.c.h.b16 %v3893
    %v4232 = vunpack.c.l.b16 %v3894
    %v4233 = vunpack.c.h.b16 %v3894
    %v4234 = vunpack.c.l.b16 %v3895
    %v4235 = vunpack.c.h.b16 %v3895
    %v4236 = vunpack.c.l.b16 %v3896
    %v4237 = vunpack.c.h.b16 %v3896
    %v4238 = vunpack.c.l.b16 %v3897
    %v4239 = vunpack.c.h.b16 %v3897
    %v4240 = vunpack.c.l.b16 %v3898
    %v4241 = vunpack.c.h.b16 %v3898
    %v4242 = vunpack.c.l.b16 %v3899
    %v4243 = vunpack.c.h.b16 %v3899
    %v4244 = vunpack.c.l.b16 %v3900
    %v4245 = vunpack.c.h.b16 %v3900
    %v4246 = vunpack.c.l.b16 %v3901
    %v4247 = vunpack.c.h.b16 %v3901
    %v4248 = vunpack.c.l.b16 %v3902
    %v4249 = vunpack.c.h.b16 %v3902
    %v4250 = vunpack.c.l.b16 %v3903
    %v4251 = vunpack.c.h.b16 %v3903
    %v4252 = vunpack.c.l.b16 %v3904
    %v4253 = vunpack.c.h.b16 %v3904
    %v4254 = vunpack.c.l.b16 %v3905
    %v4255 = vunpack.c.h.b16 %v3905
    %v4256 = vunpack.c.l.b16 %v3906
    %v4257 = vunpack.c.h.b16 %v3906
    %v4258 = vunpack.c.l.b16 %v3907
    %v4259 = vunpack.c.h.b16 %v3907
    %v4260 = vunpack.c.l.b16 %v3908
    %v4261 = vunpack.c.h.b16 %v3908
    %v4262 = vunpack.c.l.b16 %v3909
    %v4263 = vunpack.c.h.b16 %v3909
    %v4264 = vunpack.c.l.b16 %v3910
    %v4265 = vunpack.c.h.b16 %v3910
    %v4266 = vunpack.c.l.b16 %v3911
    %v4267 = vunpack.c.h.b16 %v3911
    %v4268 = vunpack.c.l.b16 %v3912
    %v4269 = vunpack.c.h.b16 %v3912
    %v4270 = vunpack.c.l.b16 %v3913
    %v4271 = vunpack.c.h.b16 %v3913
    %v4272 = vunpack.c.l.b16 %v3914
    %v4273 = vunpack.c.h.b16 %v3914
    %v4274 = vunpack.c.l.b16 %v3915
    %v4275 = vunpack.c.h.b16 %v3915
    %v4276 = vunpack.c.l.b16 %v3916
    %v4277 = vunpack.c.h.b16 %v3916
    %v4278 = vunpack.c.l.b16 %v3917
    %v4279 = vunpack.c.h.b16 %v3917
    %v4280 = vunpack.c.l.b16 %v3918
    %v4281 = vunpack.c.h.b16 %v3918
    %v4282 = vunpack.c.l.b16 %v3919
    %v4283 = vunpack.c.h.b16 %v3919
    %v4284 = vunpack.c.l.b16 %v3920
    %v4285 = vunpack.c.h.b16 %v3920
    %v4286 = vunpack.c.l.b16 %v3921
    %v4287 = vunpack.c.h.b16 %v3921
    %v4288 = vunpack.c.l.b16 %v3922
    %v4289 = vunpack.c.h.b16 %v3922
    %v4290 = vunpack.c.l.b16 %v3923
    %v4291 = vunpack.c.h.b16 %v3923
    %v4292 = vunpack.c.l.b16 %v3924
    %v4293 = vunpack.c.h.b16 %v3924
    %v4294 = vunpack.c.l.b16 %v3925
    %v4295 = vunpack.c.h.b16 %v3925
    %v4296 = vunpack.c.l.b16 %v3926
    %v4297 = vunpack.c.h.b16 %v3926
    %v4298 = vunpack.c.l.b16 %v3927
    %v4299 = vunpack.c.h.b16 %v3927
    %v4300 = vunpack.c.l.b16 %v3928
    %v4301 = vunpack.c.h.b16 %v3928
    %v4302 = vunpack.c.l.b16 %v3929
    %v4303 = vunpack.c.h.b16 %v3929
    %v4304 = vpack.c.b16 %v4068, %v4064
    %v4305 = vpack.c.b16 %v4069, %v4065
    %v4306 = vpack.c.b16 %v4070, %v4066
    %v4307 = vpack.c.b16 %v4071, %v4067
    %v4308 = vpack.c.b16 %v4076, %v4072
    %v4309 = vpack.c.b16 %v4077, %v4073
    %v4310 = vpack.c.b16 %v4078, %v4074
    %v4311 = vpack.c.b16 %v4079, %v4075
    %v4312 = vpack.c.b16 %v4084, %v4080
    %v4313 = vpack.c.b16 %v4085, %v4081
    %v4314 = vpack.c.b16 %v4086, %v4082
    %v4315 = vpack.c.b16 %v4087, %v4083
    %v4316 = vpack.c.b16 %v4092, %v4088
    %v4317 = vpack.c.b16 %v4093, %v4089
    %v4318 = vpack.c.b16 %v4094, %v4090
    %v4319 = vpack.c.b16 %v4095, %v4091
    %v4320 = vpack.c.b16 %v4100, %v4096
    %v4321 = vpack.c.b16 %v4101, %v4097
    %v4322 = vpack.c.b16 %v4102, %v4098
    %v4323 = vpack.c.b16 %v4103, %v4099
    %v4324 = vpack.c.b16 %v4108, %v4104
    %v4325 = vpack.c.b16 %v4109, %v4105
    %v4326 = vpack.c.b16 %v4110, %v4106
    %v4327 = vpack.c.b16 %v4111, %v4107
    %v4328 = vpack.c.b16 %v4116, %v4112
    %v4329 = vpack.c.b16 %v4117, %v4113
    %v4330 = vpack.c.b16 %v4118, %v4114
    %v4331 = vpack.c.b16 %v4119, %v4115
    %v4332 = vpack.c.b16 %v4124, %v4120
    %v4333 = vpack.c.b16 %v4125, %v4121
    %v4334 = vpack.c.b16 %v4126, %v4122
    %v4335 = vpack.c.b16 %v4127, %v4123
    %v4336 = vpack.c.b16 %v4132, %v4128
    %v4337 = vpack.c.b16 %v4133, %v4129
    %v4338 = vpack.c.b16 %v4134, %v4130
    %v4339 = vpack.c.b16 %v4135, %v4131
    %v4340 = vpack.c.b16 %v4140, %v4136
    %v4341 = vpack.c.b16 %v4141, %v4137
    %v4342 = vpack.c.b16 %v4142, %v4138
    %v4343 = vpack.c.b16 %v4143, %v4139
    %v4344 = vpack.c.b16 %v4148, %v4144
    %v4345 = vpack.c.b16 %v4149, %v4145
    %v4346 = vpack.c.b16 %v4150, %v4146
    %v4347 = vpack.c.b16 %v4151, %v4147
    %v4348 = vpack.c.b16 %v4156, %v4152
    %v4349 = vpack.c.b16 %v4157, %v4153
    %v4350 = vpack.c.b16 %v4158, %v4154
    %v4351 = vpack.c.b16 %v4159, %v4155
    %v4352 = vpack.c.b16 %v4164, %v4160
    %v4353 = vpack.c.b16 %v4165, %v4161
    %v4354 = vpack.c.b16 %v4166, %v4162
    %v4355 = vpack.c.b16 %v4167, %v4163
    %v4356 = vpack.c.b16 %v4172, %v4168
    %v4357 = vpack.c.b16 %v4173, %v4169
    %v4358 = vpack.c.b16 %v4174, %v4170
    %v4359 = vpack.c.b16 %v4175, %v4171
    %v4360 = vpack.c.b16 %v4180, %v4176
    %v4361 = vpack.c.b16 %v4181, %v4177
    %v4362 = vpack.c.b16 %v4182, %v4178
    %v4363 = vpack.c.b16 %v4183, %v4179
    %v4364 = vpack.c.b16 %v4188, %v4184
    %v4365 = vpack.c.b16 %v4189, %v4185
    %v4366 = vpack.c.b16 %v4190, %v4186
    %v4367 = vpack.c.b16 %v4191, %v4187
    %v4368 = vpack.c.b16 %v4196, %v4192
    %v4369 = vpack.c.b16 %v4197, %v4193
    %v4370 = vpack.c.b16 %v4198, %v4194
    %v4371 = vpack.c.b16 %v4199, %v4195
    %v4372 = vpack.c.b16 %v4204, %v4200
    %v4373 = vpack.c.b16 %v4205, %v4201
    %v4374 = vpack.c.b16 %v4206, %v4202
    %v4375 = vpack.c.b16 %v4207, %v4203
    %v4376 = vpack.c.b16 %v4212, %v4208
    %v4377 = vpack.c.b16 %v4213, %v4209
    %v4378 = vpack.c.b16 %v4214, %v4210
    %v4379 = vpack.c.b16 %v4215, %v4211
    %v4380 = vpack.c.b16 %v4220, %v4216
    %v4381 = vpack.c.b16 %v4221, %v4217
    %v4382 = vpack.c.b16 %v4222, %v4218
    %v4383 = vpack.c.b16 %v4223, %v4219
    %v4384 = vpack.c.b16 %v4228, %v4224
    %v4385 = vpack.c.b16 %v4229, %v4225
    %v4386 = vpack.c.b16 %v4230, %v4226
    %v4387 = vpack.c.b16 %v4231, %v4227
    %v4388 = vpack.c.b16 %v4236, %v4232
    %v4389 = vpack.c.b16 %v4237, %v4233
    %v4390 = vpack.c.b16 %v4238, %v4234
    %v4391 = vpack.c.b16 %v4239, %v4235
    %v4392 = vpack.c.b16 %v4244, %v4240
    %v4393 = vpack.c.b16 %v4245, %v4241
    %v4394 = vpack.c.b16 %v4246, %v4242
    %v4395 = vpack.c.b16 %v4247, %v4243
    %v4396 = vpack.c.b16 %v4252, %v4248
    %v4397 = vpack.c.b16 %v4253, %v4249
    %v4398 = vpack.c.b16 %v4254, %v4250
    %v4399 = vpack.c.b16 %v4255, %v4251
    %v4400 = vpack.c.b16 %v4260, %v4256
    %v4401 = vpack.c.b16 %v4261, %v4257
    %v4402 = vpack.c.b16 %v4262, %v4258
    %v4403 = vpack.c.b16 %v4263, %v4259
    %v4404 = vpack.c.b16 %v4268, %v4264
    %v4405 = vpack.c.b16 %v4269, %v4265
    %v4406 = vpack.c.b16 %v4270, %v4266
    %v4407 = vpack.c.b16 %v4271, %v4267
    %v4408 = vpack.c.b16 %v4276, %v4272
    %v4409 = vpack.c.b16 %v4277, %v4273
    %v4410 = vpack.c.b16 %v4278, %v4274
    %v4411 = vpack.c.b16 %v4279, %v4275
    %v4412 = vpack.c.b16 %v4284, %v4280
    %v4413 = vpack.c.b16 %v4285, %v4281
    %v4414 = vpack.c.b16 %v4286, %v4282
    %v4415 = vpack.c.b16 %v4287, %v4283
    %v4416 = vpack.c.b16 %v4292, %v4288
    %v4417 = vpack.c.b16 %v4293, %v4289
    %v4418 = vpack.c.b16 %v4294, %v4290
    %v4419 = vpack.c.b16 %v4295, %v4291
    %v4420 = vpack.c.b16 %v4300, %v4296
    %v4421 = vpack.c.b16 %v4301, %v4297
    %v4422 = vpack.c.b16 %v4302, %v4298
    %v4423 = vpack.c.b16 %v4303, %v4299
    %v4545 = vsel %vm915, %v3939, 0
    %4547 = vmatprep.subr.bf16.mxu0 %v4333
    %4548 = vmatpush1.bf16.msra.mxu0 %v4332
    %4549 = vmatprep.subr.bf16.mxu0 %v4329
    %4550 = vmatpush1.bf16.msra.mxu0 %v4328
    %4551 = vmatprep.subr.bf16.mxu0 %v4325
    %4552 = vmatpush1.bf16.msra.mxu0 %v4324
    %4553 = vmatprep.subr.bf16.mxu0 %v4321
    %4554 = vmatpush1.bf16.msra.mxu0 %v4320
    %4555 = vmatprep.subr.bf16.mxu0 %v4317
    %4556 = vmatpush1.bf16.msra.mxu0 %v4316
    %4557 = vmatprep.subr.bf16.mxu0 %v4313
    %4558 = vmatpush1.bf16.msra.mxu0 %v4312
    %4559 = vmatprep.subr.bf16.mxu0 %v4309
    %4560 = vmatpush1.bf16.msra.mxu0 %v4308
    %4561 = vmatprep.subr.bf16.mxu0 %v4305
    %4562 = vmatpush1.bf16.msra.mxu0 %v4304
    %4563 = vmatprep.subr.bf16.mxu0 %v4365
    %4564 = vmatpush2.bf16.msra.mxu0 %v4364
    %4565 = vmatprep.subr.bf16.mxu0 %v4361
    %4566 = vmatpush2.bf16.msra.mxu0 %v4360
    %4567 = vmatprep.subr.bf16.mxu0 %v4357
    %4568 = vmatpush2.bf16.msra.mxu0 %v4356
    %4569 = vmatprep.subr.bf16.mxu0 %v4353
    %4570 = vmatpush2.bf16.msra.mxu0 %v4352
    %4571 = vmatprep.subr.bf16.mxu0 %v4349
    %4572 = vmatpush2.bf16.msra.mxu0 %v4348
    %4573 = vmatprep.subr.bf16.mxu0 %v4345
    %4574 = vmatpush2.bf16.msra.mxu0 %v4344
    %4575 = vmatprep.subr.bf16.mxu0 %v4341
    %4576 = vmatpush2.bf16.msra.mxu0 %v4340
    %4577 = vmatprep.subr.bf16.mxu0 %v4337
    %4578 = vmatpush2.bf16.msra.mxu0 %v4336
    %4579 = vmatprep.mubr.bf16.mxu0 %v3934
    %4580 = vmatmul.mubr.bf16.gmra.mxu0 %v3931
    %v4581 = vpop.f32.mrf.mxu0
    %v4582 = vadd.f32 0.0, %v4581
    %v4583 = vpop.f32.mrf.mxu0
    %v4584 = vadd.f32 0.0, %v4583
    %v4585 = vpop.f32.mrf.mxu0
    %v4586 = vpop.f32.mrf.mxu0
    %4587 = vdwg.mxu0
    %4588 = vmatprep.subr.bf16.mxu0 %v4397
    %4589 = vmatpush1.bf16.msra.mxu0 %v4396
    %4590 = vmatprep.subr.bf16.mxu0 %v4393
    %4591 = vmatpush1.bf16.msra.mxu0 %v4392
    %4592 = vmatprep.subr.bf16.mxu0 %v4389
    %4593 = vmatpush1.bf16.msra.mxu0 %v4388
    %4594 = vmatprep.subr.bf16.mxu0 %v4385
    %4595 = vmatpush1.bf16.msra.mxu0 %v4384
    %4596 = vmatprep.subr.bf16.mxu0 %v4381
    %4597 = vmatpush1.bf16.msra.mxu0 %v4380
    %4598 = vmatprep.subr.bf16.mxu0 %v4377
    %4599 = vmatpush1.bf16.msra.mxu0 %v4376
    %4600 = vmatprep.subr.bf16.mxu0 %v4373
    %4601 = vmatpush1.bf16.msra.mxu0 %v4372
    %4602 = vmatprep.subr.bf16.mxu0 %v4369
    %4603 = vmatpush1.bf16.msra.mxu0 %v4368
    %4604 = vmatprep.subr.bf16.mxu0 0
    %4605 = vmatpush2.bf16.msra.mxu0 0
    %4606 = vmatprep.subr.bf16.mxu0 0
    %4607 = vmatpush2.bf16.msra.mxu0 0
    %4608 = vmatprep.subr.bf16.mxu0 %v4421
    %4609 = vmatpush2.bf16.msra.mxu0 %v4420
    %4610 = vmatprep.subr.bf16.mxu0 %v4417
    %4611 = vmatpush2.bf16.msra.mxu0 %v4416
    %4612 = vmatprep.subr.bf16.mxu0 %v4413
    %4613 = vmatpush2.bf16.msra.mxu0 %v4412
    %4614 = vmatprep.subr.bf16.mxu0 %v4409
    %4615 = vmatpush2.bf16.msra.mxu0 %v4408
    %4616 = vmatprep.subr.bf16.mxu0 %v4405
    %4617 = vmatpush2.bf16.msra.mxu0 %v4404
    %4618 = vmatprep.subr.bf16.mxu0 %v4401
    %4619 = vmatpush2.bf16.msra.mxu0 %v4400
    %4620 = vmatprep.mubr.bf16.mxu0 %v4545
    %4621 = vmatmul.mubr.bf16.gmra.mxu0 %v3937
    %v4622 = vpop.f32.mrf.mxu0
    %v4623 = vadd.f32 %v4582, %v4622
    %v4624 = vpop.f32.mrf.mxu0
    %v4625 = vadd.f32 %v4584, %v4624
    %v4626 = vpop.f32.mrf.mxu0
    %v4627 = vpop.f32.mrf.mxu0
    %4628 = vdwg.mxu0
    %4629 = vmatprep.subr.bf16.mxu0 %v4335
    %4630 = vmatpush1.bf16.msra.mxu0 %v4334
    %4631 = vmatprep.subr.bf16.mxu0 %v4331
    %4632 = vmatpush1.bf16.msra.mxu0 %v4330
    %4633 = vmatprep.subr.bf16.mxu0 %v4327
    %4634 = vmatpush1.bf16.msra.mxu0 %v4326
    %4635 = vmatprep.subr.bf16.mxu0 %v4323
    %4636 = vmatpush1.bf16.msra.mxu0 %v4322
    %4637 = vmatprep.subr.bf16.mxu0 %v4319
    %4638 = vmatpush1.bf16.msra.mxu0 %v4318
    %4639 = vmatprep.subr.bf16.mxu0 %v4315
    %4640 = vmatpush1.bf16.msra.mxu0 %v4314
    %4641 = vmatprep.subr.bf16.mxu0 %v4311
    %4642 = vmatpush1.bf16.msra.mxu0 %v4310
    %4643 = vmatprep.subr.bf16.mxu0 %v4307
    %4644 = vmatpush1.bf16.msra.mxu0 %v4306
    %4645 = vmatprep.subr.bf16.mxu0 %v4367
    %4646 = vmatpush2.bf16.msra.mxu0 %v4366
    %4647 = vmatprep.subr.bf16.mxu0 %v4363
    %4648 = vmatpush2.bf16.msra.mxu0 %v4362
    %4649 = vmatprep.subr.bf16.mxu0 %v4359
    %4650 = vmatpush2.bf16.msra.mxu0 %v4358
    %4651 = vmatprep.subr.bf16.mxu0 %v4355
    %4652 = vmatpush2.bf16.msra.mxu0 %v4354
    %4653 = vmatprep.subr.bf16.mxu0 %v4351
    %4654 = vmatpush2.bf16.msra.mxu0 %v4350
    %4655 = vmatprep.subr.bf16.mxu0 %v4347
    %4656 = vmatpush2.bf16.msra.mxu0 %v4346
    %4657 = vmatprep.subr.bf16.mxu0 %v4343
    %4658 = vmatpush2.bf16.msra.mxu0 %v4342
    %4659 = vmatprep.subr.bf16.mxu0 %v4339
    %4660 = vmatpush2.bf16.msra.mxu0 %v4338
    %4661 = vmatprep.mubr.bf16.mxu0 %v3934
    %4662 = vmatmul.mubr.bf16.gmra.mxu0 %v3931
    %v4663 = vpop.f32.mrf.mxu0
    %v4664 = vadd.f32 0.0, %v4663
    %v4665 = vpop.f32.mrf.mxu0
    %v4666 = vadd.f32 0.0, %v4665
    %v4667 = vpop.f32.mrf.mxu0
    %v4668 = vpop.f32.mrf.mxu0
    %4669 = vdwg.mxu0
    %4670 = vmatprep.subr.bf16.mxu0 %v4399
    %4671 = vmatpush1.bf16.msra.mxu0 %v4398
    %4672 = vmatprep.subr.bf16.mxu0 %v4395
    %4673 = vmatpush1.bf16.msra.mxu0 %v4394
    %4674 = vmatprep.subr.bf16.mxu0 %v4391
    %4675 = vmatpush1.bf16.msra.mxu0 %v4390
    %4676 = vmatprep.subr.bf16.mxu0 %v4387
    %4677 = vmatpush1.bf16.msra.mxu0 %v4386
    %4678 = vmatprep.subr.bf16.mxu0 %v4383
    %4679 = vmatpush1.bf16.msra.mxu0 %v4382
    %4680 = vmatprep.subr.bf16.mxu0 %v4379
    %4681 = vmatpush1.bf16.msra.mxu0 %v4378
    %4682 = vmatprep.subr.bf16.mxu0 %v4375
    %4683 = vmatpush1.bf16.msra.mxu0 %v4374
    %4684 = vmatprep.subr.bf16.mxu0 %v4371
    %4685 = vmatpush1.bf16.msra.mxu0 %v4370
    %4686 = vmatprep.subr.bf16.mxu0 0
    %4687 = vmatpush2.bf16.msra.mxu0 0
    %4688 = vmatprep.subr.bf16.mxu0 0
    %4689 = vmatpush2.bf16.msra.mxu0 0
    %4690 = vmatprep.subr.bf16.mxu0 %v4423
    %4691 = vmatpush2.bf16.msra.mxu0 %v4422
    %4692 = vmatprep.subr.bf16.mxu0 %v4419
    %4693 = vmatpush2.bf16.msra.mxu0 %v4418
    %4694 = vmatprep.subr.bf16.mxu0 %v4415
    %4695 = vmatpush2.bf16.msra.mxu0 %v4414
    %4696 = vmatprep.subr.bf16.mxu0 %v4411
    %4697 = vmatpush2.bf16.msra.mxu0 %v4410
    %4698 = vmatprep.subr.bf16.mxu0 %v4407
    %4699 = vmatpush2.bf16.msra.mxu0 %v4406
    %4700 = vmatprep.subr.bf16.mxu0 %v4403
    %4701 = vmatpush2.bf16.msra.mxu0 %v4402
    %4702 = vmatprep.mubr.bf16.mxu0 %v4545
    %4703 = vmatmul.mubr.bf16.gmra.mxu0 %v3937
    %v4704 = vpop.f32.mrf.mxu0
    %v4705 = vadd.f32 %v4664, %v4704
    %v4706 = vpop.f32.mrf.mxu0
    %v4707 = vadd.f32 %v4666, %v4706
    %v4708 = vpop.f32.mrf.mxu0
    %v4709 = vpop.f32.mrf.mxu0
    %4710 = vdwg.mxu0
    %s4711 = sshll.u32 %s1084, 4
    %4712 = dma.done %s139, %s4711
    %v4713 = vld [vmem:[%s138] sm:$0xff]
    %v4714 = vld [vmem:[%s138 + $0x8] sm:$0xff]
    %v4715 = vld [vmem:[%s138 + $0x10] sm:$0xff]
    %v4716 = vld [vmem:[%s138 + $0x18] sm:$0xff]
    %v4717 = vld [vmem:[%s138 + $0x20] sm:$0xff]
    %v4718 = vld [vmem:[%s138 + $0x28] sm:$0xff]
    %v4719 = vld [vmem:[%s138 + $0x30] sm:$0xff]
    %v4720 = vld [vmem:[%s138 + $0x38] sm:$0xff]
    %v4721 = vld [vmem:[%s138 + $0x40] sm:$0xff]
    %v4722 = vld [vmem:[%s138 + $0x48] sm:$0xff]
    %v4723 = vld [vmem:[%s138 + $0x50] sm:$0xff]
    %v4724 = vld [vmem:[%s138 + $0x58] sm:$0xff]
    %v4725 = vld [vmem:[%s138 + $0x60] sm:$0xff]
    %v4726 = vld [vmem:[%s138 + $0x68] sm:$0xff]
    %v4727 = vld [vmem:[%s138 + $0x70] sm:$0xff]
    %v4728 = vld [vmem:[%s138 + $0x78] sm:$0xff]
    %v4729 = vld [vmem:[%s138 + $0x80] sm:$0xff]
    %v4730 = vld [vmem:[%s138 + $0x88] sm:$0xff]
    %v4731 = vld [vmem:[%s138 + $0x90] sm:$0xff]
    %v4732 = vld [vmem:[%s138 + $0x98] sm:$0xff]
    %v4733 = vld [vmem:[%s138 + $0xa0] sm:$0xff]
    %v4734 = vld [vmem:[%s138 + $0xa8] sm:$0xff]
    %v4735 = vld [vmem:[%s138 + $0xb0] sm:$0xff]
    %v4736 = vld [vmem:[%s138 + $0xb8] sm:$0xff]
    %v4737 = vld [vmem:[%s138 + $0xc0] sm:$0xff]
    %v4738 = vld [vmem:[%s138 + $0xc8] sm:$0xff]
    %v4739 = vld [vmem:[%s138 + $0xd0] sm:$0xff]
    %v4740 = vld [vmem:[%s138 + $0xd8] sm:$0xff]
    %v4741 = vld [vmem:[%s138 + $0xe0] sm:$0xff]
    %v4742 = vld [vmem:[%s138 + $0xe8] sm:$0xff]
    %v4743 = vld [vmem:[%s138 + $0xf0] sm:$0xff]
    %v4744 = vld [vmem:[%s138 + $0xf8] sm:$0xff]
    %v4745 = vld [vmem:[%s138 + $0x100] sm:$0xff]
    %v4746 = vld [vmem:[%s138 + $0x108] sm:$0xff]
    %v4747 = vld [vmem:[%s138 + $0x110] sm:$0xff]
    %v4748 = vld [vmem:[%s138 + $0x118] sm:$0xff]
    %v4749 = vld [vmem:[%s138 + $0x120] sm:$0xff]
    %v4750 = vld [vmem:[%s138 + $0x128] sm:$0xff]
    %v4751 = vld [vmem:[%s138 + $0x130] sm:$0xff]
    %v4752 = vld [vmem:[%s138 + $0x138] sm:$0xff]
    %v4753 = vld [vmem:[%s138 + $0x140] sm:$0xff]
    %v4754 = vld [vmem:[%s138 + $0x148] sm:$0xff]
    %v4755 = vld [vmem:[%s138 + $0x150] sm:$0xff]
    %v4756 = vld [vmem:[%s138 + $0x158] sm:$0xff]
    %v4757 = vld [vmem:[%s138 + $0x160] sm:$0xff]
    %v4758 = vld [vmem:[%s138 + $0x168] sm:$0xff]
    %v4759 = vld [vmem:[%s138 + $0x170] sm:$0xff]
    %v4760 = vld [vmem:[%s138 + $0x178] sm:$0xff]
    %v4761 = vld [vmem:[%s138 + $0x180] sm:$0xff]
    %v4762 = vld [vmem:[%s138 + $0x188] sm:$0xff]
    %v4763 = vld [vmem:[%s138 + $0x190] sm:$0xff]
    %v4764 = vld [vmem:[%s138 + $0x198] sm:$0xff]
    %v4765 = vld [vmem:[%s138 + $0x1a0] sm:$0xff]
    %v4766 = vld [vmem:[%s138 + $0x1a8] sm:$0xff]
    %v4767 = vld [vmem:[%s138 + $0x1b0] sm:$0xff]
    %v4768 = vld [vmem:[%s138 + $0x1b8] sm:$0xff]
    %v4769 = vld [vmem:[%s138 + $0x1c0] sm:$0xff]
    %v4770 = vld [vmem:[%s138 + $0x1c8] sm:$0xff]
    %v4771 = vld [vmem:[%s138 + $0x1d0] sm:$0xff]
    %v4772 = vld [vmem:[%s138 + $0x1d8] sm:$0xff]
    %v4773 = vld [vmem:[%s138 + $0x1e0] sm:$0xff]
    %v4774 = vld [vmem:[%s138 + $0x1e8] sm:$0xff]
    %v4775 = vld [vmem:[%s138 + $0x1f0] sm:$0xff]
    %v4776 = vld [vmem:[%s138 + $0x1f8] sm:$0xff]
    %v4777 = vld [vmem:[%s138 + $0x200] sm:$0xff]
    %v4778 = vld [vmem:[%s138 + $0x208] sm:$0xff]
    %v4779 = vld [vmem:[%s138 + $0x210] sm:$0xff]
    %v4780 = vld [vmem:[%s138 + $0x218] sm:$0xff]
    %v4781 = vld [vmem:[%s138 + $0x220] sm:$0xff]
    %v4782 = vld [vmem:[%s138 + $0x228] sm:$0xff]
    %v4783 = vld [vmem:[%s138 + $0x230] sm:$0xff]
    %v4784 = vld [vmem:[%s138 + $0x238] sm:$0xff]
    %v4785 = vld [vmem:[%s138 + $0x240] sm:$0xff]
    %v4786 = vld [vmem:[%s138 + $0x248] sm:$0xff]
    %v4787 = vld [vmem:[%s138 + $0x250] sm:$0xff]
    %v4788 = vld [vmem:[%s138 + $0x258] sm:$0xff]
    %v4789 = vld [vmem:[%s138 + $0x260] sm:$0xff]
    %v4790 = vld [vmem:[%s138 + $0x268] sm:$0xff]
    %v4791 = vld [vmem:[%s138 + $0x270] sm:$0xff]
    %v4792 = vld [vmem:[%s138 + $0x278] sm:$0xff]
    %v4793 = vld [vmem:[%s138 + $0x280] sm:$0xff]
    %v4794 = vld [vmem:[%s138 + $0x288] sm:$0xff]
    %v4795 = vld [vmem:[%s138 + $0x290] sm:$0xff]
    %v4796 = vld [vmem:[%s138 + $0x298] sm:$0xff]
    %v4797 = vld [vmem:[%s138 + $0x2a0] sm:$0xff]
    %v4798 = vld [vmem:[%s138 + $0x2a8] sm:$0xff]
    %v4799 = vld [vmem:[%s138 + $0x2b0] sm:$0xff]
    %v4800 = vld [vmem:[%s138 + $0x2b8] sm:$0xff]
    %v4801 = vld [vmem:[%s138 + $0x2c0] sm:$0xff]
    %v4802 = vld [vmem:[%s138 + $0x2c8] sm:$0xff]
    %v4803 = vld [vmem:[%s138 + $0x2d0] sm:$0xff]
    %v4804 = vld [vmem:[%s138 + $0x2d8] sm:$0xff]
    %v4805 = vld [vmem:[%s138 + $0x2e0] sm:$0xff]
    %v4806 = vld [vmem:[%s138 + $0x2e8] sm:$0xff]
    %v4807 = vld [vmem:[%s138 + $0x2f0] sm:$0xff]
    %v4808 = vld [vmem:[%s138 + $0x2f8] sm:$0xff]
    %v4809 = vld [vmem:[%s138 + $0x300] sm:$0xff]
    %v4810 = vld [vmem:[%s138 + $0x308] sm:$0xff]
    %v4811 = vld [vmem:[%s138 + $0x310] sm:$0xff]
    %v4812 = vld [vmem:[%s138 + $0x318] sm:$0xff]
    %v4813 = vld [vmem:[%s138 + $0x320] sm:$0xff]
    %v4814 = vld [vmem:[%s138 + $0x328] sm:$0xff]
    %v4815 = vld [vmem:[%s138 + $0x330] sm:$0xff]
    %v4816 = vld [vmem:[%s138 + $0x338] sm:$0xff]
    %v4817 = vld [vmem:[%s138 + $0x340] sm:$0xff]
    %v4818 = vld [vmem:[%s138 + $0x348] sm:$0xff]
    %v4819 = vld [vmem:[%s138 + $0x350] sm:$0xff]
    %v4820 = vld [vmem:[%s138 + $0x358] sm:$0xff]
    %v4821 = vld [vmem:[%s138 + $0x360] sm:$0xff]
    %v4822 = vld [vmem:[%s138 + $0x368] sm:$0xff]
    %v4823 = vld [vmem:[%s138 + $0x370] sm:$0xff]
    %v4824 = vld [vmem:[%s138 + $0x378] sm:$0xff]
    %v4825 = vld [vmem:[%s138 + $0x380] sm:$0xff]
    %v4826 = vld [vmem:[%s138 + $0x388] sm:$0xff]
    %v4827 = vld [vmem:[%s138 + $0x390] sm:$0xff]
    %v4828 = vld [vmem:[%s138 + $0x398] sm:$0xff]
    %v4829 = vld [vmem:[%s138 + $0x3a0] sm:$0xff]
    %v4830 = vld [vmem:[%s138 + $0x3a8] sm:$0xff]
    %v4831 = vld [vmem:[%s138 + $0x3b0] sm:$0xff]
    %v4832 = vld [vmem:[%s138 + $0x3b8] sm:$0xff]
    %v4837 = vrot.slane %v2915, 1
    %v4838 = vrot.slane %v2916, 1
    %v4839 = vrot.slane %v2917, 1
    %v4840 = vrot.slane %v2918, 1
    %v4964 = vunpack.c.l.b16 %v4713
    %v4965 = vunpack.c.h.b16 %v4713
    %v4966 = vunpack.c.l.b16 %v4714
    %v4967 = vunpack.c.h.b16 %v4714
    %v4968 = vunpack.c.l.b16 %v4715
    %v4969 = vunpack.c.h.b16 %v4715
    %v4970 = vunpack.c.l.b16 %v4716
    %v4971 = vunpack.c.h.b16 %v4716
    %v4972 = vunpack.c.l.b16 %v4717
    %v4973 = vunpack.c.h.b16 %v4717
    %v4974 = vunpack.c.l.b16 %v4718
    %v4975 = vunpack.c.h.b16 %v4718
    %v4976 = vunpack.c.l.b16 %v4719
    %v4977 = vunpack.c.h.b16 %v4719
    %v4978 = vunpack.c.l.b16 %v4720
    %v4979 = vunpack.c.h.b16 %v4720
    %v4980 = vunpack.c.l.b16 %v4721
    %v4981 = vunpack.c.h.b16 %v4721
    %v4982 = vunpack.c.l.b16 %v4722
    %v4983 = vunpack.c.h.b16 %v4722
    %v4984 = vunpack.c.l.b16 %v4723
    %v4985 = vunpack.c.h.b16 %v4723
    %v4986 = vunpack.c.l.b16 %v4724
    %v4987 = vunpack.c.h.b16 %v4724
    %v4988 = vunpack.c.l.b16 %v4725
    %v4989 = vunpack.c.h.b16 %v4725
    %v4990 = vunpack.c.l.b16 %v4726
    %v4991 = vunpack.c.h.b16 %v4726
    %v4992 = vunpack.c.l.b16 %v4727
    %v4993 = vunpack.c.h.b16 %v4727
    %v4994 = vunpack.c.l.b16 %v4728
    %v4995 = vunpack.c.h.b16 %v4728
    %v4996 = vunpack.c.l.b16 %v4729
    %v4997 = vunpack.c.h.b16 %v4729
    %v4998 = vunpack.c.l.b16 %v4730
    %v4999 = vunpack.c.h.b16 %v4730
    %v5000 = vunpack.c.l.b16 %v4731
    %v5001 = vunpack.c.h.b16 %v4731
    %v5002 = vunpack.c.l.b16 %v4732
    %v5003 = vunpack.c.h.b16 %v4732
    %v5004 = vunpack.c.l.b16 %v4733
    %v5005 = vunpack.c.h.b16 %v4733
    %v5006 = vunpack.c.l.b16 %v4734
    %v5007 = vunpack.c.h.b16 %v4734
    %v5008 = vunpack.c.l.b16 %v4735
    %v5009 = vunpack.c.h.b16 %v4735
    %v5010 = vunpack.c.l.b16 %v4736
    %v5011 = vunpack.c.h.b16 %v4736
    %v5012 = vunpack.c.l.b16 %v4737
    %v5013 = vunpack.c.h.b16 %v4737
    %v5014 = vunpack.c.l.b16 %v4738
    %v5015 = vunpack.c.h.b16 %v4738
    %v5016 = vunpack.c.l.b16 %v4739
    %v5017 = vunpack.c.h.b16 %v4739
    %v5018 = vunpack.c.l.b16 %v4740
    %v5019 = vunpack.c.h.b16 %v4740
    %v5020 = vunpack.c.l.b16 %v4741
    %v5021 = vunpack.c.h.b16 %v4741
    %v5022 = vunpack.c.l.b16 %v4742
    %v5023 = vunpack.c.h.b16 %v4742
    %v5024 = vunpack.c.l.b16 %v4743
    %v5025 = vunpack.c.h.b16 %v4743
    %v5026 = vunpack.c.l.b16 %v4744
    %v5027 = vunpack.c.h.b16 %v4744
    %v5028 = vunpack.c.l.b16 %v4745
    %v5029 = vunpack.c.h.b16 %v4745
    %v5030 = vunpack.c.l.b16 %v4746
    %v5031 = vunpack.c.h.b16 %v4746
    %v5032 = vunpack.c.l.b16 %v4747
    %v5033 = vunpack.c.h.b16 %v4747
    %v5034 = vunpack.c.l.b16 %v4748
    %v5035 = vunpack.c.h.b16 %v4748
    %v5036 = vunpack.c.l.b16 %v4749
    %v5037 = vunpack.c.h.b16 %v4749
    %v5038 = vunpack.c.l.b16 %v4750
    %v5039 = vunpack.c.h.b16 %v4750
    %v5040 = vunpack.c.l.b16 %v4751
    %v5041 = vunpack.c.h.b16 %v4751
    %v5042 = vunpack.c.l.b16 %v4752
    %v5043 = vunpack.c.h.b16 %v4752
    %v5044 = vunpack.c.l.b16 %v4753
    %v5045 = vunpack.c.h.b16 %v4753
    %v5046 = vunpack.c.l.b16 %v4754
    %v5047 = vunpack.c.h.b16 %v4754
    %v5048 = vunpack.c.l.b16 %v4755
    %v5049 = vunpack.c.h.b16 %v4755
    %v5050 = vunpack.c.l.b16 %v4756
    %v5051 = vunpack.c.h.b16 %v4756
    %v5052 = vunpack.c.l.b16 %v4757
    %v5053 = vunpack.c.h.b16 %v4757
    %v5054 = vunpack.c.l.b16 %v4758
    %v5055 = vunpack.c.h.b16 %v4758
    %v5056 = vunpack.c.l.b16 %v4759
    %v5057 = vunpack.c.h.b16 %v4759
    %v5058 = vunpack.c.l.b16 %v4760
    %v5059 = vunpack.c.h.b16 %v4760
    %v5060 = vunpack.c.l.b16 %v4761
    %v5061 = vunpack.c.h.b16 %v4761
    %v5062 = vunpack.c.l.b16 %v4762
    %v5063 = vunpack.c.h.b16 %v4762
    %v5064 = vunpack.c.l.b16 %v4763
    %v5065 = vunpack.c.h.b16 %v4763
    %v5066 = vunpack.c.l.b16 %v4764
    %v5067 = vunpack.c.h.b16 %v4764
    %v5068 = vunpack.c.l.b16 %v4765
    %v5069 = vunpack.c.h.b16 %v4765
    %v5070 = vunpack.c.l.b16 %v4766
    %v5071 = vunpack.c.h.b16 %v4766
    %v5072 = vunpack.c.l.b16 %v4767
    %v5073 = vunpack.c.h.b16 %v4767
    %v5074 = vunpack.c.l.b16 %v4768
    %v5075 = vunpack.c.h.b16 %v4768
    %v5076 = vunpack.c.l.b16 %v4769
    %v5077 = vunpack.c.h.b16 %v4769
    %v5078 = vunpack.c.l.b16 %v4770
    %v5079 = vunpack.c.h.b16 %v4770
    %v5080 = vunpack.c.l.b16 %v4771
    %v5081 = vunpack.c.h.b16 %v4771
    %v5082 = vunpack.c.l.b16 %v4772
    %v5083 = vunpack.c.h.b16 %v4772
    %v5084 = vunpack.c.l.b16 %v4773
    %v5085 = vunpack.c.h.b16 %v4773
    %v5086 = vunpack.c.l.b16 %v4774
    %v5087 = vunpack.c.h.b16 %v4774
    %v5088 = vunpack.c.l.b16 %v4775
    %v5089 = vunpack.c.h.b16 %v4775
    %v5090 = vunpack.c.l.b16 %v4776
    %v5091 = vunpack.c.h.b16 %v4776
    %v5092 = vunpack.c.l.b16 %v4777
    %v5093 = vunpack.c.h.b16 %v4777
    %v5094 = vunpack.c.l.b16 %v4778
    %v5095 = vunpack.c.h.b16 %v4778
    %v5096 = vunpack.c.l.b16 %v4779
    %v5097 = vunpack.c.h.b16 %v4779
    %v5098 = vunpack.c.l.b16 %v4780
    %v5099 = vunpack.c.h.b16 %v4780
    %v5100 = vunpack.c.l.b16 %v4781
    %v5101 = vunpack.c.h.b16 %v4781
    %v5102 = vunpack.c.l.b16 %v4782
    %v5103 = vunpack.c.h.b16 %v4782
    %v5104 = vunpack.c.l.b16 %v4783
    %v5105 = vunpack.c.h.b16 %v4783
    %v5106 = vunpack.c.l.b16 %v4784
    %v5107 = vunpack.c.h.b16 %v4784
    %v5108 = vunpack.c.l.b16 %v4785
    %v5109 = vunpack.c.h.b16 %v4785
    %v5110 = vunpack.c.l.b16 %v4786
    %v5111 = vunpack.c.h.b16 %v4786
    %v5112 = vunpack.c.l.b16 %v4787
    %v5113 = vunpack.c.h.b16 %v4787
    %v5114 = vunpack.c.l.b16 %v4788
    %v5115 = vunpack.c.h.b16 %v4788
    %v5116 = vunpack.c.l.b16 %v4789
    %v5117 = vunpack.c.h.b16 %v4789
    %v5118 = vunpack.c.l.b16 %v4790
    %v5119 = vunpack.c.h.b16 %v4790
    %v5120 = vunpack.c.l.b16 %v4791
    %v5121 = vunpack.c.h.b16 %v4791
    %v5122 = vunpack.c.l.b16 %v4792
    %v5123 = vunpack.c.h.b16 %v4792
    %v5124 = vunpack.c.l.b16 %v4793
    %v5125 = vunpack.c.h.b16 %v4793
    %v5126 = vunpack.c.l.b16 %v4794
    %v5127 = vunpack.c.h.b16 %v4794
    %v5128 = vunpack.c.l.b16 %v4795
    %v5129 = vunpack.c.h.b16 %v4795
    %v5130 = vunpack.c.l.b16 %v4796
    %v5131 = vunpack.c.h.b16 %v4796
    %v5132 = vunpack.c.l.b16 %v4797
    %v5133 = vunpack.c.h.b16 %v4797
    %v5134 = vunpack.c.l.b16 %v4798
    %v5135 = vunpack.c.h.b16 %v4798
    %v5136 = vunpack.c.l.b16 %v4799
    %v5137 = vunpack.c.h.b16 %v4799
    %v5138 = vunpack.c.l.b16 %v4800
    %v5139 = vunpack.c.h.b16 %v4800
    %v5140 = vunpack.c.l.b16 %v4801
    %v5141 = vunpack.c.h.b16 %v4801
    %v5142 = vunpack.c.l.b16 %v4802
    %v5143 = vunpack.c.h.b16 %v4802
    %v5144 = vunpack.c.l.b16 %v4803
    %v5145 = vunpack.c.h.b16 %v4803
    %v5146 = vunpack.c.l.b16 %v4804
    %v5147 = vunpack.c.h.b16 %v4804
    %v5148 = vunpack.c.l.b16 %v4805
    %v5149 = vunpack.c.h.b16 %v4805
    %v5150 = vunpack.c.l.b16 %v4806
    %v5151 = vunpack.c.h.b16 %v4806
    %v5152 = vunpack.c.l.b16 %v4807
    %v5153 = vunpack.c.h.b16 %v4807
    %v5154 = vunpack.c.l.b16 %v4808
    %v5155 = vunpack.c.h.b16 %v4808
    %v5156 = vunpack.c.l.b16 %v4809
    %v5157 = vunpack.c.h.b16 %v4809
    %v5158 = vunpack.c.l.b16 %v4810
    %v5159 = vunpack.c.h.b16 %v4810
    %v5160 = vunpack.c.l.b16 %v4811
    %v5161 = vunpack.c.h.b16 %v4811
    %v5162 = vunpack.c.l.b16 %v4812
    %v5163 = vunpack.c.h.b16 %v4812
    %v5164 = vunpack.c.l.b16 %v4813
    %v5165 = vunpack.c.h.b16 %v4813
    %v5166 = vunpack.c.l.b16 %v4814
    %v5167 = vunpack.c.h.b16 %v4814
    %v5168 = vunpack.c.l.b16 %v4815
    %v5169 = vunpack.c.h.b16 %v4815
    %v5170 = vunpack.c.l.b16 %v4816
    %v5171 = vunpack.c.h.b16 %v4816
    %v5172 = vunpack.c.l.b16 %v4817
    %v5173 = vunpack.c.h.b16 %v4817
    %v5174 = vunpack.c.l.b16 %v4818
    %v5175 = vunpack.c.h.b16 %v4818
    %v5176 = vunpack.c.l.b16 %v4819
    %v5177 = vunpack.c.h.b16 %v4819
    %v5178 = vunpack.c.l.b16 %v4820
    %v5179 = vunpack.c.h.b16 %v4820
    %v5180 = vunpack.c.l.b16 %v4821
    %v5181 = vunpack.c.h.b16 %v4821
    %v5182 = vunpack.c.l.b16 %v4822
    %v5183 = vunpack.c.h.b16 %v4822
    %v5184 = vunpack.c.l.b16 %v4823
    %v5185 = vunpack.c.h.b16 %v4823
    %v5186 = vunpack.c.l.b16 %v4824
    %v5187 = vunpack.c.h.b16 %v4824
    %v5188 = vunpack.c.l.b16 %v4825
    %v5189 = vunpack.c.h.b16 %v4825
    %v5190 = vunpack.c.l.b16 %v4826
    %v5191 = vunpack.c.h.b16 %v4826
    %v5192 = vunpack.c.l.b16 %v4827
    %v5193 = vunpack.c.h.b16 %v4827
    %v5194 = vunpack.c.l.b16 %v4828
    %v5195 = vunpack.c.h.b16 %v4828
    %v5196 = vunpack.c.l.b16 %v4829
    %v5197 = vunpack.c.h.b16 %v4829
    %v5198 = vunpack.c.l.b16 %v4830
    %v5199 = vunpack.c.h.b16 %v4830
    %v5200 = vunpack.c.l.b16 %v4831
    %v5201 = vunpack.c.h.b16 %v4831
    %v5202 = vunpack.c.l.b16 %v4832
    %v5203 = vunpack.c.h.b16 %v4832
    %v5204 = vpack.c.b16 %v4968, %v4964
    %v5205 = vpack.c.b16 %v4969, %v4965
    %v5206 = vpack.c.b16 %v4970, %v4966
    %v5207 = vpack.c.b16 %v4971, %v4967
    %v5208 = vpack.c.b16 %v4976, %v4972
    %v5209 = vpack.c.b16 %v4977, %v4973
    %v5210 = vpack.c.b16 %v4978, %v4974
    %v5211 = vpack.c.b16 %v4979, %v4975
    %v5212 = vpack.c.b16 %v4984, %v4980
    %v5213 = vpack.c.b16 %v4985, %v4981
    %v5214 = vpack.c.b16 %v4986, %v4982
    %v5215 = vpack.c.b16 %v4987, %v4983
    %v5216 = vpack.c.b16 %v4992, %v4988
    %v5217 = vpack.c.b16 %v4993, %v4989
    %v5218 = vpack.c.b16 %v4994, %v4990
    %v5219 = vpack.c.b16 %v4995, %v4991
    %v5220 = vpack.c.b16 %v5000, %v4996
    %v5221 = vpack.c.b16 %v5001, %v4997
    %v5222 = vpack.c.b16 %v5002, %v4998
    %v5223 = vpack.c.b16 %v5003, %v4999
    %v5224 = vpack.c.b16 %v5008, %v5004
    %v5225 = vpack.c.b16 %v5009, %v5005
    %v5226 = vpack.c.b16 %v5010, %v5006
    %v5227 = vpack.c.b16 %v5011, %v5007
    %v5228 = vpack.c.b16 %v5016, %v5012
    %v5229 = vpack.c.b16 %v5017, %v5013
    %v5230 = vpack.c.b16 %v5018, %v5014
    %v5231 = vpack.c.b16 %v5019, %v5015
    %v5232 = vpack.c.b16 %v5024, %v5020
    %v5233 = vpack.c.b16 %v5025, %v5021
    %v5234 = vpack.c.b16 %v5026, %v5022
    %v5235 = vpack.c.b16 %v5027, %v5023
    %v5236 = vpack.c.b16 %v5032, %v5028
    %v5237 = vpack.c.b16 %v5033, %v5029
    %v5238 = vpack.c.b16 %v5034, %v5030
    %v5239 = vpack.c.b16 %v5035, %v5031
    %v5240 = vpack.c.b16 %v5040, %v5036
    %v5241 = vpack.c.b16 %v5041, %v5037
    %v5242 = vpack.c.b16 %v5042, %v5038
    %v5243 = vpack.c.b16 %v5043, %v5039
    %v5244 = vpack.c.b16 %v5048, %v5044
    %v5245 = vpack.c.b16 %v5049, %v5045
    %v5246 = vpack.c.b16 %v5050, %v5046
    %v5247 = vpack.c.b16 %v5051, %v5047
    %v5248 = vpack.c.b16 %v5056, %v5052
    %v5249 = vpack.c.b16 %v5057, %v5053
    %v5250 = vpack.c.b16 %v5058, %v5054
    %v5251 = vpack.c.b16 %v5059, %v5055
    %v5252 = vpack.c.b16 %v5064, %v5060
    %v5253 = vpack.c.b16 %v5065, %v5061
    %v5254 = vpack.c.b16 %v5066, %v5062
    %v5255 = vpack.c.b16 %v5067, %v5063
    %v5256 = vpack.c.b16 %v5072, %v5068
    %v5257 = vpack.c.b16 %v5073, %v5069
    %v5258 = vpack.c.b16 %v5074, %v5070
    %v5259 = vpack.c.b16 %v5075, %v5071
    %v5260 = vpack.c.b16 %v5080, %v5076
    %v5261 = vpack.c.b16 %v5081, %v5077
    %v5262 = vpack.c.b16 %v5082, %v5078
    %v5263 = vpack.c.b16 %v5083, %v5079
    %v5264 = vpack.c.b16 %v5088, %v5084
    %v5265 = vpack.c.b16 %v5089, %v5085
    %v5266 = vpack.c.b16 %v5090, %v5086
    %v5267 = vpack.c.b16 %v5091, %v5087
    %v5268 = vpack.c.b16 %v5096, %v5092
    %v5269 = vpack.c.b16 %v5097, %v5093
    %v5270 = vpack.c.b16 %v5098, %v5094
    %v5271 = vpack.c.b16 %v5099, %v5095
    %v5272 = vpack.c.b16 %v5104, %v5100
    %v5273 = vpack.c.b16 %v5105, %v5101
    %v5274 = vpack.c.b16 %v5106, %v5102
    %v5275 = vpack.c.b16 %v5107, %v5103
    %v5276 = vpack.c.b16 %v5112, %v5108
    %v5277 = vpack.c.b16 %v5113, %v5109
    %v5278 = vpack.c.b16 %v5114, %v5110
    %v5279 = vpack.c.b16 %v5115, %v5111
    %v5280 = vpack.c.b16 %v5120, %v5116
    %v5281 = vpack.c.b16 %v5121, %v5117
    %v5282 = vpack.c.b16 %v5122, %v5118
    %v5283 = vpack.c.b16 %v5123, %v5119
    %v5284 = vpack.c.b16 %v5128, %v5124
    %v5285 = vpack.c.b16 %v5129, %v5125
    %v5286 = vpack.c.b16 %v5130, %v5126
    %v5287 = vpack.c.b16 %v5131, %v5127
    %v5288 = vpack.c.b16 %v5136, %v5132
    %v5289 = vpack.c.b16 %v5137, %v5133
    %v5290 = vpack.c.b16 %v5138, %v5134
    %v5291 = vpack.c.b16 %v5139, %v5135
    %v5292 = vpack.c.b16 %v5144, %v5140
    %v5293 = vpack.c.b16 %v5145, %v5141
    %v5294 = vpack.c.b16 %v5146, %v5142
    %v5295 = vpack.c.b16 %v5147, %v5143
    %v5296 = vpack.c.b16 %v5152, %v5148
    %v5297 = vpack.c.b16 %v5153, %v5149
    %v5298 = vpack.c.b16 %v5154, %v5150
    %v5299 = vpack.c.b16 %v5155, %v5151
    %v5300 = vpack.c.b16 %v5160, %v5156
    %v5301 = vpack.c.b16 %v5161, %v5157
    %v5302 = vpack.c.b16 %v5162, %v5158
    %v5303 = vpack.c.b16 %v5163, %v5159
    %v5304 = vpack.c.b16 %v5168, %v5164
    %v5305 = vpack.c.b16 %v5169, %v5165
    %v5306 = vpack.c.b16 %v5170, %v5166
    %v5307 = vpack.c.b16 %v5171, %v5167
    %v5308 = vpack.c.b16 %v5176, %v5172
    %v5309 = vpack.c.b16 %v5177, %v5173
    %v5310 = vpack.c.b16 %v5178, %v5174
    %v5311 = vpack.c.b16 %v5179, %v5175
    %v5312 = vpack.c.b16 %v5184, %v5180
    %v5313 = vpack.c.b16 %v5185, %v5181
    %v5314 = vpack.c.b16 %v5186, %v5182
    %v5315 = vpack.c.b16 %v5187, %v5183
    %v5316 = vpack.c.b16 %v5192, %v5188
    %v5317 = vpack.c.b16 %v5193, %v5189
    %v5318 = vpack.c.b16 %v5194, %v5190
    %v5319 = vpack.c.b16 %v5195, %v5191
    %v5320 = vpack.c.b16 %v5200, %v5196
    %v5321 = vpack.c.b16 %v5201, %v5197
    %v5322 = vpack.c.b16 %v5202, %v5198
    %v5323 = vpack.c.b16 %v5203, %v5199
    %v5445 = vsel %vm915, %v4840, 0
    %5447 = vmatprep.subr.bf16.mxu0 %v5233
    %5448 = vmatpush1.bf16.msra.mxu0 %v5232
    %5449 = vmatprep.subr.bf16.mxu0 %v5229
    %5450 = vmatpush1.bf16.msra.mxu0 %v5228
    %5451 = vmatprep.subr.bf16.mxu0 %v5225
    %5452 = vmatpush1.bf16.msra.mxu0 %v5224
    %5453 = vmatprep.subr.bf16.mxu0 %v5221
    %5454 = vmatpush1.bf16.msra.mxu0 %v5220
    %5455 = vmatprep.subr.bf16.mxu0 %v5217
    %5456 = vmatpush1.bf16.msra.mxu0 %v5216
    %5457 = vmatprep.subr.bf16.mxu0 %v5213
    %5458 = vmatpush1.bf16.msra.mxu0 %v5212
    %5459 = vmatprep.subr.bf16.mxu0 %v5209
    %5460 = vmatpush1.bf16.msra.mxu0 %v5208
    %5461 = vmatprep.subr.bf16.mxu0 %v5205
    %5462 = vmatpush1.bf16.msra.mxu0 %v5204
    %5463 = vmatprep.subr.bf16.mxu0 %v5265
    %5464 = vmatpush2.bf16.msra.mxu0 %v5264
    %5465 = vmatprep.subr.bf16.mxu0 %v5261
    %5466 = vmatpush2.bf16.msra.mxu0 %v5260
    %5467 = vmatprep.subr.bf16.mxu0 %v5257
    %5468 = vmatpush2.bf16.msra.mxu0 %v5256
    %5469 = vmatprep.subr.bf16.mxu0 %v5253
    %5470 = vmatpush2.bf16.msra.mxu0 %v5252
    %5471 = vmatprep.subr.bf16.mxu0 %v5249
    %5472 = vmatpush2.bf16.msra.mxu0 %v5248
    %5473 = vmatprep.subr.bf16.mxu0 %v5245
    %5474 = vmatpush2.bf16.msra.mxu0 %v5244
    %5475 = vmatprep.subr.bf16.mxu0 %v5241
    %5476 = vmatpush2.bf16.msra.mxu0 %v5240
    %5477 = vmatprep.subr.bf16.mxu0 %v5237
    %5478 = vmatpush2.bf16.msra.mxu0 %v5236
    %5479 = vmatprep.mubr.bf16.mxu0 %v4838
    %5480 = vmatmul.mubr.bf16.gmra.mxu0 %v4837
    %v5481 = vpop.f32.mrf.mxu0
    %v5482 = vadd.f32 0.0, %v5481
    %v5483 = vpop.f32.mrf.mxu0
    %v5484 = vadd.f32 0.0, %v5483
    %v5485 = vpop.f32.mrf.mxu0
    %v5486 = vpop.f32.mrf.mxu0
    %5487 = vdwg.mxu0
    %5488 = vmatprep.subr.bf16.mxu0 %v5297
    %5489 = vmatpush1.bf16.msra.mxu0 %v5296
    %5490 = vmatprep.subr.bf16.mxu0 %v5293
    %5491 = vmatpush1.bf16.msra.mxu0 %v5292
    %5492 = vmatprep.subr.bf16.mxu0 %v5289
    %5493 = vmatpush1.bf16.msra.mxu0 %v5288
    %5494 = vmatprep.subr.bf16.mxu0 %v5285
    %5495 = vmatpush1.bf16.msra.mxu0 %v5284
    %5496 = vmatprep.subr.bf16.mxu0 %v5281
    %5497 = vmatpush1.bf16.msra.mxu0 %v5280
    %5498 = vmatprep.subr.bf16.mxu0 %v5277
    %5499 = vmatpush1.bf16.msra.mxu0 %v5276
    %5500 = vmatprep.subr.bf16.mxu0 %v5273
    %5501 = vmatpush1.bf16.msra.mxu0 %v5272
    %5502 = vmatprep.subr.bf16.mxu0 %v5269
    %5503 = vmatpush1.bf16.msra.mxu0 %v5268
    %5504 = vmatprep.subr.bf16.mxu0 0
    %5505 = vmatpush2.bf16.msra.mxu0 0
    %5506 = vmatprep.subr.bf16.mxu0 0
    %5507 = vmatpush2.bf16.msra.mxu0 0
    %5508 = vmatprep.subr.bf16.mxu0 %v5321
    %5509 = vmatpush2.bf16.msra.mxu0 %v5320
    %5510 = vmatprep.subr.bf16.mxu0 %v5317
    %5511 = vmatpush2.bf16.msra.mxu0 %v5316
    %5512 = vmatprep.subr.bf16.mxu0 %v5313
    %5513 = vmatpush2.bf16.msra.mxu0 %v5312
    %5514 = vmatprep.subr.bf16.mxu0 %v5309
    %5515 = vmatpush2.bf16.msra.mxu0 %v5308
    %5516 = vmatprep.subr.bf16.mxu0 %v5305
    %5517 = vmatpush2.bf16.msra.mxu0 %v5304
    %5518 = vmatprep.subr.bf16.mxu0 %v5301
    %5519 = vmatpush2.bf16.msra.mxu0 %v5300
    %5520 = vmatprep.mubr.bf16.mxu0 %v5445
    %5521 = vmatmul.mubr.bf16.gmra.mxu0 %v4839
    %v5522 = vpop.f32.mrf.mxu0
    %v5523 = vadd.f32 %v5482, %v5522
    %v5524 = vpop.f32.mrf.mxu0
    %v5525 = vadd.f32 %v5484, %v5524
    %v5526 = vpop.f32.mrf.mxu0
    %v5527 = vpop.f32.mrf.mxu0
    %5528 = vdwg.mxu0
    %5529 = vmatprep.subr.bf16.mxu0 %v5235
    %5530 = vmatpush1.bf16.msra.mxu0 %v5234
    %5531 = vmatprep.subr.bf16.mxu0 %v5231
    %5532 = vmatpush1.bf16.msra.mxu0 %v5230
    %5533 = vmatprep.subr.bf16.mxu0 %v5227
    %5534 = vmatpush1.bf16.msra.mxu0 %v5226
    %5535 = vmatprep.subr.bf16.mxu0 %v5223
    %5536 = vmatpush1.bf16.msra.mxu0 %v5222
    %5537 = vmatprep.subr.bf16.mxu0 %v5219
    %5538 = vmatpush1.bf16.msra.mxu0 %v5218
    %5539 = vmatprep.subr.bf16.mxu0 %v5215
    %5540 = vmatpush1.bf16.msra.mxu0 %v5214
    %5541 = vmatprep.subr.bf16.mxu0 %v5211
    %5542 = vmatpush1.bf16.msra.mxu0 %v5210
    %5543 = vmatprep.subr.bf16.mxu0 %v5207
    %5544 = vmatpush1.bf16.msra.mxu0 %v5206
    %5545 = vmatprep.subr.bf16.mxu0 %v5267
    %5546 = vmatpush2.bf16.msra.mxu0 %v5266
    %5547 = vmatprep.subr.bf16.mxu0 %v5263
    %5548 = vmatpush2.bf16.msra.mxu0 %v5262
    %5549 = vmatprep.subr.bf16.mxu0 %v5259
    %5550 = vmatpush2.bf16.msra.mxu0 %v5258
    %5551 = vmatprep.subr.bf16.mxu0 %v5255
    %5552 = vmatpush2.bf16.msra.mxu0 %v5254
    %5553 = vmatprep.subr.bf16.mxu0 %v5251
    %5554 = vmatpush2.bf16.msra.mxu0 %v5250
    %5555 = vmatprep.subr.bf16.mxu0 %v5247
    %5556 = vmatpush2.bf16.msra.mxu0 %v5246
    %5557 = vmatprep.subr.bf16.mxu0 %v5243
    %5558 = vmatpush2.bf16.msra.mxu0 %v5242
    %5559 = vmatprep.subr.bf16.mxu0 %v5239
    %5560 = vmatpush2.bf16.msra.mxu0 %v5238
    %5561 = vmatprep.mubr.bf16.mxu0 %v4838
    %5562 = vmatmul.mubr.bf16.gmra.mxu0 %v4837
    %v5563 = vpop.f32.mrf.mxu0
    %v5564 = vadd.f32 0.0, %v5563
    %v5565 = vpop.f32.mrf.mxu0
    %v5566 = vadd.f32 0.0, %v5565
    %v5567 = vpop.f32.mrf.mxu0
    %v5568 = vpop.f32.mrf.mxu0
    %5569 = vdwg.mxu0
    %5570 = vmatprep.subr.bf16.mxu0 %v5299
    %5571 = vmatpush1.bf16.msra.mxu0 %v5298
    %5572 = vmatprep.subr.bf16.mxu0 %v5295
    %5573 = vmatpush1.bf16.msra.mxu0 %v5294
    %5574 = vmatprep.subr.bf16.mxu0 %v5291
    %5575 = vmatpush1.bf16.msra.mxu0 %v5290
    %5576 = vmatprep.subr.bf16.mxu0 %v5287
    %5577 = vmatpush1.bf16.msra.mxu0 %v5286
    %5578 = vmatprep.subr.bf16.mxu0 %v5283
    %5579 = vmatpush1.bf16.msra.mxu0 %v5282
    %5580 = vmatprep.subr.bf16.mxu0 %v5279
    %5581 = vmatpush1.bf16.msra.mxu0 %v5278
    %5582 = vmatprep.subr.bf16.mxu0 %v5275
    %5583 = vmatpush1.bf16.msra.mxu0 %v5274
    %5584 = vmatprep.subr.bf16.mxu0 %v5271
    %5585 = vmatpush1.bf16.msra.mxu0 %v5270
    %5586 = vmatprep.subr.bf16.mxu0 0
    %5587 = vmatpush2.bf16.msra.mxu0 0
    %5588 = vmatprep.subr.bf16.mxu0 0
    %5589 = vmatpush2.bf16.msra.mxu0 0
    %5590 = vmatprep.subr.bf16.mxu0 %v5323
    %5591 = vmatpush2.bf16.msra.mxu0 %v5322
    %5592 = vmatprep.subr.bf16.mxu0 %v5319
    %5593 = vmatpush2.bf16.msra.mxu0 %v5318
    %5594 = vmatprep.subr.bf16.mxu0 %v5315
    %5595 = vmatpush2.bf16.msra.mxu0 %v5314
    %5596 = vmatprep.subr.bf16.mxu0 %v5311
    %5597 = vmatpush2.bf16.msra.mxu0 %v5310
    %5598 = vmatprep.subr.bf16.mxu0 %v5307
    %5599 = vmatpush2.bf16.msra.mxu0 %v5306
    %5600 = vmatprep.subr.bf16.mxu0 %v5303
    %5601 = vmatpush2.bf16.msra.mxu0 %v5302
    %5602 = vmatprep.mubr.bf16.mxu0 %v5445
    %5603 = vmatmul.mubr.bf16.gmra.mxu0 %v4839
    %v5604 = vpop.f32.mrf.mxu0
    %v5605 = vadd.f32 %v5564, %v5604
    %v5606 = vpop.f32.mrf.mxu0
    %v5607 = vadd.f32 %v5566, %v5606
    %v5608 = vpop.f32.mrf.mxu0
    %v5609 = vpop.f32.mrf.mxu0
    %5610 = vdwg.mxu0
    %v5611 = vld [vmem:[#allocation14] sm:$0xf]
    %v5616 = vcombine.low %v3720, %v3722
    %v5617 = vcombine.low %v3802, %v3804
    %v5619 = vunpack.c.l.s4 1966171168
    %v5620 = vunpack.c.0.s8 %v5619
    %v5621 = vlaneseq
    %v5622 = vshrl.u32 %v5621, 7
    %v5623 = vsub.s32 %v5620, %v5622
    %v5624 = vrot.slane %v5616, %v5623
    %v5626 = vunpack.c.l.s4 1966171168
    %v5627 = vunpack.c.0.s8 %v5626
    %v5628 = vlaneseq
    %v5629 = vshrl.u32 %v5628, 7
    %v5630 = vsub.s32 %v5627, %v5629
    %v5631 = vrot.slane %v5617, %v5630
    %v5632 = vcombine.low %v5624, %v5631
    %v5634 = vunpack.c.l.s4 1966171168
    %v5635 = vunpack.c.0.s8 %v5634
    %v5636 = vlaneseq
    %v5637 = vshrl.u32 %v5636, 7
    %v5638 = vsub.s32 %v5635, %v5637
    %v5639 = vrot.slane %v5632, %v5638
    %v5641 = vadd.f32 %v5611, %v5639
    %v5646 = vcombine.low %v4623, %v4625
    %v5647 = vcombine.low %v4705, %v4707
    %v5649 = vunpack.c.l.s4 1966171168
    %v5650 = vunpack.c.0.s8 %v5649
    %v5651 = vlaneseq
    %v5652 = vshrl.u32 %v5651, 7
    %v5653 = vsub.s32 %v5650, %v5652
    %v5654 = vrot.slane %v5646, %v5653
    %v5656 = vunpack.c.l.s4 1966171168
    %v5657 = vunpack.c.0.s8 %v5656
    %v5658 = vlaneseq
    %v5659 = vshrl.u32 %v5658, 7
    %v5660 = vsub.s32 %v5657, %v5659
    %v5661 = vrot.slane %v5647, %v5660
    %v5662 = vcombine.low %v5654, %v5661
    %v5664 = vunpack.c.l.s4 1966171168
    %v5665 = vunpack.c.0.s8 %v5664
    %v5666 = vlaneseq
    %v5667 = vshrl.u32 %v5666, 7
    %v5668 = vsub.s32 %v5665, %v5667
    %v5669 = vrot.slane %v5662, %v5668
    %v5671 = vadd.f32 %v5641, %v5669
    %v5676 = vcombine.low %v5523, %v5525
    %v5677 = vcombine.low %v5605, %v5607
    %v5679 = vunpack.c.l.s4 1966171168
    %v5680 = vunpack.c.0.s8 %v5679
    %v5681 = vlaneseq
    %v5682 = vshrl.u32 %v5681, 7
    %v5683 = vsub.s32 %v5680, %v5682
    %v5684 = vrot.slane %v5676, %v5683
    %v5686 = vunpack.c.l.s4 1966171168
    %v5687 = vunpack.c.0.s8 %v5686
    %v5688 = vlaneseq
    %v5689 = vshrl.u32 %v5688, 7
    %v5690 = vsub.s32 %v5687, %v5689
    %v5691 = vrot.slane %v5677, %v5690
    %v5692 = vcombine.low %v5684, %v5691
    %v5694 = vunpack.c.l.s4 1966171168
    %v5695 = vunpack.c.0.s8 %v5694
    %v5696 = vlaneseq
    %v5697 = vshrl.u32 %v5696, 7
    %v5698 = vsub.s32 %v5695, %v5697
    %v5699 = vrot.slane %v5692, %v5698
    %v5701 = vadd.f32 %v5671, %v5699
    %v5703 = vlaneseq
    %v5704 = vshrl.u32 %v5703, 7
    %v5705 = vsub.s32 0, %v5704
    %v5706 = vrot.slane %v5701, %v5705
    %v5707 = vlaneseq
    %v5708 = vshrl.u32 %v5707, 7
    %v5709 = vsub.s32 1, %v5708
    %v5710 = vrot.slane %v5701, %v5709
    %v5711 = vlaneseq
    %v5712 = vshrl.u32 %v5711, 7
    %v5713 = vsub.s32 2, %v5712
    %v5714 = vrot.slane %v5701, %v5713
    %v5715 = vlaneseq
    %v5716 = vshrl.u32 %v5715, 7
    %v5717 = vsub.s32 3, %v5716
    %v5718 = vrot.slane %v5701, %v5717
    %vm5723 = vcmask 1040384
    %v5724 = vsel %vm5723, %v5706, -inf
    %v5725 = vsel %vm5723, %v5710, -inf
    %v5726 = vsel %vm5723, %v5714, -inf
    %vm5727 = vcmask 778240
    %v5728 = vsel %vm5727, %v5718, -inf
    %v5729 = vmax.f32 %v5724, %v5725
    %v5730 = vmax.f32 %v5726, %v5728
    %v5731 = vmax.f32 %v5729, %v5730
    %5732 = vmax.xlane.f32.xlu0 %v5731
    %v5733 = vpop.xlane.xlu0 %5732
    %v5735 = vlaneseq
    %v5736 = vshrl.u32 %v5735, 7
    %v5737 = vsub.s32 0, %v5736
    %v5738 = vrot.slane %v5733, %v5737
    %v5740 = vsub.f32 %v5701, %v5738
    %v5741 = vmul.f32 %v5740, 1.442695
    %v5742 = vpow.pop %v5741
    %v5744 = vlaneseq
    %v5745 = vshrl.u32 %v5744, 7
    %v5746 = vsub.s32 0, %v5745
    %v5747 = vrot.slane %v5742, %v5746
    %v5748 = vlaneseq
    %v5749 = vshrl.u32 %v5748, 7
    %v5750 = vsub.s32 1, %v5749
    %v5751 = vrot.slane %v5742, %v5750
    %v5752 = vlaneseq
    %v5753 = vshrl.u32 %v5752, 7
    %v5754 = vsub.s32 2, %v5753
    %v5755 = vrot.slane %v5742, %v5754
    %v5756 = vlaneseq
    %v5757 = vshrl.u32 %v5756, 7
    %v5758 = vsub.s32 3, %v5757
    %v5759 = vrot.slane %v5742, %v5758
    %v5764 = vsel %vm5723, %v5747, 0.0
    %v5765 = vsel %vm5723, %v5751, 0.0
    %v5766 = vadd.f32 %v5764, %v5765
    %v5767 = vsel %vm5723, %v5755, 0.0
    %v5768 = vadd.f32 %v5766, %v5767
    %v5769 = vsel %vm5727, %v5759, 0.0
    %v5770 = vadd.f32 %v5768, %v5769
    %5771 = vadd.xlane.f32.xlu0 %v5770
    %v5772 = vpop.xlane.xlu0 %5771
    %v5774 = vlaneseq
    %v5775 = vshrl.u32 %v5774, 7
    %v5776 = vsub.s32 0, %v5775
    %v5777 = vrot.slane %v5772, %v5776
    %v5779 = vrcp.pop %v5777
    %v5780 = vmul.f32 %v5742, %v5779
    %v5781 = vlaneseq
    %vm5782 = vcmp.ge.s32.totalorder %v5781, 0
    %vm5783 = vcmp.lt.s32.totalorder %v5781, 480
    %vm5784 = vmand %vm5782, %vm5783
    %5785 = vst.msk [vmem:[#allocation15] sm:$0xf] %vm5784, %v5780
    // Predicated region
    $region66: #{sap_alt_forward.1} parent=1 // pred_check
      _
    $region67: #{sap_alt_forward.1} parent=1 // pred_check_branch
      %5787 = sbr.rel (0) target = $region69
    $region68: #{sap_alt_forward.1} parent=1 // pred_region
      %s5789 = ssub.s32 64, 64
      %5790 = vsyncadd [#allocation8], %s5789
      %s5792 = sshll.u32 [#allocation15], 4
      %s5793 = int_to_ptr.vmem [resolvable:$true] %s5792
      %5795 = dma.vmem_to_hbm [thread:$0]  %s5793, 64, %s9, [#allocation8]
    $region69: #{sap_alt_forward.1} parent=1 // pred_fallthru
      _
    // Predicated region
    $region70: #{sap_alt_forward.1} parent=1 // pred_check
      _
    $region71: #{sap_alt_forward.1} parent=1 // pred_check_branch
      %5797 = sbr.rel (0) target = $region73
    $region72: #{sap_alt_forward.1} parent=1 // pred_region
      %5798 = dma.done [#allocation8], 64
    $region73: #{sap_alt_forward.1} parent=1 // pred_fallthru
      _
    %5799 = vsyncpa [#allocation7], 1
    %5800 = vsyncpa [#allocation10], 1
    %5801 = vsyncpa [#allocation13], 1
    %5802 = vsyncpa [#allocation8], 1
  %5803 = vsyncmov [#allocation5]
  %s5804 = vpop.sfrf %5803
  %p5805 = scmp.eq.s32.totalorder %s5804, 0
  %p5806 = pneg %p5805
  %5808 = shalt.err (%p5806)
  %s5809 = scalar_lea.sflag [#allocation5], 1
  %5810 = vsyncmov %s5809
  %s5811 = vpop.sfrf %5810
  %p5812 = scmp.eq.s32.totalorder %s5811, 0
  %p5813 = pneg %p5812
  %5815 = shalt.err (%p5813)
  %s5816 = scalar_lea.sflag [#allocation5], 2
  %5817 = vsyncmov %s5816
  %s5818 = vpop.sfrf %5817
  %p5819 = scmp.eq.s32.totalorder %s5818, 0
  %p5820 = pneg %p5819
  %5822 = shalt.err (%p5820)
  %s5823 = scalar_lea.sflag [#allocation5], 3
  %5824 = vsyncmov %s5823
  %s5825 = vpop.sfrf %5824
  %p5826 = scmp.eq.s32.totalorder %s5825, 0
  %p5827 = pneg %p5826
  %5829 = shalt.err (%p5827)
  %s5830 = scalar_lea.sflag [#allocation5], 4
  %5831 = vsyncmov %s5830
  %s5832 = vpop.sfrf %5831
  %p5833 = scmp.eq.s32.totalorder %s5832, 0
  %p5834 = pneg %p5833
  %5836 = shalt.err (%p5834)

</llo_original>
